<compile_context>
chip_gen: v6e
topology: v6e:2x2x1
jax: 0.10.0
libtpu: 0.0.40
codegen_flags: <defaults>
</compile_context>

<pallas_src>
import functools

import jax
import jax.numpy as jnp
from jax.experimental import pallas as pl
from jax.experimental.pallas import tpu as pltpu

EPS = 1e-5          # nn.BatchNorm2d default eps
LANES = 128         # TPU lane width -> channel padding target


def _round_up(v, m):
    return (v + m - 1) // m * m


def _pick_row_tile(m):
    for t in (2048, 1024, 512, 256, 128, 64, 32, 16, 8):
        if m % t == 0:
            return t
    return m   # tiny / odd M: single block


def _default_vmem_limit():
    # Generation-aware scoped-VMEM budget: ~3/4 of physical VMEM, capped at
    # 96 MiB  (=> ~96 MiB on v5e/v6e's 128 MiB, ~48 MiB on v7x's 64 MiB).
    try:
        phys = int(pltpu.get_tpu_info().vmem_capacity_bytes)
        return min((phys * 3) // 4, 96 * 1024 * 1024)
    except Exception:
        return 32 * 1024 * 1024


VMEM_LIMIT = _default_vmem_limit()


# ----------------------------------------------------------------------------
# Kernel 1: conv1 (3x3 s2, 4 phase-packed GEMMs) + 1x1 s2 downsample
#           + bn1 / bn_ds per-image partial statistics (MXU ones-matmul)
# ----------------------------------------------------------------------------
def _conv1_kernel(xs_ref, w1g_ref, wd_ref, y1_ref, xd_ref, st_ref, *, ho, wo):
    cp = y1_ref.shape[-1]
    cin4 = xs_ref.shape[-1]
    xs = xs_ref[0]                                    # (Hs, Ws, 4*CIN_P) bf16

    acc = jnp.zeros((ho * wo, cp), jnp.float32)
    xd = None
    for qi in range(2):            # 4 GEMMs over the full 4*CIN_P contraction
        for qj in range(2):
            win = xs[qi:qi + ho, qj:qj + wo, :].reshape(ho * wo, cin4)
            if qi == 0 and qj == 0:
                # 1x1 stride-2 downsample: only the phase-(1,1) rows of the
                # packed weight are nonzero, so the full-lane window is reused.
                xd = jnp.dot(win, wd_ref[...],
                             preferred_element_type=jnp.float32)
            acc = acc + jnp.dot(win, w1g_ref[qi * 2 + qj],
                                preferred_element_type=jnp.float32)

    # bf16 intermediates to HBM; stats below use the f32 accumulators.
    y1_ref[...] = acc.astype(jnp.bfloat16).reshape(1, ho, wo, cp)
    xd_ref[...] = xd.astype(jnp.bfloat16).reshape(1, ho, wo, cp)

    # Per-channel sum / sum-of-squares on the MXU (ones-vector matmul).
    # Per-grid-step partials -> the grid axis stays "parallel".
    ones = jnp.ones((1, ho * wo), jnp.float32)
    st_ref[0, 0:1, :] = jnp.dot(ones, acc, preferred_element_type=jnp.float32)
    st_ref[0, 1:2, :] = jnp.dot(ones, acc * acc, preferred_element_type=jnp.float32)
    st_ref[0, 2:3, :] = jnp.dot(ones, xd, preferred_element_type=jnp.float32)
    st_ref[0, 3:4, :] = jnp.dot(ones, xd * xd, preferred_element_type=jnp.float32)


# ----------------------------------------------------------------------------
# Kernel 2: bn1(+ReLU) prologue + conv2 (3x3 s1, implicit im2col) + bn2 stats
# ----------------------------------------------------------------------------
def _conv2_kernel(y1_ref, w2_ref, s1_ref, h1_ref, y2_ref, st_ref, pad_buf,
                  *, ho, wo):
    cp = y2_ref.shape[-1]

    # bn1(+ReLU) prologue from precomputed global scale/shift (f32 math).
    a = jnp.maximum(
        y1_ref[0].astype(jnp.float32) * s1_ref[...].reshape(1, 1, cp)
        + h1_ref[...].reshape(1, 1, cp), 0.0)

    # conv2's zero padding is applied *after* bn+ReLU: zero the 1-pixel border
    # of the VMEM scratch (unconditionally -> safe under "parallel" sharding),
    # then write the activation into the interior.  Single hoisted bf16 cast.
    pad_buf[0:1, :, :] = jnp.zeros((1, wo + 2, cp), jnp.bfloat16)
    pad_buf[ho + 1:ho + 2, :, :] = jnp.zeros((1, wo + 2, cp), jnp.bfloat16)
    pad_buf[:, 0:1, :] = jnp.zeros((ho + 2, 1, cp), jnp.bfloat16)
    pad_buf[:, wo + 1:wo + 2, :] = jnp.zeros((ho + 2, 1, cp), jnp.bfloat16)
    pad_buf[1:ho + 1, 1:wo + 1, :] = a.astype(jnp.bfloat16)

    # conv2: implicit im2col, 9 shifted stride-1 bf16 windows (K = CP).
    acc = jnp.zeros((ho * wo, cp), jnp.float32)
    for ki in range(3):
        for kj in range(3):
            win = pad_buf[ki:ki + ho, kj:kj + wo, :].reshape(ho * wo, cp)
            acc = acc + jnp.dot(win, w2_ref[ki * 3 + kj],
                                preferred_element_type=jnp.float32)

    y2_ref[...] = acc.astype(jnp.bfloat16).reshape(1, ho, wo, cp)

    ones = jnp.ones((1, ho * wo), jnp.float32)
    st_ref[0, 0:1, :] = jnp.dot(ones, acc, preferred_element_type=jnp.float32)
    st_ref[0, 1:2, :] = jnp.dot(ones, acc * acc, preferred_element_type=jnp.float32)


# ----------------------------------------------------------------------------
# Kernel 3: bn2 + bn_ds + residual add + ReLU (lane-dense [TM, CP], parallel)
# ----------------------------------------------------------------------------
def _bn_residual_kernel(y2_ref, xd_ref, s2_ref, h2_ref, sd_ref, hd_ref, o_ref):
    y2 = y2_ref[...].astype(jnp.float32)
    xd = xd_ref[...].astype(jnp.float32)
    o_ref[...] = jnp.maximum(
        y2 * s2_ref[...] + h2_ref[...] + xd * sd_ref[...] + hd_ref[...], 0.0)


# ----------------------------------------------------------------------------
# Host-side weight packing (cheap, one-time layout work -- no im2col expansion)
# ----------------------------------------------------------------------------
def _pack_conv1_groups(w_pt, cin_p, cout_p):
    """(Cout, Cin, 3, 3) -> (4, 4*cin_p, cout_p) bf16: one weight per shift
    group (ki//2, kj//2); phase rows a group does not use are zero."""
    cout, cin, kh, kw = w_pt.shape
    wt = jnp.transpose(w_pt, (2, 3, 1, 0)).astype(jnp.float32)  # (kh,kw,cin,cout)
    groups = []
    for qi in range(2):
        for qj in range(2):
            blocks = []
            for pi in range(2):
                for pj in range(2):
                    ki, kj = 2 * qi + pi, 2 * qj + pj
                    blk = (wt[ki, kj] if (ki < kh and kj < kw)
                           else jnp.zeros((cin, cout), jnp.float32))
                    blocks.append(jnp.pad(blk, ((0, cin_p - cin),
                                                (0, cout_p - cout))))
            groups.append(jnp.concatenate(blocks, axis=0))
    return jnp.stack(groups, axis=0).astype(jnp.bfloat16)


def _pack_downsample(wd_pt, cin_p, cout_p):
    """(Cout, Cin, 1, 1) -> (4*cin_p, cout_p) bf16; only phase-(1,1) rows set."""
    cout, cin = wd_pt.shape[:2]
    w = jnp.pad(jnp.transpose(wd_pt.reshape(cout, cin), (1, 0)).astype(jnp.float32),
                ((0, cin_p - cin), (0, cout_p - cout)))
    full = jnp.zeros((4 * cin_p, cout_p), jnp.float32)
    full = full.at[3 * cin_p:4 * cin_p, :].set(w)
    return full.astype(jnp.bfloat16)


def _conv_w_to_taps(w_pt, cin_p, cout_p):
    """(Cout, Cin, 3, 3) -> (9, cin_p, cout_p) bf16, zero-padded."""
    cout, cin, kh, kw = w_pt.shape
    wt = jnp.transpose(w_pt, (2, 3, 1, 0)).reshape(kh * kw, cin, cout)
    wt = jnp.pad(wt, ((0, 0), (0, cin_p - cin), (0, cout_p - cout)))
    return wt.astype(jnp.bfloat16)


def _pad_vec(v, cp, fill):
    return jnp.pad(v.astype(jnp.float32), (0, cp - v.shape[0]),
                   constant_values=fill)


def _bn_scale_shift(s, ssq, gamma, beta, cnt):
    mean = s / cnt
    var = jnp.maximum(ssq / cnt - mean * mean, 0.0)   # guard cancellation
    scale = gamma * jax.lax.rsqrt(var + EPS)
    shift = beta - mean * scale
    return scale.reshape(1, -1), shift.reshape(1, -1)


# ----------------------------------------------------------------------------
# Residual8 forward
# ----------------------------------------------------------------------------
def residual8_forward(x_nchw, p):
    x = jnp.transpose(x_nchw, (0, 2, 3, 1)).astype(jnp.float32)   # NCHW -> NHWC
    N, H, W, Cin = x.shape
    Cout = p["w1"].shape[0]
    assert H % 2 == 0 and W % 2 == 0, "Residual8 requires even spatial dims"
    Ho, Wo = H // 2, W // 2
    CIN_P = _round_up(Cin, 8)          # contraction sub-block -> multiple of 8
    CP = _round_up(Cout, LANES)        # channel/lane dim -> multiple of 128
    M = N * Ho * Wo                    # BN reduction count (batch * spatial)
    cnt = float(M)

    # Space-to-depth of the spatially padded input: stride-2 taps become
    # stride-1 shifted windows (no strided gathers inside the kernel).
    xp = jnp.pad(x, ((0, 0), (1, 1), (1, 1), (0, CIN_P - Cin)))
    Hs, Ws = Ho + 1, Wo + 1
    xs = xp.reshape(N, Hs, 2, Ws, 2, CIN_P).transpose(0, 1, 3, 2, 4, 5)
    xs = xs.reshape(N, Hs, Ws, 4 * CIN_P).astype(jnp.bfloat16)

    w1g = _pack_conv1_groups(p["w1"], CIN_P, CP)      # (4, 4*CIN_P, CP) bf16
    wdp = _pack_downsample(p["wd"], CIN_P, CP)        # (4*CIN_P, CP)    bf16
    w2 = _conv_w_to_taps(p["w2"], CP, CP)             # (9, CP, CP)      bf16
    g1, b1 = _pad_vec(p["g1"], CP, 1.0), _pad_vec(p["b1"], CP, 0.0)
    g2, b2 = _pad_vec(p["g2"], CP, 1.0), _pad_vec(p["b2"], CP, 0.0)
    gd, bd = _pad_vec(p["gd"], CP, 1.0), _pad_vec(p["bd"], CP, 0.0)

    params = pltpu.CompilerParams(dimension_semantics=("parallel",),
                                  vmem_limit_bytes=VMEM_LIMIT)

    # ---- K1: conv1 + 1x1 s2 downsample + bn1 / bn_ds per-image partials -----
    y1, xd, st1_p = pl.pallas_call(
        functools.partial(_conv1_kernel, ho=Ho, wo=Wo),
        grid=(N,),
        in_specs=[
            pl.BlockSpec((1, Hs, Ws, 4 * CIN_P), lambda n: (n, 0, 0, 0)),
            pl.BlockSpec((4, 4 * CIN_P, CP), lambda n: (0, 0, 0)),
            pl.BlockSpec((4 * CIN_P, CP), lambda n: (0, 0)),
        ],
        out_specs=[
            pl.BlockSpec((1, Ho, Wo, CP), lambda n: (n, 0, 0, 0)),
            pl.BlockSpec((1, Ho, Wo, CP), lambda n: (n, 0, 0, 0)),
            pl.BlockSpec((1, 4, CP), lambda n: (n, 0, 0)),
        ],
        out_shape=[
            jax.ShapeDtypeStruct((N, Ho, Wo, CP), jnp.bfloat16),
            jax.ShapeDtypeStruct((N, Ho, Wo, CP), jnp.bfloat16),
            jax.ShapeDtypeStruct((N, 4, CP), jnp.float32),
        ],
        compiler_params=params,
    )(xs, w1g, wdp)

    # Tiny XLA reduction of the per-image partials -> BN scale/shift vectors.
    st1 = jnp.sum(st1_p, axis=0)                                  # (4, CP)
    s1, h1 = _bn_scale_shift(st1[0], st1[1], g1, b1, cnt)         # bn1
    sd, hd = _bn_scale_shift(st1[2], st1[3], gd, bd, cnt)         # bn_ds

    # ---- K2: bn1+ReLU prologue + conv2 + bn2 per-image partials -------------
    y2, st2_p = pl.pallas_call(
        functools.partial(_conv2_kernel, ho=Ho, wo=Wo),
        grid=(N,),
        in_specs=[
            pl.BlockSpec((1, Ho, Wo, CP), lambda n: (n, 0, 0, 0)),
            pl.BlockSpec((9, CP, CP), lambda n: (0, 0, 0)),
            pl.BlockSpec((1, CP), lambda n: (0, 0)),
            pl.BlockSpec((1, CP), lambda n: (0, 0)),
        ],
        out_specs=[
            pl.BlockSpec((1, Ho, Wo, CP), lambda n: (n, 0, 0, 0)),
            pl.BlockSpec((1, 2, CP), lambda n: (n, 0, 0)),
        ],
        out_shape=[
            jax.ShapeDtypeStruct((N, Ho, Wo, CP), jnp.bfloat16),
            jax.ShapeDtypeStruct((N, 2, CP), jnp.float32),
        ],
        scratch_shapes=[pltpu.VMEM((Ho + 2, Wo + 2, CP), jnp.bfloat16)],
        compiler_params=params,
    )(y1, w2, s1, h1)

    st2 = jnp.sum(st2_p, axis=0)                                  # (2, CP)
    s2, h2 = _bn_scale_shift(st2[0], st2[1], g2, b2, cnt)         # bn2

    # ---- K3: bn2 + bn_ds + residual add + ReLU (lane-dense [TM, CP] tiles) --
    TM = _pick_row_tile(M)
    out_flat = pl.pallas_call(
        _bn_residual_kernel,
        grid=(M // TM,),
        in_specs=[
            pl.BlockSpec((TM, CP), lambda i: (i, 0)),
            pl.BlockSpec((TM, CP), lambda i: (i, 0)),
            pl.BlockSpec((1, CP), lambda i: (0, 0)),
            pl.BlockSpec((1, CP), lambda i: (0, 0)),
            pl.BlockSpec((1, CP), lambda i: (0, 0)),
            pl.BlockSpec((1, CP), lambda i: (0, 0)),
        ],
        out_specs=pl.BlockSpec((TM, CP), lambda i: (i, 0)),
        out_shape=jax.ShapeDtypeStruct((M, CP), jnp.float32),
        compiler_params=params,
    )(y2.reshape(M, CP), xd.reshape(M, CP), s2, h2, sd, hd)

    out = out_flat.reshape(N, Ho, Wo, CP)[:, :, :, :Cout]
    return jnp.transpose(out, (0, 3, 1, 2))                       # back to NCHW


# ----------------------------------------------------------------------------
# Pure-JAX f32 reference (matches the PyTorch module in train() mode)
# ----------------------------------------------------------------------------
def residual8_reference(x_nchw, p):
    def conv(x, w, stride, pad):
        return jax.lax.conv_general_dilated(
            x, w, (stride, stride), [(pad, pad), (pad, pad)],
            dimension_numbers=("NCHW", "OIHW", "NCHW"))

    def bn(y, g, b):
        mean = jnp.mean(y, axis=(0, 2, 3), keepdims=True)
        var = jnp.mean(jnp.square(y - mean), axis=(0, 2, 3), keepdims=True)
        return ((y - mean) * jax.lax.rsqrt(var + EPS) * g.reshape(1, -1, 1, 1)
                + b.reshape(1, -1, 1, 1))

    x = x_nchw.astype(jnp.float32)
    y = jnp.maximum(bn(conv(x, p["w1"], 2, 1), p["g1"], p["b1"]), 0.0)
    y = bn(conv(y, p["w2"], 1, 1), p["g2"], p["b2"])
    d = bn(conv(x, p["wd"], 2, 0), p["gd"], p["bd"])
    return jnp.maximum(y + d, 0.0)


def init_params(key, c_in, c_out):
    k1, k2, k3 = jax.random.split(key, 3)
    scale = 0.1
    return {
        "w1": scale * jax.random.normal(k1, (c_out, c_in, 3, 3), jnp.float32),
        "g1": jnp.ones((c_out,), jnp.float32),
        "b1": jnp.zeros((c_out,), jnp.float32),
        "w2": scale * jax.random.normal(k2, (c_out, c_out, 3, 3), jnp.float32),
        "g2": jnp.ones((c_out,), jnp.float32),
        "b2": jnp.zeros((c_out,), jnp.float32),
        "wd": scale * jax.random.normal(k3, (c_out, c_in, 1, 1), jnp.float32),
        "gd": jnp.ones((c_out,), jnp.float32),
        "bd": jnp.zeros((c_out,), jnp.float32),
    }


if __name__ == "__main__":
    key = jax.random.PRNGKey(0)
    kx, kp = jax.random.split(key)
    B, C_IN, C_OUT, HW = 2, 4, 8, 16
    x = jax.random.normal(kx, (B, C_IN, HW, HW), jnp.float32)   # NCHW, like PyTorch
    params = init_params(kp, C_IN, C_OUT)

    out = jax.jit(residual8_forward)(x, params)
    jax.block_until_ready(out)
    assert out.shape == (B, C_OUT, HW // 2, HW // 2)

    # Correctness check against a pure f32 reference (bf16 GEMM path -> loose tol).
    ref = residual8_reference(x, params)
    max_err = float(jnp.max(jnp.abs(out - ref)))
    assert max_err < 0.2, f"mismatch vs f32 reference: max_err={max_err}"
    print("KERNEL_OK")
</pallas_src>

<mosaic_0001>
module attributes {stable_mosaic.version = 11 : i64} {
  func.func @_conv1_kernel(%arg0: i32, %arg1: memref<1x9x9x32xbf16, #tpu.memory_space<vmem>>, %arg2: memref<4x32x128xbf16, #tpu.memory_space<vmem>>, %arg3: memref<32x128xbf16, #tpu.memory_space<vmem>>, %arg4: memref<1x8x8x128xbf16, #tpu.memory_space<vmem>>, %arg5: memref<1x8x8x128xbf16, #tpu.memory_space<vmem>>, %arg6: memref<1x4x128xf32, #tpu.memory_space<vmem>>) attributes {dimension_semantics = [#tpu.dimension_semantics<parallel>], iteration_bounds = array<i64: 2>, scalar_prefetch = 0 : i64, scratch_operands = 0 : i64, tpu.core_type = #tpu.core_type<tc>, window_params = [{transform_indices = @transform_0, window_bounds = array<i64: 1, 9, 9, 32>}, {pipeline_mode = #tpu.pipeline_mode<synchronous>, transform_indices = @transform_1, window_bounds = array<i64: 4, 32, 128>}, {pipeline_mode = #tpu.pipeline_mode<synchronous>, transform_indices = @transform_2, window_bounds = array<i64: 32, 128>}, {transform_indices = @transform_3, window_bounds = array<i64: 1, 8, 8, 128>}, {transform_indices = @transform_4, window_bounds = array<i64: 1, 8, 8, 128>}, {transform_indices = @transform_5, window_bounds = array<i64: 1, 4, 128>}]} {
    %c0 = arith.constant 0 : index
    %c0_0 = arith.constant 0 : index
    %c0_1 = arith.constant 0 : index
    %c0_2 = arith.constant 0 : index
    %0 = vector.load %arg1[%c0, %c0_0, %c0_1, %c0_2] : memref<1x9x9x32xbf16, #tpu.memory_space<vmem>>, vector<1x9x9x32xbf16>
    %1 = vector.shape_cast %0 : vector<1x9x9x32xbf16> to vector<9x9x32xbf16>
    %cst = arith.constant 0.000000e+00 : f32
    %2 = vector.broadcast %cst : f32 to vector<64x128xf32>
    %3 = vector.extract_strided_slice %1 {offsets = [0, 0, 0], sizes = [8, 8, 32], strides = [1, 1, 1]} : vector<9x9x32xbf16> to vector<8x8x32xbf16>
    %4 = vector.shape_cast %3 : vector<8x8x32xbf16> to vector<64x32xbf16>
    %c0_3 = arith.constant 0 : index
    %c0_4 = arith.constant 0 : index
    %5 = vector.load %arg3[%c0_3, %c0_4] : memref<32x128xbf16, #tpu.memory_space<vmem>>, vector<32x128xbf16>
    %cst_5 = arith.constant dense<0.000000e+00> : vector<64x128xf32>
    %6 = tpu.matmul %4, %5, %cst_5 {dimension_numbers = #tpu.dot_dimension_numbers<[1], [0], [0], [1], [0, 0, 1, 1], [], []>} : vector<64x32xbf16>, vector<32x128xbf16>, vector<64x128xf32> -> vector<64x128xf32>
    %c0_6 = arith.constant 0 : index
    %c0_7 = arith.constant 0 : index
    %c0_8 = arith.constant 0 : index
    %7 = vector.load %arg2[%c0_6, %c0_7, %c0_8] : memref<4x32x128xbf16, #tpu.memory_space<vmem>>, vector<1x32x128xbf16>
    %8 = vector.shape_cast %7 : vector<1x32x128xbf16> to vector<32x128xbf16>
    %cst_9 = arith.constant dense<0.000000e+00> : vector<64x128xf32>
    %9 = tpu.matmul %4, %8, %cst_9 {dimension_numbers = #tpu.dot_dimension_numbers<[1], [0], [0], [1], [0, 0, 1, 1], [], []>} : vector<64x32xbf16>, vector<32x128xbf16>, vector<64x128xf32> -> vector<64x128xf32>
    %10 = arith.addf %2, %9 : vector<64x128xf32>
    %11 = vector.extract_strided_slice %1 {offsets = [0, 1, 0], sizes = [8, 8, 32], strides = [1, 1, 1]} : vector<9x9x32xbf16> to vector<8x8x32xbf16>
    %12 = vector.shape_cast %11 : vector<8x8x32xbf16> to vector<64x32xbf16>
    %c1 = arith.constant 1 : index
    %c0_10 = arith.constant 0 : index
    %c0_11 = arith.constant 0 : index
    %13 = vector.load %arg2[%c1, %c0_10, %c0_11] : memref<4x32x128xbf16, #tpu.memory_space<vmem>>, vector<1x32x128xbf16>
    %14 = vector.shape_cast %13 : vector<1x32x128xbf16> to vector<32x128xbf16>
    %cst_12 = arith.constant dense<0.000000e+00> : vector<64x128xf32>
    %15 = tpu.matmul %12, %14, %cst_12 {dimension_numbers = #tpu.dot_dimension_numbers<[1], [0], [0], [1], [0, 0, 1, 1], [], []>} : vector<64x32xbf16>, vector<32x128xbf16>, vector<64x128xf32> -> vector<64x128xf32>
    %16 = arith.addf %10, %15 : vector<64x128xf32>
    %17 = vector.extract_strided_slice %1 {offsets = [1, 0, 0], sizes = [8, 8, 32], strides = [1, 1, 1]} : vector<9x9x32xbf16> to vector<8x8x32xbf16>
    %18 = vector.shape_cast %17 : vector<8x8x32xbf16> to vector<64x32xbf16>
    %c2 = arith.constant 2 : index
    %c0_13 = arith.constant 0 : index
    %c0_14 = arith.constant 0 : index
    %19 = vector.load %arg2[%c2, %c0_13, %c0_14] : memref<4x32x128xbf16, #tpu.memory_space<vmem>>, vector<1x32x128xbf16>
    %20 = vector.shape_cast %19 : vector<1x32x128xbf16> to vector<32x128xbf16>
    %cst_15 = arith.constant dense<0.000000e+00> : vector<64x128xf32>
    %21 = tpu.matmul %18, %20, %cst_15 {dimension_numbers = #tpu.dot_dimension_numbers<[1], [0], [0], [1], [0, 0, 1, 1], [], []>} : vector<64x32xbf16>, vector<32x128xbf16>, vector<64x128xf32> -> vector<64x128xf32>
    %22 = arith.addf %16, %21 : vector<64x128xf32>
    %23 = vector.extract_strided_slice %1 {offsets = [1, 1, 0], sizes = [8, 8, 32], strides = [1, 1, 1]} : vector<9x9x32xbf16> to vector<8x8x32xbf16>
    %24 = vector.shape_cast %23 : vector<8x8x32xbf16> to vector<64x32xbf16>
    %c3 = arith.constant 3 : index
    %c0_16 = arith.constant 0 : index
    %c0_17 = arith.constant 0 : index
    %25 = vector.load %arg2[%c3, %c0_16, %c0_17] : memref<4x32x128xbf16, #tpu.memory_space<vmem>>, vector<1x32x128xbf16>
    %26 = vector.shape_cast %25 : vector<1x32x128xbf16> to vector<32x128xbf16>
    %cst_18 = arith.constant dense<0.000000e+00> : vector<64x128xf32>
    %27 = tpu.matmul %24, %26, %cst_18 {dimension_numbers = #tpu.dot_dimension_numbers<[1], [0], [0], [1], [0, 0, 1, 1], [], []>} : vector<64x32xbf16>, vector<32x128xbf16>, vector<64x128xf32> -> vector<64x128xf32>
    %28 = arith.addf %22, %27 : vector<64x128xf32>
    %29 = arith.truncf %28 : vector<64x128xf32> to vector<64x128xbf16>
    %30 = vector.shape_cast %29 : vector<64x128xbf16> to vector<1x8x8x128xbf16>
    %c0_19 = arith.constant 0 : index
    %c0_20 = arith.constant 0 : index
    %c0_21 = arith.constant 0 : index
    %c0_22 = arith.constant 0 : index
    %31 = vector.load %arg4[%c0_19, %c0_20, %c0_21, %c0_22] : memref<1x8x8x128xbf16, #tpu.memory_space<vmem>>, vector<1x8x8x128xbf16>
    tpu.vector_store %arg4[%c0_19, %c0_20, %c0_21, %c0_22], %30 {strides = array<i32>} : memref<1x8x8x128xbf16, #tpu.memory_space<vmem>>, vector<1x8x8x128xbf16>,
    %32 = arith.truncf %6 : vector<64x128xf32> to vector<64x128xbf16>
    %33 = vector.shape_cast %32 : vector<64x128xbf16> to vector<1x8x8x128xbf16>
    %c0_23 = arith.constant 0 : index
    %c0_24 = arith.constant 0 : index
    %c0_25 = arith.constant 0 : index
    %c0_26 = arith.constant 0 : index
    %34 = vector.load %arg5[%c0_23, %c0_24, %c0_25, %c0_26] : memref<1x8x8x128xbf16, #tpu.memory_space<vmem>>, vector<1x8x8x128xbf16>
    tpu.vector_store %arg5[%c0_23, %c0_24, %c0_25, %c0_26], %33 {strides = array<i32>} : memref<1x8x8x128xbf16, #tpu.memory_space<vmem>>, vector<1x8x8x128xbf16>,
    %cst_27 = arith.constant 1.000000e+00 : f32
    %35 = vector.broadcast %cst_27 : f32 to vector<1x64xf32>
    %cst_28 = arith.constant dense<0.000000e+00> : vector<1x128xf32>
    %36 = tpu.matmul %35, %28, %cst_28 {dimension_numbers = #tpu.dot_dimension_numbers<[1], [0], [0], [1], [0, 0, 1, 1], [], []>} : vector<1x64xf32>, vector<64x128xf32>, vector<1x128xf32> -> vector<1x128xf32>
    %c0_29 = arith.constant 0 : index
    %c0_30 = arith.constant 0 : index
    %c0_31 = arith.constant 0 : index
    %37 = vector.load %arg6[%c0_29, %c0_30, %c0_31] : memref<1x4x128xf32, #tpu.memory_space<vmem>>, vector<1x1x128xf32>
    %38 = vector.shape_cast %37 : vector<1x1x128xf32> to vector<1x128xf32>
    %39 = vector.shape_cast %36 : vector<1x128xf32> to vector<1x1x128xf32>
    tpu.vector_store %arg6[%c0_29, %c0_30, %c0_31], %39 {strides = array<i32>} : memref<1x4x128xf32, #tpu.memory_space<vmem>>, vector<1x1x128xf32>,
    %40 = arith.mulf %28, %28 : vector<64x128xf32>
    %cst_32 = arith.constant dense<0.000000e+00> : vector<1x128xf32>
    %41 = tpu.matmul %35, %40, %cst_32 {dimension_numbers = #tpu.dot_dimension_numbers<[1], [0], [0], [1], [0, 0, 1, 1], [], []>} : vector<1x64xf32>, vector<64x128xf32>, vector<1x128xf32> -> vector<1x128xf32>
    %c0_33 = arith.constant 0 : index
    %c1_34 = arith.constant 1 : index
    %c0_35 = arith.constant 0 : index
    %42 = vector.load %arg6[%c0_33, %c1_34, %c0_35] : memref<1x4x128xf32, #tpu.memory_space<vmem>>, vector<1x1x128xf32>
    %43 = vector.shape_cast %42 : vector<1x1x128xf32> to vector<1x128xf32>
    %44 = vector.shape_cast %41 : vector<1x128xf32> to vector<1x1x128xf32>
    tpu.vector_store %arg6[%c0_33, %c1_34, %c0_35], %44 {strides = array<i32>} : memref<1x4x128xf32, #tpu.memory_space<vmem>>, vector<1x1x128xf32>,
    %cst_36 = arith.constant dense<0.000000e+00> : vector<1x128xf32>
    %45 = tpu.matmul %35, %6, %cst_36 {dimension_numbers = #tpu.dot_dimension_numbers<[1], [0], [0], [1], [0, 0, 1, 1], [], []>} : vector<1x64xf32>, vector<64x128xf32>, vector<1x128xf32> -> vector<1x128xf32>
    %c0_37 = arith.constant 0 : index
    %c2_38 = arith.constant 2 : index
    %c0_39 = arith.constant 0 : index
    %46 = vector.load %arg6[%c0_37, %c2_38, %c0_39] : memref<1x4x128xf32, #tpu.memory_space<vmem>>, vector<1x1x128xf32>
    %47 = vector.shape_cast %46 : vector<1x1x128xf32> to vector<1x128xf32>
    %48 = vector.shape_cast %45 : vector<1x128xf32> to vector<1x1x128xf32>
    tpu.vector_store %arg6[%c0_37, %c2_38, %c0_39], %48 {strides = array<i32>} : memref<1x4x128xf32, #tpu.memory_space<vmem>>, vector<1x1x128xf32>,
    %49 = arith.mulf %6, %6 : vector<64x128xf32>
    %cst_40 = arith.constant dense<0.000000e+00> : vector<1x128xf32>
    %50 = tpu.matmul %35, %49, %cst_40 {dimension_numbers = #tpu.dot_dimension_numbers<[1], [0], [0], [1], [0, 0, 1, 1], [], []>} : vector<1x64xf32>, vector<64x128xf32>, vector<1x128xf32> -> vector<1x128xf32>
    %c0_41 = arith.constant 0 : index
    %c3_42 = arith.constant 3 : index
    %c0_43 = arith.constant 0 : index
    %51 = vector.load %arg6[%c0_41, %c3_42, %c0_43] : memref<1x4x128xf32, #tpu.memory_space<vmem>>, vector<1x1x128xf32>
    %52 = vector.shape_cast %51 : vector<1x1x128xf32> to vector<1x128xf32>
    %53 = vector.shape_cast %50 : vector<1x128xf32> to vector<1x1x128xf32>
    tpu.vector_store %arg6[%c0_41, %c3_42, %c0_43], %53 {strides = array<i32>} : memref<1x4x128xf32, #tpu.memory_space<vmem>>, vector<1x1x128xf32>,
    return
  }
  func.func @transform_0(%arg0: i32) -> (i32, i32, i32, i32) {
    %c0_i32 = arith.constant 0 : i32
    %c0_i32_0 = arith.constant 0 : i32
    %c0_i32_1 = arith.constant 0 : i32
    %c0_i32_2 = arith.constant 0 : i32
    return %arg0, %c0_i32, %c0_i32_0, %c0_i32_1 : i32, i32, i32, i32
  }
  func.func @transform_1(%arg0: i32) -> (i32, i32, i32) {
    %c0_i32 = arith.constant 0 : i32
    %c0_i32_0 = arith.constant 0 : i32
    %c0_i32_1 = arith.constant 0 : i32
    %c0_i32_2 = arith.constant 0 : i32
    return %c0_i32, %c0_i32_0, %c0_i32_1 : i32, i32, i32
  }
  func.func @transform_2(%arg0: i32) -> (i32, i32) {
    %c0_i32 = arith.constant 0 : i32
    %c0_i32_0 = arith.constant 0 : i32
    %c0_i32_1 = arith.constant 0 : i32
    return %c0_i32, %c0_i32_0 : i32, i32
  }
  func.func @transform_3(%arg0: i32) -> (i32, i32, i32, i32) {
    %c0_i32 = arith.constant 0 : i32
    %c0_i32_0 = arith.constant 0 : i32
    %c0_i32_1 = arith.constant 0 : i32
    %c0_i32_2 = arith.constant 0 : i32
    return %arg0, %c0_i32, %c0_i32_0, %c0_i32_1 : i32, i32, i32, i32
  }
  func.func @transform_4(%arg0: i32) -> (i32, i32, i32, i32) {
    %c0_i32 = arith.constant 0 : i32
    %c0_i32_0 = arith.constant 0 : i32
    %c0_i32_1 = arith.constant 0 : i32
    %c0_i32_2 = arith.constant 0 : i32
    return %arg0, %c0_i32, %c0_i32_0, %c0_i32_1 : i32, i32, i32, i32
  }
  func.func @transform_5(%arg0: i32) -> (i32, i32, i32) {
    %c0_i32 = arith.constant 0 : i32
    %c0_i32_0 = arith.constant 0 : i32
    %c0_i32_1 = arith.constant 0 : i32
    return %arg0, %c0_i32, %c0_i32_0 : i32, i32, i32
  }
}

module attributes {stable_mosaic.version = 11 : i64} {
  func.func @_conv2_kernel(%arg0: i32, %arg1: memref<1x8x8x128xbf16, #tpu.memory_space<vmem>>, %arg2: memref<9x128x128xbf16, #tpu.memory_space<vmem>>, %arg3: memref<1x128xf32, #tpu.memory_space<vmem>>, %arg4: memref<1x128xf32, #tpu.memory_space<vmem>>, %arg5: memref<1x8x8x128xbf16, #tpu.memory_space<vmem>>, %arg6: memref<1x2x128xf32, #tpu.memory_space<vmem>>, %arg7: memref<10x10x128xbf16, #tpu.memory_space<vmem>>) attributes {dimension_semantics = [#tpu.dimension_semantics<parallel>], iteration_bounds = array<i64: 2>, scalar_prefetch = 0 : i64, scratch_operands = 1 : i64, tpu.core_type = #tpu.core_type<tc>, window_params = [{transform_indices = @transform_0, window_bounds = array<i64: 1, 8, 8, 128>}, {pipeline_mode = #tpu.pipeline_mode<synchronous>, transform_indices = @transform_1, window_bounds = array<i64: 9, 128, 128>}, {pipeline_mode = #tpu.pipeline_mode<synchronous>, transform_indices = @transform_2, window_bounds = array<i64: 1, 128>}, {pipeline_mode = #tpu.pipeline_mode<synchronous>, transform_indices = @transform_3, window_bounds = array<i64: 1, 128>}, {transform_indices = @transform_4, window_bounds = array<i64: 1, 8, 8, 128>}, {transform_indices = @transform_5, window_bounds = array<i64: 1, 2, 128>}]} {
    %c0 = arith.constant 0 : index
    %c0_0 = arith.constant 0 : index
    %c0_1 = arith.constant 0 : index
    %c0_2 = arith.constant 0 : index
    %0 = vector.load %arg1[%c0, %c0_0, %c0_1, %c0_2] : memref<1x8x8x128xbf16, #tpu.memory_space<vmem>>, vector<1x8x8x128xbf16>
    %1 = vector.shape_cast %0 : vector<1x8x8x128xbf16> to vector<8x8x128xbf16>
    %2 = arith.extf %1 : vector<8x8x128xbf16> to vector<8x8x128xf32>
    %c0_3 = arith.constant 0 : index
    %c0_4 = arith.constant 0 : index
    %3 = vector.load %arg3[%c0_3, %c0_4] : memref<1x128xf32, #tpu.memory_space<vmem>>, vector<1x128xf32>
    %4 = vector.shape_cast %3 : vector<1x128xf32> to vector<1x1x128xf32>
    %5 = vector.broadcast %4 : vector<1x1x128xf32> to vector<8x8x128xf32>
    %6 = arith.mulf %2, %5 : vector<8x8x128xf32>
    %c0_5 = arith.constant 0 : index
    %c0_6 = arith.constant 0 : index
    %7 = vector.load %arg4[%c0_5, %c0_6] : memref<1x128xf32, #tpu.memory_space<vmem>>, vector<1x128xf32>
    %8 = vector.shape_cast %7 : vector<1x128xf32> to vector<1x1x128xf32>
    %9 = vector.broadcast %8 : vector<1x1x128xf32> to vector<8x8x128xf32>
    %10 = arith.addf %6, %9 : vector<8x8x128xf32>
    %cst = arith.constant 0.000000e+00 : f32
    %11 = vector.broadcast %cst : f32 to vector<8x8x128xf32>
    %12 = arith.maximumf %10, %11 : vector<8x8x128xf32>
    %cst_7 = arith.constant 0.000000e+00 : bf16
    %13 = vector.broadcast %cst_7 : bf16 to vector<1x10x128xbf16>
    %c0_8 = arith.constant 0 : index
    %c0_9 = arith.constant 0 : index
    %c0_10 = arith.constant 0 : index
    %14 = vector.load %arg7[%c0_8, %c0_9, %c0_10] : memref<10x10x128xbf16, #tpu.memory_space<vmem>>, vector<1x10x128xbf16>
    tpu.vector_store %arg7[%c0_8, %c0_9, %c0_10], %13 {strides = array<i32>} : memref<10x10x128xbf16, #tpu.memory_space<vmem>>, vector<1x10x128xbf16>,
    %cst_11 = arith.constant 0.000000e+00 : bf16
    %15 = vector.broadcast %cst_11 : bf16 to vector<1x10x128xbf16>
    %c9 = arith.constant 9 : index
    %c0_12 = arith.constant 0 : index
    %c0_13 = arith.constant 0 : index
    %16 = vector.load %arg7[%c9, %c0_12, %c0_13] : memref<10x10x128xbf16, #tpu.memory_space<vmem>>, vector<1x10x128xbf16>
    tpu.vector_store %arg7[%c9, %c0_12, %c0_13], %15 {strides = array<i32>} : memref<10x10x128xbf16, #tpu.memory_space<vmem>>, vector<1x10x128xbf16>,
    %cst_14 = arith.constant 0.000000e+00 : bf16
    %17 = vector.broadcast %cst_14 : bf16 to vector<10x1x128xbf16>
    %c0_15 = arith.constant 0 : index
    %c0_16 = arith.constant 0 : index
    %c0_17 = arith.constant 0 : index
    %18 = vector.load %arg7[%c0_15, %c0_16, %c0_17] : memref<10x10x128xbf16, #tpu.memory_space<vmem>>, vector<10x1x128xbf16>
    tpu.vector_store %arg7[%c0_15, %c0_16, %c0_17], %17 {strides = array<i32>} : memref<10x10x128xbf16, #tpu.memory_space<vmem>>, vector<10x1x128xbf16>,
    %cst_18 = arith.constant 0.000000e+00 : bf16
    %19 = vector.broadcast %cst_18 : bf16 to vector<10x1x128xbf16>
    %c0_19 = arith.constant 0 : index
    %c9_20 = arith.constant 9 : index
    %c0_21 = arith.constant 0 : index
    %20 = vector.load %arg7[%c0_19, %c9_20, %c0_21] : memref<10x10x128xbf16, #tpu.memory_space<vmem>>, vector<10x1x128xbf16>
    tpu.vector_store %arg7[%c0_19, %c9_20, %c0_21], %19 {strides = array<i32>} : memref<10x10x128xbf16, #tpu.memory_space<vmem>>, vector<10x1x128xbf16>,
    %21 = arith.truncf %12 : vector<8x8x128xf32> to vector<8x8x128xbf16>
    %c1 = arith.constant 1 : index
    %c1_22 = arith.constant 1 : index
    %c0_23 = arith.constant 0 : index
    %22 = vector.load %arg7[%c1, %c1_22, %c0_23] : memref<10x10x128xbf16, #tpu.memory_space<vmem>>, vector<8x8x128xbf16>
    tpu.vector_store %arg7[%c1, %c1_22, %c0_23], %21 {strides = array<i32>} : memref<10x10x128xbf16, #tpu.memory_space<vmem>>, vector<8x8x128xbf16>,
    %cst_24 = arith.constant 0.000000e+00 : f32
    %23 = vector.broadcast %cst_24 : f32 to vector<64x128xf32>
    %c0_25 = arith.constant 0 : index
    %c0_26 = arith.constant 0 : index
    %c0_27 = arith.constant 0 : index
    %24 = vector.load %arg7[%c0_25, %c0_26, %c0_27] : memref<10x10x128xbf16, #tpu.memory_space<vmem>>, vector<8x8x128xbf16>
    %25 = vector.shape_cast %24 : vector<8x8x128xbf16> to vector<64x128xbf16>
    %c0_28 = arith.constant 0 : index
    %c0_29 = arith.constant 0 : index
    %c0_30 = arith.constant 0 : index
    %26 = vector.load %arg2[%c0_28, %c0_29, %c0_30] : memref<9x128x128xbf16, #tpu.memory_space<vmem>>, vector<1x128x128xbf16>
    %27 = vector.shape_cast %26 : vector<1x128x128xbf16> to vector<128x128xbf16>
    %cst_31 = arith.constant dense<0.000000e+00> : vector<64x128xf32>
    %28 = tpu.matmul %25, %27, %cst_31 {dimension_numbers = #tpu.dot_dimension_numbers<[1], [0], [0], [1], [0, 0, 1, 1], [], []>} : vector<64x128xbf16>, vector<128x128xbf16>, vector<64x128xf32> -> vector<64x128xf32>
    %29 = arith.addf %23, %28 : vector<64x128xf32>
    %c0_32 = arith.constant 0 : index
    %c1_33 = arith.constant 1 : index
    %c0_34 = arith.constant 0 : index
    %30 = vector.load %arg7[%c0_32, %c1_33, %c0_34] : memref<10x10x128xbf16, #tpu.memory_space<vmem>>, vector<8x8x128xbf16>
    %31 = vector.shape_cast %30 : vector<8x8x128xbf16> to vector<64x128xbf16>
    %c1_35 = arith.constant 1 : index
    %c0_36 = arith.constant 0 : index
    %c0_37 = arith.constant 0 : index
    %32 = vector.load %arg2[%c1_35, %c0_36, %c0_37] : memref<9x128x128xbf16, #tpu.memory_space<vmem>>, vector<1x128x128xbf16>
    %33 = vector.shape_cast %32 : vector<1x128x128xbf16> to vector<128x128xbf16>
    %cst_38 = arith.constant dense<0.000000e+00> : vector<64x128xf32>
    %34 = tpu.matmul %31, %33, %cst_38 {dimension_numbers = #tpu.dot_dimension_numbers<[1], [0], [0], [1], [0, 0, 1, 1], [], []>} : vector<64x128xbf16>, vector<128x128xbf16>, vector<64x128xf32> -> vector<64x128xf32>
    %35 = arith.addf %29, %34 : vector<64x128xf32>
    %c0_39 = arith.constant 0 : index
    %c2 = arith.constant 2 : index
    %c0_40 = arith.constant 0 : index
    %36 = vector.load %arg7[%c0_39, %c2, %c0_40] : memref<10x10x128xbf16, #tpu.memory_space<vmem>>, vector<8x8x128xbf16>
    %37 = vector.shape_cast %36 : vector<8x8x128xbf16> to vector<64x128xbf16>
    %c2_41 = arith.constant 2 : index
    %c0_42 = arith.constant 0 : index
    %c0_43 = arith.constant 0 : index
    %38 = vector.load %arg2[%c2_41, %c0_42, %c0_43] : memref<9x128x128xbf16, #tpu.memory_space<vmem>>, vector<1x128x128xbf16>
    %39 = vector.shape_cast %38 : vector<1x128x128xbf16> to vector<128x128xbf16>
    %cst_44 = arith.constant dense<0.000000e+00> : vector<64x128xf32>
    %40 = tpu.matmul %37, %39, %cst_44 {dimension_numbers = #tpu.dot_dimension_numbers<[1], [0], [0], [1], [0, 0, 1, 1], [], []>} : vector<64x128xbf16>, vector<128x128xbf16>, vector<64x128xf32> -> vector<64x128xf32>
    %41 = arith.addf %35, %40 : vector<64x128xf32>
    %c1_45 = arith.constant 1 : index
    %c0_46 = arith.constant 0 : index
    %c0_47 = arith.constant 0 : index
    %42 = vector.load %arg7[%c1_45, %c0_46, %c0_47] : memref<10x10x128xbf16, #tpu.memory_space<vmem>>, vector<8x8x128xbf16>
    %43 = vector.shape_cast %42 : vector<8x8x128xbf16> to vector<64x128xbf16>
    %c3 = arith.constant 3 : index
    %c0_48 = arith.constant 0 : index
    %c0_49 = arith.constant 0 : index
    %44 = vector.load %arg2[%c3, %c0_48, %c0_49] : memref<9x128x128xbf16, #tpu.memory_space<vmem>>, vector<1x128x128xbf16>
    %45 = vector.shape_cast %44 : vector<1x128x128xbf16> to vector<128x128xbf16>
    %cst_50 = arith.constant dense<0.000000e+00> : vector<64x128xf32>
    %46 = tpu.matmul %43, %45, %cst_50 {dimension_numbers = #tpu.dot_dimension_numbers<[1], [0], [0], [1], [0, 0, 1, 1], [], []>} : vector<64x128xbf16>, vector<128x128xbf16>, vector<64x128xf32> -> vector<64x128xf32>
    %47 = arith.addf %41, %46 : vector<64x128xf32>
    %c1_51 = arith.constant 1 : index
    %c1_52 = arith.constant 1 : index
    %c0_53 = arith.constant 0 : index
    %48 = vector.load %arg7[%c1_51, %c1_52, %c0_53] : memref<10x10x128xbf16, #tpu.memory_space<vmem>>, vector<8x8x128xbf16>
    %49 = vector.shape_cast %48 : vector<8x8x128xbf16> to vector<64x128xbf16>
    %c4 = arith.constant 4 : index
    %c0_54 = arith.constant 0 : index
    %c0_55 = arith.constant 0 : index
    %50 = vector.load %arg2[%c4, %c0_54, %c0_55] : memref<9x128x128xbf16, #tpu.memory_space<vmem>>, vector<1x128x128xbf16>
    %51 = vector.shape_cast %50 : vector<1x128x128xbf16> to vector<128x128xbf16>
    %cst_56 = arith.constant dense<0.000000e+00> : vector<64x128xf32>
    %52 = tpu.matmul %49, %51, %cst_56 {dimension_numbers = #tpu.dot_dimension_numbers<[1], [0], [0], [1], [0, 0, 1, 1], [], []>} : vector<64x128xbf16>, vector<128x128xbf16>, vector<64x128xf32> -> vector<64x128xf32>
    %53 = arith.addf %47, %52 : vector<64x128xf32>
    %c1_57 = arith.constant 1 : index
    %c2_58 = arith.constant 2 : index
    %c0_59 = arith.constant 0 : index
    %54 = vector.load %arg7[%c1_57, %c2_58, %c0_59] : memref<10x10x128xbf16, #tpu.memory_space<vmem>>, vector<8x8x128xbf16>
    %55 = vector.shape_cast %54 : vector<8x8x128xbf16> to vector<64x128xbf16>
    %c5 = arith.constant 5 : index
    %c0_60 = arith.constant 0 : index
    %c0_61 = arith.constant 0 : index
    %56 = vector.load %arg2[%c5, %c0_60, %c0_61] : memref<9x128x128xbf16, #tpu.memory_space<vmem>>, vector<1x128x128xbf16>
    %57 = vector.shape_cast %56 : vector<1x128x128xbf16> to vector<128x128xbf16>
    %cst_62 = arith.constant dense<0.000000e+00> : vector<64x128xf32>
    %58 = tpu.matmul %55, %57, %cst_62 {dimension_numbers = #tpu.dot_dimension_numbers<[1], [0], [0], [1], [0, 0, 1, 1], [], []>} : vector<64x128xbf16>, vector<128x128xbf16>, vector<64x128xf32> -> vector<64x128xf32>
    %59 = arith.addf %53, %58 : vector<64x128xf32>
    %c2_63 = arith.constant 2 : index
    %c0_64 = arith.constant 0 : index
    %c0_65 = arith.constant 0 : index
    %60 = vector.load %arg7[%c2_63, %c0_64, %c0_65] : memref<10x10x128xbf16, #tpu.memory_space<vmem>>, vector<8x8x128xbf16>
    %61 = vector.shape_cast %60 : vector<8x8x128xbf16> to vector<64x128xbf16>
    %c6 = arith.constant 6 : index
    %c0_66 = arith.constant 0 : index
    %c0_67 = arith.constant 0 : index
    %62 = vector.load %arg2[%c6, %c0_66, %c0_67] : memref<9x128x128xbf16, #tpu.memory_space<vmem>>, vector<1x128x128xbf16>
    %63 = vector.shape_cast %62 : vector<1x128x128xbf16> to vector<128x128xbf16>
    %cst_68 = arith.constant dense<0.000000e+00> : vector<64x128xf32>
    %64 = tpu.matmul %61, %63, %cst_68 {dimension_numbers = #tpu.dot_dimension_numbers<[1], [0], [0], [1], [0, 0, 1, 1], [], []>} : vector<64x128xbf16>, vector<128x128xbf16>, vector<64x128xf32> -> vector<64x128xf32>
    %65 = arith.addf %59, %64 : vector<64x128xf32>
    %c2_69 = arith.constant 2 : index
    %c1_70 = arith.constant 1 : index
    %c0_71 = arith.constant 0 : index
    %66 = vector.load %arg7[%c2_69, %c1_70, %c0_71] : memref<10x10x128xbf16, #tpu.memory_space<vmem>>, vector<8x8x128xbf16>
    %67 = vector.shape_cast %66 : vector<8x8x128xbf16> to vector<64x128xbf16>
    %c7 = arith.constant 7 : index
    %c0_72 = arith.constant 0 : index
    %c0_73 = arith.constant 0 : index
    %68 = vector.load %arg2[%c7, %c0_72, %c0_73] : memref<9x128x128xbf16, #tpu.memory_space<vmem>>, vector<1x128x128xbf16>
    %69 = vector.shape_cast %68 : vector<1x128x128xbf16> to vector<128x128xbf16>
    %cst_74 = arith.constant dense<0.000000e+00> : vector<64x128xf32>
    %70 = tpu.matmul %67, %69, %cst_74 {dimension_numbers = #tpu.dot_dimension_numbers<[1], [0], [0], [1], [0, 0, 1, 1], [], []>} : vector<64x128xbf16>, vector<128x128xbf16>, vector<64x128xf32> -> vector<64x128xf32>
    %71 = arith.addf %65, %70 : vector<64x128xf32>
    %c2_75 = arith.constant 2 : index
    %c2_76 = arith.constant 2 : index
    %c0_77 = arith.constant 0 : index
    %72 = vector.load %arg7[%c2_75, %c2_76, %c0_77] : memref<10x10x128xbf16, #tpu.memory_space<vmem>>, vector<8x8x128xbf16>
    %73 = vector.shape_cast %72 : vector<8x8x128xbf16> to vector<64x128xbf16>
    %c8 = arith.constant 8 : index
    %c0_78 = arith.constant 0 : index
    %c0_79 = arith.constant 0 : index
    %74 = vector.load %arg2[%c8, %c0_78, %c0_79] : memref<9x128x128xbf16, #tpu.memory_space<vmem>>, vector<1x128x128xbf16>
    %75 = vector.shape_cast %74 : vector<1x128x128xbf16> to vector<128x128xbf16>
    %cst_80 = arith.constant dense<0.000000e+00> : vector<64x128xf32>
    %76 = tpu.matmul %73, %75, %cst_80 {dimension_numbers = #tpu.dot_dimension_numbers<[1], [0], [0], [1], [0, 0, 1, 1], [], []>} : vector<64x128xbf16>, vector<128x128xbf16>, vector<64x128xf32> -> vector<64x128xf32>
    %77 = arith.addf %71, %76 : vector<64x128xf32>
    %78 = arith.truncf %77 : vector<64x128xf32> to vector<64x128xbf16>
    %79 = vector.shape_cast %78 : vector<64x128xbf16> to vector<1x8x8x128xbf16>
    %c0_81 = arith.constant 0 : index
    %c0_82 = arith.constant 0 : index
    %c0_83 = arith.constant 0 : index
    %c0_84 = arith.constant 0 : index
    %80 = vector.load %arg5[%c0_81, %c0_82, %c0_83, %c0_84] : memref<1x8x8x128xbf16, #tpu.memory_space<vmem>>, vector<1x8x8x128xbf16>
    tpu.vector_store %arg5[%c0_81, %c0_82, %c0_83, %c0_84], %79 {strides = array<i32>} : memref<1x8x8x128xbf16, #tpu.memory_space<vmem>>, vector<1x8x8x128xbf16>,
    %cst_85 = arith.constant 1.000000e+00 : f32
    %81 = vector.broadcast %cst_85 : f32 to vector<1x64xf32>
    %cst_86 = arith.constant dense<0.000000e+00> : vector<1x128xf32>
    %82 = tpu.matmul %81, %77, %cst_86 {dimension_numbers = #tpu.dot_dimension_numbers<[1], [0], [0], [1], [0, 0, 1, 1], [], []>} : vector<1x64xf32>, vector<64x128xf32>, vector<1x128xf32> -> vector<1x128xf32>
    %c0_87 = arith.constant 0 : index
    %c0_88 = arith.constant 0 : index
    %c0_89 = arith.constant 0 : index
    %83 = vector.load %arg6[%c0_87, %c0_88, %c0_89] : memref<1x2x128xf32, #tpu.memory_space<vmem>>, vector<1x1x128xf32>
    %84 = vector.shape_cast %83 : vector<1x1x128xf32> to vector<1x128xf32>
    %85 = vector.shape_cast %82 : vector<1x128xf32> to vector<1x1x128xf32>
    tpu.vector_store %arg6[%c0_87, %c0_88, %c0_89], %85 {strides = array<i32>} : memref<1x2x128xf32, #tpu.memory_space<vmem>>, vector<1x1x128xf32>,
    %86 = arith.mulf %77, %77 : vector<64x128xf32>
    %cst_90 = arith.constant dense<0.000000e+00> : vector<1x128xf32>
    %87 = tpu.matmul %81, %86, %cst_90 {dimension_numbers = #tpu.dot_dimension_numbers<[1], [0], [0], [1], [0, 0, 1, 1], [], []>} : vector<1x64xf32>, vector<64x128xf32>, vector<1x128xf32> -> vector<1x128xf32>
    %c0_91 = arith.constant 0 : index
    %c1_92 = arith.constant 1 : index
    %c0_93 = arith.constant 0 : index
    %88 = vector.load %arg6[%c0_91, %c1_92, %c0_93] : memref<1x2x128xf32, #tpu.memory_space<vmem>>, vector<1x1x128xf32>
    %89 = vector.shape_cast %88 : vector<1x1x128xf32> to vector<1x128xf32>
    %90 = vector.shape_cast %87 : vector<1x128xf32> to vector<1x1x128xf32>
    tpu.vector_store %arg6[%c0_91, %c1_92, %c0_93], %90 {strides = array<i32>} : memref<1x2x128xf32, #tpu.memory_space<vmem>>, vector<1x1x128xf32>,
    return
  }
  func.func @transform_0(%arg0: i32) -> (i32, i32, i32, i32) {
    %c0_i32 = arith.constant 0 : i32
    %c0_i32_0 = arith.constant 0 : i32
    %c0_i32_1 = arith.constant 0 : i32
    %c0_i32_2 = arith.constant 0 : i32
    return %arg0, %c0_i32, %c0_i32_0, %c0_i32_1 : i32, i32, i32, i32
  }
  func.func @transform_1(%arg0: i32) -> (i32, i32, i32) {
    %c0_i32 = arith.constant 0 : i32
    %c0_i32_0 = arith.constant 0 : i32
    %c0_i32_1 = arith.constant 0 : i32
    %c0_i32_2 = arith.constant 0 : i32
    return %c0_i32, %c0_i32_0, %c0_i32_1 : i32, i32, i32
  }
  func.func @transform_2(%arg0: i32) -> (i32, i32) {
    %c0_i32 = arith.constant 0 : i32
    %c0_i32_0 = arith.constant 0 : i32
    %c0_i32_1 = arith.constant 0 : i32
    return %c0_i32, %c0_i32_0 : i32, i32
  }
  func.func @transform_3(%arg0: i32) -> (i32, i32) {
    %c0_i32 = arith.constant 0 : i32
    %c0_i32_0 = arith.constant 0 : i32
    %c0_i32_1 = arith.constant 0 : i32
    return %c0_i32, %c0_i32_0 : i32, i32
  }
  func.func @transform_4(%arg0: i32) -> (i32, i32, i32, i32) {
    %c0_i32 = arith.constant 0 : i32
    %c0_i32_0 = arith.constant 0 : i32
    %c0_i32_1 = arith.constant 0 : i32
    %c0_i32_2 = arith.constant 0 : i32
    return %arg0, %c0_i32, %c0_i32_0, %c0_i32_1 : i32, i32, i32, i32
  }
  func.func @transform_5(%arg0: i32) -> (i32, i32, i32) {
    %c0_i32 = arith.constant 0 : i32
    %c0_i32_0 = arith.constant 0 : i32
    %c0_i32_1 = arith.constant 0 : i32
    return %arg0, %c0_i32, %c0_i32_0 : i32, i32, i32
  }
}

module attributes {stable_mosaic.version = 11 : i64} {
  func.func @_bn_residual_kernel(%arg0: i32, %arg1: memref<128x128xbf16, #tpu.memory_space<vmem>>, %arg2: memref<128x128xbf16, #tpu.memory_space<vmem>>, %arg3: memref<1x128xf32, #tpu.memory_space<vmem>>, %arg4: memref<1x128xf32, #tpu.memory_space<vmem>>, %arg5: memref<1x128xf32, #tpu.memory_space<vmem>>, %arg6: memref<1x128xf32, #tpu.memory_space<vmem>>, %arg7: memref<128x128xf32, #tpu.memory_space<vmem>>) attributes {dimension_semantics = [#tpu.dimension_semantics<parallel>], iteration_bounds = array<i64: 1>, scalar_prefetch = 0 : i64, scratch_operands = 0 : i64, tpu.core_type = #tpu.core_type<tc>, window_params = [{transform_indices = @transform_0, window_bounds = array<i64: 128, 128>}, {transform_indices = @transform_1, window_bounds = array<i64: 128, 128>}, {pipeline_mode = #tpu.pipeline_mode<synchronous>, transform_indices = @transform_2, window_bounds = array<i64: 1, 128>}, {pipeline_mode = #tpu.pipeline_mode<synchronous>, transform_indices = @transform_3, window_bounds = array<i64: 1, 128>}, {pipeline_mode = #tpu.pipeline_mode<synchronous>, transform_indices = @transform_4, window_bounds = array<i64: 1, 128>}, {pipeline_mode = #tpu.pipeline_mode<synchronous>, transform_indices = @transform_5, window_bounds = array<i64: 1, 128>}, {transform_indices = @transform_6, window_bounds = array<i64: 128, 128>}]} {
    %c0 = arith.constant 0 : index
    %c0_0 = arith.constant 0 : index
    %0 = vector.load %arg1[%c0, %c0_0] : memref<128x128xbf16, #tpu.memory_space<vmem>>, vector<128x128xbf16>
    %1 = arith.extf %0 : vector<128x128xbf16> to vector<128x128xf32>
    %c0_1 = arith.constant 0 : index
    %c0_2 = arith.constant 0 : index
    %2 = vector.load %arg2[%c0_1, %c0_2] : memref<128x128xbf16, #tpu.memory_space<vmem>>, vector<128x128xbf16>
    %3 = arith.extf %2 : vector<128x128xbf16> to vector<128x128xf32>
    %c0_3 = arith.constant 0 : index
    %c0_4 = arith.constant 0 : index
    %4 = vector.load %arg3[%c0_3, %c0_4] : memref<1x128xf32, #tpu.memory_space<vmem>>, vector<1x128xf32>
    %5 = vector.broadcast %4 : vector<1x128xf32> to vector<128x128xf32>
    %6 = arith.mulf %1, %5 : vector<128x128xf32>
    %c0_5 = arith.constant 0 : index
    %c0_6 = arith.constant 0 : index
    %7 = vector.load %arg4[%c0_5, %c0_6] : memref<1x128xf32, #tpu.memory_space<vmem>>, vector<1x128xf32>
    %8 = vector.broadcast %7 : vector<1x128xf32> to vector<128x128xf32>
    %9 = arith.addf %6, %8 : vector<128x128xf32>
    %c0_7 = arith.constant 0 : index
    %c0_8 = arith.constant 0 : index
    %10 = vector.load %arg5[%c0_7, %c0_8] : memref<1x128xf32, #tpu.memory_space<vmem>>, vector<1x128xf32>
    %11 = vector.broadcast %10 : vector<1x128xf32> to vector<128x128xf32>
    %12 = arith.mulf %3, %11 : vector<128x128xf32>
    %13 = arith.addf %9, %12 : vector<128x128xf32>
    %c0_9 = arith.constant 0 : index
    %c0_10 = arith.constant 0 : index
    %14 = vector.load %arg6[%c0_9, %c0_10] : memref<1x128xf32, #tpu.memory_space<vmem>>, vector<1x128xf32>
    %15 = vector.broadcast %14 : vector<1x128xf32> to vector<128x128xf32>
    %16 = arith.addf %13, %15 : vector<128x128xf32>
    %cst = arith.constant 0.000000e+00 : f32
    %17 = vector.broadcast %cst : f32 to vector<128x128xf32>
    %18 = arith.maximumf %16, %17 : vector<128x128xf32>
    %c0_11 = arith.constant 0 : index
    %c0_12 = arith.constant 0 : index
    %19 = vector.load %arg7[%c0_11, %c0_12] : memref<128x128xf32, #tpu.memory_space<vmem>>, vector<128x128xf32>
    tpu.vector_store %arg7[%c0_11, %c0_12], %18 {strides = array<i32>} : memref<128x128xf32, #tpu.memory_space<vmem>>, vector<128x128xf32>,
    return
  }
  func.func @transform_0(%arg0: i32) -> (i32, i32) {
    %c0_i32 = arith.constant 0 : i32
    %c0_i32_0 = arith.constant 0 : i32
    return %arg0, %c0_i32 : i32, i32
  }
  func.func @transform_1(%arg0: i32) -> (i32, i32) {
    %c0_i32 = arith.constant 0 : i32
    %c0_i32_0 = arith.constant 0 : i32
    return %arg0, %c0_i32 : i32, i32
  }
  func.func @transform_2(%arg0: i32) -> (i32, i32) {
    %c0_i32 = arith.constant 0 : i32
    %c0_i32_0 = arith.constant 0 : i32
    %c0_i32_1 = arith.constant 0 : i32
    return %c0_i32, %c0_i32_0 : i32, i32
  }
  func.func @transform_3(%arg0: i32) -> (i32, i32) {
    %c0_i32 = arith.constant 0 : i32
    %c0_i32_0 = arith.constant 0 : i32
    %c0_i32_1 = arith.constant 0 : i32
    return %c0_i32, %c0_i32_0 : i32, i32
  }
  func.func @transform_4(%arg0: i32) -> (i32, i32) {
    %c0_i32 = arith.constant 0 : i32
    %c0_i32_0 = arith.constant 0 : i32
    %c0_i32_1 = arith.constant 0 : i32
    return %c0_i32, %c0_i32_0 : i32, i32
  }
  func.func @transform_5(%arg0: i32) -> (i32, i32) {
    %c0_i32 = arith.constant 0 : i32
    %c0_i32_0 = arith.constant 0 : i32
    %c0_i32_1 = arith.constant 0 : i32
    return %c0_i32, %c0_i32_0 : i32, i32
  }
  func.func @transform_6(%arg0: i32) -> (i32, i32) {
    %c0_i32 = arith.constant 0 : i32
    %c0_i32_0 = arith.constant 0 : i32
    return %arg0, %c0_i32 : i32, i32
  }
}

</mosaic_0001>

<llo_original>
// kernel: residual8_forward.5
$region0: #{residual8_forward.5}
  #allocation0 [shape = 'u32[]', space=smem, size = 0x4, offset = 0x4, fixed_abs, tag = 'smem constant byte address 0x4 - core index']
  #allocation1 [shape = 'u32[144,128]{1,0:T(1,128)}', space=vmem, size = 0x12000, scoped, tag = 'internal scratch']
  %s0 = inlined_call_operand.vmem [shape: bf16[128,128], index: 0, kind: input, shape index: {}]
  %s1 = inlined_call_operand.vmem [shape: bf16[128,128], index: 1, kind: input, shape index: {}]
  %s2 = inlined_call_operand.vmem [shape: f32[1,128], index: 2, kind: input, shape index: {}]
  %s3 = inlined_call_operand.vmem [shape: f32[1,128], index: 3, kind: input, shape index: {}]
  %s4 = inlined_call_operand.vmem [shape: f32[1,128], index: 4, kind: input, shape index: {}]
  %s5 = inlined_call_operand.vmem [shape: f32[1,128], index: 5, kind: input, shape index: {}]
  %s6 = inlined_call_operand.vmem [shape: f32[128,128], index: 6, kind: output, shape index: {}]
  %s7 = sld [smem:[#allocation0]]
  $region34: #{residual8_forward.5} parent=0
    _
  %s9 = ssub.s32 1, %s7
  %s10 = scalar_select 0, %s9, %s7
  // Predicated region
  $region2: #{residual8_forward.5} parent=0 // pred_check
    _
  $region3: #{residual8_forward.5} parent=0 // pred_check_branch
    %12 = sbr.rel (0) target = $region5
  $region4: #{residual8_forward.5} parent=0 // pred_region
    _
  $region5: #{residual8_forward.5} parent=0 // pred_fallthru
    _
  // Predicated region
  $region6: #{residual8_forward.5} parent=0 // pred_check
    _
  $region7: #{residual8_forward.5} parent=0 // pred_check_branch
    %14 = sbr.rel (0) target = $region9
  $region8: #{residual8_forward.5} parent=0 // pred_region
    _
  $region9: #{residual8_forward.5} parent=0 // pred_fallthru
    _
  // Predicated region
  $region10: #{residual8_forward.5} parent=0 // pred_check
    _
  $region11: #{residual8_forward.5} parent=0 // pred_check_branch
    %16 = sbr.rel (0) target = $region13
  $region12: #{residual8_forward.5} parent=0 // pred_region
    _
  $region13: #{residual8_forward.5} parent=0 // pred_fallthru
    _
  // Predicated region
  $region14: #{residual8_forward.5} parent=0 // pred_check
    _
  $region15: #{residual8_forward.5} parent=0 // pred_check_branch
    %18 = sbr.rel (0) target = $region17
  $region16: #{residual8_forward.5} parent=0 // pred_region
    _
  $region17: #{residual8_forward.5} parent=0 // pred_fallthru
    _
  // Predicated region
  $region18: #{residual8_forward.5} parent=0 // pred_check
    _
  $region19: #{residual8_forward.5} parent=0 // pred_check_branch
    %20 = sbr.rel (0) target = $region21
  $region20: #{residual8_forward.5} parent=0 // pred_region
    _
  $region21: #{residual8_forward.5} parent=0 // pred_fallthru
    _
  // Predicated region
  $region22: #{residual8_forward.5} parent=0 // pred_check
    _
  $region23: #{residual8_forward.5} parent=0 // pred_check_branch
    %22 = sbr.rel (0) target = $region25
  $region24: #{residual8_forward.5} parent=0 // pred_region
    _
  $region25: #{residual8_forward.5} parent=0 // pred_fallthru
    _
  %v23 = vld [vmem:[%s0] sm:$0xf]
  %v24 = vld [vmem:[%s0 + $0x4] sm:$0xf]
  %v25 = vld [vmem:[%s0 + $0x8] sm:$0xf]
  %v26 = vld [vmem:[%s0 + $0xc] sm:$0xf]
  %v27 = vld [vmem:[%s0 + $0x10] sm:$0xf]
  %v28 = vld [vmem:[%s0 + $0x14] sm:$0xf]
  %v29 = vld [vmem:[%s0 + $0x18] sm:$0xf]
  %v30 = vld [vmem:[%s0 + $0x1c] sm:$0xf]
  %v31 = vld [vmem:[%s0 + $0x20] sm:$0xf]
  %v32 = vld [vmem:[%s0 + $0x24] sm:$0xf]
  %v33 = vld [vmem:[%s0 + $0x28] sm:$0xf]
  %v34 = vld [vmem:[%s0 + $0x2c] sm:$0xf]
  %v35 = vld [vmem:[%s0 + $0x30] sm:$0xf]
  %v36 = vld [vmem:[%s0 + $0x34] sm:$0xf]
  %v37 = vld [vmem:[%s0 + $0x38] sm:$0xf]
  %v38 = vld [vmem:[%s0 + $0x3c] sm:$0xf]
  %v39 = vunpack.c.l.bf16 %v23
  %v40 = vunpack.c.l.bf16 %v24
  %v41 = vunpack.c.l.bf16 %v25
  %v42 = vunpack.c.l.bf16 %v26
  %v43 = vunpack.c.l.bf16 %v27
  %v44 = vunpack.c.l.bf16 %v28
  %v45 = vunpack.c.l.bf16 %v29
  %v46 = vunpack.c.l.bf16 %v30
  %v47 = vunpack.c.l.bf16 %v31
  %v48 = vunpack.c.l.bf16 %v32
  %v49 = vunpack.c.l.bf16 %v33
  %v50 = vunpack.c.l.bf16 %v34
  %v51 = vunpack.c.l.bf16 %v35
  %v52 = vunpack.c.l.bf16 %v36
  %v53 = vunpack.c.l.bf16 %v37
  %v54 = vunpack.c.l.bf16 %v38
  %v55 = vld [vmem:[%s1] sm:$0xf]
  %v56 = vld [vmem:[%s1 + $0x4] sm:$0xf]
  %v57 = vld [vmem:[%s1 + $0x8] sm:$0xf]
  %v58 = vld [vmem:[%s1 + $0xc] sm:$0xf]
  %v59 = vld [vmem:[%s1 + $0x10] sm:$0xf]
  %v60 = vld [vmem:[%s1 + $0x14] sm:$0xf]
  %v61 = vld [vmem:[%s1 + $0x18] sm:$0xf]
  %v62 = vld [vmem:[%s1 + $0x1c] sm:$0xf]
  %v63 = vld [vmem:[%s1 + $0x20] sm:$0xf]
  %v64 = vld [vmem:[%s1 + $0x24] sm:$0xf]
  %v65 = vld [vmem:[%s1 + $0x28] sm:$0xf]
  %v66 = vld [vmem:[%s1 + $0x2c] sm:$0xf]
  %v67 = vld [vmem:[%s1 + $0x30] sm:$0xf]
  %v68 = vld [vmem:[%s1 + $0x34] sm:$0xf]
  %v69 = vld [vmem:[%s1 + $0x38] sm:$0xf]
  %v70 = vld [vmem:[%s1 + $0x3c] sm:$0xf]
  %v71 = vunpack.c.l.bf16 %v55
  %v72 = vunpack.c.l.bf16 %v56
  %v73 = vunpack.c.l.bf16 %v57
  %v74 = vunpack.c.l.bf16 %v58
  %v75 = vunpack.c.l.bf16 %v59
  %v76 = vunpack.c.l.bf16 %v60
  %v77 = vunpack.c.l.bf16 %v61
  %v78 = vunpack.c.l.bf16 %v62
  %v79 = vunpack.c.l.bf16 %v63
  %v80 = vunpack.c.l.bf16 %v64
  %v81 = vunpack.c.l.bf16 %v65
  %v82 = vunpack.c.l.bf16 %v66
  %v83 = vunpack.c.l.bf16 %v67
  %v84 = vunpack.c.l.bf16 %v68
  %v85 = vunpack.c.l.bf16 %v69
  %v86 = vunpack.c.l.bf16 %v70
  %v87 = vld [vmem:[%s2] sm:$0x1]
  %v89 = vlaneseq
  %v90 = vshrl.u32 %v89, 7
  %v91 = vsub.s32 0, %v90
  %v92 = vrot.slane %v87, %v91
  %v94 = vmul.f32 %v39, %v92
  %v95 = vmul.f32 %v40, %v92
  %v96 = vmul.f32 %v41, %v92
  %v97 = vmul.f32 %v42, %v92
  %v98 = vmul.f32 %v43, %v92
  %v99 = vmul.f32 %v44, %v92
  %v100 = vmul.f32 %v45, %v92
  %v101 = vmul.f32 %v46, %v92
  %v102 = vmul.f32 %v47, %v92
  %v103 = vmul.f32 %v48, %v92
  %v104 = vmul.f32 %v49, %v92
  %v105 = vmul.f32 %v50, %v92
  %v106 = vmul.f32 %v51, %v92
  %v107 = vmul.f32 %v52, %v92
  %v108 = vmul.f32 %v53, %v92
  %v109 = vmul.f32 %v54, %v92
  %v110 = vld [vmem:[%s3] sm:$0x1]
  %v112 = vlaneseq
  %v113 = vshrl.u32 %v112, 7
  %v114 = vsub.s32 0, %v113
  %v115 = vrot.slane %v110, %v114
  %v117 = vadd.f32 %v94, %v115
  %v118 = vadd.f32 %v95, %v115
  %v119 = vadd.f32 %v96, %v115
  %v120 = vadd.f32 %v97, %v115
  %v121 = vadd.f32 %v98, %v115
  %v122 = vadd.f32 %v99, %v115
  %v123 = vadd.f32 %v100, %v115
  %v124 = vadd.f32 %v101, %v115
  %v125 = vadd.f32 %v102, %v115
  %v126 = vadd.f32 %v103, %v115
  %v127 = vadd.f32 %v104, %v115
  %v128 = vadd.f32 %v105, %v115
  %v129 = vadd.f32 %v106, %v115
  %v130 = vadd.f32 %v107, %v115
  %v131 = vadd.f32 %v108, %v115
  %v132 = vadd.f32 %v109, %v115
  %v133 = vld [vmem:[%s4] sm:$0x1]
  %v135 = vlaneseq
  %v136 = vshrl.u32 %v135, 7
  %v137 = vsub.s32 0, %v136
  %v138 = vrot.slane %v133, %v137
  %v140 = vmul.f32 %v71, %v138
  %v141 = vmul.f32 %v72, %v138
  %v142 = vmul.f32 %v73, %v138
  %v143 = vmul.f32 %v74, %v138
  %v144 = vmul.f32 %v75, %v138
  %v145 = vmul.f32 %v76, %v138
  %v146 = vmul.f32 %v77, %v138
  %v147 = vmul.f32 %v78, %v138
  %v148 = vmul.f32 %v79, %v138
  %v149 = vmul.f32 %v80, %v138
  %v150 = vmul.f32 %v81, %v138
  %v151 = vmul.f32 %v82, %v138
  %v152 = vmul.f32 %v83, %v138
  %v153 = vmul.f32 %v84, %v138
  %v154 = vmul.f32 %v85, %v138
  %v155 = vmul.f32 %v86, %v138
  %v156 = vadd.f32 %v117, %v140
  %v157 = vadd.f32 %v118, %v141
  %v158 = vadd.f32 %v119, %v142
  %v159 = vadd.f32 %v120, %v143
  %v160 = vadd.f32 %v121, %v144
  %v161 = vadd.f32 %v122, %v145
  %v162 = vadd.f32 %v123, %v146
  %v163 = vadd.f32 %v124, %v147
  %v164 = vadd.f32 %v125, %v148
  %v165 = vadd.f32 %v126, %v149
  %v166 = vadd.f32 %v127, %v150
  %v167 = vadd.f32 %v128, %v151
  %v168 = vadd.f32 %v129, %v152
  %v169 = vadd.f32 %v130, %v153
  %v170 = vadd.f32 %v131, %v154
  %v171 = vadd.f32 %v132, %v155
  %v172 = vld [vmem:[%s5] sm:$0x1]
  %v174 = vlaneseq
  %v175 = vshrl.u32 %v174, 7
  %v176 = vsub.s32 0, %v175
  %v177 = vrot.slane %v172, %v176
  %v179 = vadd.f32 %v156, %v177
  %v180 = vadd.f32 %v157, %v177
  %v181 = vadd.f32 %v158, %v177
  %v182 = vadd.f32 %v159, %v177
  %v183 = vadd.f32 %v160, %v177
  %v184 = vadd.f32 %v161, %v177
  %v185 = vadd.f32 %v162, %v177
  %v186 = vadd.f32 %v163, %v177
  %v187 = vadd.f32 %v164, %v177
  %v188 = vadd.f32 %v165, %v177
  %v189 = vadd.f32 %v166, %v177
  %v190 = vadd.f32 %v167, %v177
  %v191 = vadd.f32 %v168, %v177
  %v192 = vadd.f32 %v169, %v177
  %v193 = vadd.f32 %v170, %v177
  %v194 = vadd.f32 %v171, %v177
  %v195 = vmax.f32 %v179, 0.0
  %v196 = vmax.f32 %v180, 0.0
  %v197 = vmax.f32 %v181, 0.0
  %v198 = vmax.f32 %v182, 0.0
  %v199 = vmax.f32 %v183, 0.0
  %v200 = vmax.f32 %v184, 0.0
  %v201 = vmax.f32 %v185, 0.0
  %v202 = vmax.f32 %v186, 0.0
  %v203 = vmax.f32 %v187, 0.0
  %v204 = vmax.f32 %v188, 0.0
  %v205 = vmax.f32 %v189, 0.0
  %v206 = vmax.f32 %v190, 0.0
  %v207 = vmax.f32 %v191, 0.0
  %v208 = vmax.f32 %v192, 0.0
  %v209 = vmax.f32 %v193, 0.0
  %v210 = vmax.f32 %v194, 0.0
  %211 = vst [vmem:[%s6] sm:$0xff] %v195
  %212 = vst [vmem:[%s6 + $0x8] sm:$0xff] %v196
  %213 = vst [vmem:[%s6 + $0x10] sm:$0xff] %v197
  %214 = vst [vmem:[%s6 + $0x18] sm:$0xff] %v198
  %215 = vst [vmem:[%s6 + $0x20] sm:$0xff] %v199
  %216 = vst [vmem:[%s6 + $0x28] sm:$0xff] %v200
  %217 = vst [vmem:[%s6 + $0x30] sm:$0xff] %v201
  %218 = vst [vmem:[%s6 + $0x38] sm:$0xff] %v202
  %219 = vst [vmem:[%s6 + $0x40] sm:$0xff] %v203
  %220 = vst [vmem:[%s6 + $0x48] sm:$0xff] %v204
  %221 = vst [vmem:[%s6 + $0x50] sm:$0xff] %v205
  %222 = vst [vmem:[%s6 + $0x58] sm:$0xff] %v206
  %223 = vst [vmem:[%s6 + $0x60] sm:$0xff] %v207
  %224 = vst [vmem:[%s6 + $0x68] sm:$0xff] %v208
  %225 = vst [vmem:[%s6 + $0x70] sm:$0xff] %v209
  %226 = vst [vmem:[%s6 + $0x78] sm:$0xff] %v210
  // Predicated region
  $region26: #{residual8_forward.5} parent=0 // pred_check
    _
  $region27: #{residual8_forward.5} parent=0 // pred_check_branch
    %228 = sbr.rel (0) target = $region29
  $region28: #{residual8_forward.5} parent=0 // pred_region
    _
  $region29: #{residual8_forward.5} parent=0 // pred_fallthru
    _
  // Predicated region
  $region30: #{residual8_forward.5} parent=0 // pred_check
    _
  $region31: #{residual8_forward.5} parent=0 // pred_check_branch
    %230 = sbr.rel (0) target = $region33
  $region32: #{residual8_forward.5} parent=0 // pred_region
    _
  $region33: #{residual8_forward.5} parent=0 // pred_fallthru
    _

// kernel: residual8_forward.3
$region0: #{residual8_forward.3}
  #allocation0 [shape = 'u32[]', space=smem, size = 0x4, offset = 0x4, fixed_abs, tag = 'smem constant byte address 0x4 - core index']
  #allocation1 [shape = 'u32[144,128]{1,0:T(1,128)}', space=vmem, size = 0x12000, scoped, tag = 'internal scratch']
  %s0 = inlined_call_operand.vmem [shape: bf16[2,9,9,32], index: 0, kind: input, shape index: {}]
  %s1 = inlined_call_operand.vmem [shape: bf16[4,32,128], index: 1, kind: input, shape index: {}]
  %s2 = inlined_call_operand.vmem [shape: bf16[32,128], index: 2, kind: input, shape index: {}]
  %s3 = inlined_call_operand.vmem [shape: bf16[2,8,8,128], index: 3, kind: output, shape index: {0}]
  %s4 = inlined_call_operand.vmem [shape: bf16[2,8,8,128], index: 4, kind: output, shape index: {1}]
  %s5 = inlined_call_operand.vmem [shape: f32[2,4,128], index: 5, kind: output, shape index: {2}]
  %6 = xla_tuple %s3, %s4, %s5
  %s7 = sld [smem:[#allocation0]]
  $region61: #{residual8_forward.3} parent=0
    _
  %s9 = ssub.s32 1, %s7
  %s10 = scalar_select 0, %s9, %s7
  loop: start=0, step=1, limit=4
  $region2: #{residual8_forward.3} parent=0 // loop_pre_header
    _
  $region3: #{residual8_forward.3} parent=0 // loop_header
    %s12 = sphi 0, %s16
    %p13 = scmp.ge.s32.totalorder %s12, 4
    %s22 = sphi 0, %s24
    %s25 = sphi 0, %s22
    %s26 = sphi 0, %s25
    %s42 = sphi 0, %s26
    %s46 = sphi 0, %s46
    %s48 = sphi 0, %s46
    %s49 = sphi 0, %s48
    %s63 = sphi 0, %s49
    %s67 = sphi 0, %s67
    %s69 = sphi 0, %s67
    %s70 = sphi 0, %s69
    %s84 = sphi 0, %s70
    %s90 = sphi 0, %s92
    %s93 = sphi 0, %s90
    %s94 = sphi 0, %s93
    %s110 = sphi 0, %s94
    %s116 = sphi 0, %s118
    %s119 = sphi 0, %s116
    %s120 = sphi 0, %s119
    %s136 = sphi 0, %s120
    %s142 = sphi 0, %s144
    %s145 = sphi 0, %s142
    %s146 = sphi 0, %s145
    %s162 = sphi 0, %s146
  $region4: #{residual8_forward.3} parent=0 // loop_header_branch
    %15 = sbr.rel (%p13) target = $region8
  $region5: #{residual8_forward.3} parent=0 // loop_body
    %s17 = ssub.s32 %s12, 1
    %s18 = ssub.s32 %s12, 2
    %s19 = sadd.s32 %s12, 1
    %s20 = ssub.s32 %s12, %s19
    %p21 = scmp.eq.s32.totalorder %s20, 0
    %s23 = sadd.s32 %s22, 1
    %s24 = scalar_select %p21, %s22, %s23
    %p27 = pneg %p21
    %p28 = scmp.eq.s32.totalorder %s12, 1
    %p29 = por %p27, %p28
    %p30 = scmp.ne.s32.totalorder %s22, %s25
    %p31 = scmp.eq.s32.totalorder %s12, 0
    %p32 = por %p30, %p31
    %p33 = scmp.ne.s32.totalorder %s22, %s25
    %p34 = scmp.eq.s32.totalorder %s17, 1
    %p35 = por %p33, %p34
    %p36 = scmp.ne.s32.totalorder %s25, %s26
    %p37 = scmp.eq.s32.totalorder %s17, 0
    %p38 = por %p36, %p37
    %p39 = scmp.ne.s32.totalorder %s25, %s26
    %p40 = scmp.eq.s32.totalorder %s18, 1
    %p41 = por %p39, %p40
    %p43 = scmp.ne.s32.totalorder %s26, %s42
    %p44 = scmp.eq.s32.totalorder %s18, 0
    %p45 = por %p43, %p44
    %s47 = sadd.s32 %s46, 1
    %p50 = scmp.eq.s32.totalorder %s12, 1
    %p51 = scmp.ne.s32.totalorder %s46, %s48
    %p52 = scmp.eq.s32.totalorder %s12, 0
    %p53 = por %p51, %p52
    %p54 = scmp.ne.s32.totalorder %s46, %s48
    %p55 = scmp.eq.s32.totalorder %s17, 1
    %p56 = por %p54, %p55
    %p57 = scmp.ne.s32.totalorder %s48, %s49
    %p58 = scmp.eq.s32.totalorder %s17, 0
    %p59 = por %p57, %p58
    %p60 = scmp.ne.s32.totalorder %s48, %s49
    %p61 = scmp.eq.s32.totalorder %s18, 1
    %p62 = por %p60, %p61
    %p64 = scmp.ne.s32.totalorder %s49, %s63
    %p65 = scmp.eq.s32.totalorder %s18, 0
    %p66 = por %p64, %p65
    %s68 = sadd.s32 %s67, 1
    %p71 = scmp.eq.s32.totalorder %s12, 1
    %p72 = scmp.ne.s32.totalorder %s67, %s69
    %p73 = scmp.eq.s32.totalorder %s12, 0
    %p74 = por %p72, %p73
    %p75 = scmp.ne.s32.totalorder %s67, %s69
    %p76 = scmp.eq.s32.totalorder %s17, 1
    %p77 = por %p75, %p76
    %p78 = scmp.ne.s32.totalorder %s69, %s70
    %p79 = scmp.eq.s32.totalorder %s17, 0
    %p80 = por %p78, %p79
    %p81 = scmp.ne.s32.totalorder %s69, %s70
    %p82 = scmp.eq.s32.totalorder %s18, 1
    %p83 = por %p81, %p82
    %p85 = scmp.ne.s32.totalorder %s70, %s84
    %p86 = scmp.eq.s32.totalorder %s18, 0
    %p87 = por %p85, %p86
    %s88 = ssub.s32 %s12, %s19
    %p89 = scmp.eq.s32.totalorder %s88, 0
    %s91 = sadd.s32 %s90, 1
    %s92 = scalar_select %p89, %s90, %s91
    %p95 = pneg %p89
    %p96 = scmp.eq.s32.totalorder %s12, 1
    %p97 = por %p95, %p96
    %p98 = scmp.ne.s32.totalorder %s90, %s93
    %p99 = scmp.eq.s32.totalorder %s12, 0
    %p100 = por %p98, %p99
    %p101 = scmp.ne.s32.totalorder %s90, %s93
    %p102 = scmp.eq.s32.totalorder %s17, 1
    %p103 = por %p101, %p102
    %p104 = scmp.ne.s32.totalorder %s93, %s94
    %p105 = scmp.eq.s32.totalorder %s17, 0
    %p106 = por %p104, %p105
    %p107 = scmp.ne.s32.totalorder %s93, %s94
    %p108 = scmp.eq.s32.totalorder %s18, 1
    %p109 = por %p107, %p108
    %p111 = scmp.ne.s32.totalorder %s94, %s110
    %p112 = scmp.eq.s32.totalorder %s18, 0
    %p113 = por %p111, %p112
    %s114 = ssub.s32 %s12, %s19
    %p115 = scmp.eq.s32.totalorder %s114, 0
    %s117 = sadd.s32 %s116, 1
    %s118 = scalar_select %p115, %s116, %s117
    %p121 = pneg %p115
    %p122 = scmp.eq.s32.totalorder %s12, 1
    %p123 = por %p121, %p122
    %p124 = scmp.ne.s32.totalorder %s116, %s119
    %p125 = scmp.eq.s32.totalorder %s12, 0
    %p126 = por %p124, %p125
    %p127 = scmp.ne.s32.totalorder %s116, %s119
    %p128 = scmp.eq.s32.totalorder %s17, 1
    %p129 = por %p127, %p128
    %p130 = scmp.ne.s32.totalorder %s119, %s120
    %p131 = scmp.eq.s32.totalorder %s17, 0
    %p132 = por %p130, %p131
    %p133 = scmp.ne.s32.totalorder %s119, %s120
    %p134 = scmp.eq.s32.totalorder %s18, 1
    %p135 = por %p133, %p134
    %p137 = scmp.ne.s32.totalorder %s120, %s136
    %p138 = scmp.eq.s32.totalorder %s18, 0
    %p139 = por %p137, %p138
    %s140 = ssub.s32 %s12, %s19
    %p141 = scmp.eq.s32.totalorder %s140, 0
    %s143 = sadd.s32 %s142, 1
    %s144 = scalar_select %p141, %s142, %s143
    %p147 = pneg %p141
    %p148 = scmp.eq.s32.totalorder %s12, 1
    %p149 = por %p147, %p148
    %p150 = scmp.ne.s32.totalorder %s142, %s145
    %p151 = scmp.eq.s32.totalorder %s12, 0
    %p152 = por %p150, %p151
    %p153 = scmp.ne.s32.totalorder %s142, %s145
    %p154 = scmp.eq.s32.totalorder %s17, 1
    %p155 = por %p153, %p154
    %p156 = scmp.ne.s32.totalorder %s145, %s146
    %p157 = scmp.eq.s32.totalorder %s17, 0
    %p158 = por %p156, %p157
    %p159 = scmp.ne.s32.totalorder %s145, %s146
    %p160 = scmp.eq.s32.totalorder %s18, 1
    %p161 = por %p159, %p160
    %p163 = scmp.ne.s32.totalorder %s146, %s162
    %p164 = scmp.eq.s32.totalorder %s18, 0
    %p165 = por %p163, %p164
    %p166 = scmp.le.s32.totalorder 1, %s12
    %p167 = scmp.lt.s32.totalorder %s12, 3
    %p168 = pnand %p166, %p167
    %p169 = pneg %p168
    // Predicated region
    $region9: #{residual8_forward.3} parent=5 // pred_check
      _
    $region10: #{residual8_forward.3} parent=5 // pred_check_branch
      %171 = sbr.rel (%p168) target = $region12
    $region11: #{residual8_forward.3} parent=5 // pred_region
      %s172 = ssub.s32 %s12, 1
      // Predicated region
      $region13: #{residual8_forward.3} parent=11 // pred_check
        %p173 = pneg %p59
      $region14: #{residual8_forward.3} parent=11 // pred_check_branch
        %175 = sbr.rel (%p173) target = $region16
      $region15: #{residual8_forward.3} parent=11 // pred_region
        _
      $region16: #{residual8_forward.3} parent=11 // pred_fallthru
        _
      // Predicated region
      $region17: #{residual8_forward.3} parent=11 // pred_check
        %p176 = pneg %p80
      $region18: #{residual8_forward.3} parent=11 // pred_check_branch
        %178 = sbr.rel (%p176) target = $region20
      $region19: #{residual8_forward.3} parent=11 // pred_region
        _
      $region20: #{residual8_forward.3} parent=11 // pred_fallthru
        _
    $region12: #{residual8_forward.3} parent=5 // pred_fallthru
      _
    %p179 = scmp.lt.s32.totalorder %s12, 2
    // Predicated region
    $region21: #{residual8_forward.3} parent=5 // pred_check
      %p180 = pneg %p179
    $region22: #{residual8_forward.3} parent=5 // pred_check_branch
      %182 = sbr.rel (%p180) target = $region24
    $region23: #{residual8_forward.3} parent=5 // pred_region
      // Predicated region
      $region25: #{residual8_forward.3} parent=23 // pred_check
        %p183 = pneg %p32
      $region26: #{residual8_forward.3} parent=23 // pred_check_branch
        %185 = sbr.rel (%p183) target = $region28
      $region27: #{residual8_forward.3} parent=23 // pred_region
        %p186 = scmp.lt.s32.totalorder %s12, 1
        %s187 = scalar_select %p186, %s12, 1
        %s188 = smul.addr %s187, 18
        %s189 = smul.addr %s188, 4
        %s190 = scalar_lea.vmem %s0, %s189
      $region28: #{residual8_forward.3} parent=23 // pred_fallthru
        _
    $region24: #{residual8_forward.3} parent=5 // pred_fallthru
      _
    %p191 = scmp.le.s32.totalorder 1, %s12
    %p192 = scmp.lt.s32.totalorder %s12, 3
    %p193 = pnand %p191, %p192
    %p194 = pneg %p193
    // Predicated region
    $region29: #{residual8_forward.3} parent=5 // pred_check
      _
    $region30: #{residual8_forward.3} parent=5 // pred_check_branch
      %196 = sbr.rel (%p193) target = $region32
    $region31: #{residual8_forward.3} parent=5 // pred_region
      %s197 = ssub.s32 %s12, 1
      %p198 = scmp.lt.s32.totalorder %s17, 1
      %s199 = scalar_select %p198, %s17, 1
      %s200 = smul.addr %s199, 18
      %s201 = smul.addr %s200, 4
      %s202 = scalar_lea.vmem %s0, %s201
      %p203 = pneg %p38
      %p204 = pneg %p35
      %p205 = pneg %p59
      %p206 = pneg %p56
      %p207 = pneg %p80
      %p208 = pneg %p77
      %p209 = pneg %p106
      %p210 = pneg %p103
      %p211 = scmp.lt.s32.totalorder %s17, 1
      %s212 = scalar_select %p211, %s17, 1
      %s213 = smul.addr %s212, 8
      %s214 = smul.addr %s213, 4
      %s215 = scalar_lea.vmem %s3, %s214
      %p216 = pneg %p132
      %p217 = pneg %p129
      %p218 = scmp.lt.s32.totalorder %s17, 1
      %s219 = scalar_select %p218, %s17, 1
      %s220 = smul.addr %s219, 8
      %s221 = smul.addr %s220, 4
      %s222 = scalar_lea.vmem %s4, %s221
      %p223 = pneg %p158
      %p224 = pneg %p155
      %p225 = scmp.lt.s32.totalorder %s17, 1
      %s226 = scalar_select %p225, %s17, 1
      %s227 = smul.addr %s226, 4
      %s228 = scalar_lea.vmem %s5, %s227
      %p229 = scmp.lt.s32.totalorder %s17, 1
      %s230 = scalar_select %p229, %s17, 1
      %s231 = smul.addr %s230, 18
      %s232 = smul.addr %s231, 4
      %s233 = scalar_lea.vmem %s0, %s232
      %p234 = scmp.lt.s32.totalorder %s17, 1
      %s235 = scalar_select %p234, %s17, 1
      %s236 = smul.addr %s235, 8
      %s237 = smul.addr %s236, 4
      %s238 = scalar_lea.vmem %s3, %s237
      %p239 = scmp.lt.s32.totalorder %s17, 1
      %s240 = scalar_select %p239, %s17, 1
      %s241 = smul.addr %s240, 8
      %s242 = smul.addr %s241, 4
      %s243 = scalar_lea.vmem %s4, %s242
      %p244 = scmp.lt.s32.totalorder %s17, 1
      %s245 = scalar_select %p244, %s17, 1
      %s246 = smul.addr %s245, 4
      %s247 = scalar_lea.vmem %s5, %s246
      %v249 = vld [vmem:[%s233] sm:$0xf]
      %v250 = vld [vmem:[%s233 + $0x4] sm:$0x1]
      %v251 = vld [vmem:[%s233 + $0x8] sm:$0xf]
      %v252 = vld [vmem:[%s233 + $0xc] sm:$0x1]
      %v253 = vld [vmem:[%s233 + $0x10] sm:$0xf]
      %v254 = vld [vmem:[%s233 + $0x14] sm:$0x1]
      %v255 = vld [vmem:[%s233 + $0x18] sm:$0xf]
      %v256 = vld [vmem:[%s233 + $0x1c] sm:$0x1]
      %v257 = vld [vmem:[%s233 + $0x20] sm:$0xf]
      %v258 = vld [vmem:[%s233 + $0x24] sm:$0x1]
      %v259 = vld [vmem:[%s233 + $0x28] sm:$0xf]
      %v260 = vld [vmem:[%s233 + $0x2c] sm:$0x1]
      %v261 = vld [vmem:[%s233 + $0x30] sm:$0xf]
      %v262 = vld [vmem:[%s233 + $0x34] sm:$0x1]
      %v263 = vld [vmem:[%s233 + $0x38] sm:$0xf]
      %v264 = vld [vmem:[%s233 + $0x3c] sm:$0x1]
      %v265 = vld [vmem:[%s233 + $0x40] sm:$0xf]
      %v266 = vld [vmem:[%s233 + $0x44] sm:$0x1]
      %v267 = vld [vmem:[%s2] sm:$0xf]
      %v268 = vld [vmem:[%s2 + $0x4] sm:$0xf]
      %v269 = vld [vmem:[%s2 + $0x8] sm:$0xf]
      %v270 = vld [vmem:[%s2 + $0xc] sm:$0xf]
      %v279 = vunpack.c.l.b16 %v249
      %v280 = vunpack.c.l.b16 %v251
      %v281 = vunpack.c.l.b16 %v253
      %v282 = vunpack.c.l.b16 %v255
      %v283 = vunpack.c.l.b16 %v257
      %v284 = vunpack.c.l.b16 %v259
      %v285 = vunpack.c.l.b16 %v261
      %v286 = vunpack.c.l.b16 %v263
      %v287 = vpack.c.b16 %v280, %v279
      %v288 = vpack.c.b16 %v282, %v281
      %v289 = vpack.c.b16 %v284, %v283
      %v290 = vpack.c.b16 %v286, %v285
      %v295 = vunpack.c.l.b16 %v267
      %v296 = vunpack.c.l.b16 %v268
      %v297 = vunpack.c.l.b16 %v269
      %v298 = vunpack.c.l.b16 %v270
      %v299 = vpack.c.b16 %v296, %v295
      %v300 = vpack.c.b16 %v298, %v297
      %vm303 = vcmask 261120
      %v305 = vsel %vm303, %v287, 0
      %v308 = vsel %vm303, %v288, 0
      %v311 = vsel %vm303, %v289, 0
      %v314 = vsel %vm303, %v290, 0
      %316 = vmatprep.subr.bf16.mxu0 0
      %317 = vmatpush1.bf16.msra.mxu0 0
      %318 = vmatprep.subr.bf16.mxu0 0
      %319 = vmatpush1.bf16.msra.mxu0 0
      %320 = vmatprep.subr.bf16.mxu0 0
      %321 = vmatpush1.bf16.msra.mxu0 0
      %322 = vmatprep.subr.bf16.mxu0 0
      %323 = vmatpush1.bf16.msra.mxu0 0
      %324 = vmatprep.subr.bf16.mxu0 0
      %325 = vmatpush1.bf16.msra.mxu0 0
      %326 = vmatprep.subr.bf16.mxu0 0
      %327 = vmatpush1.bf16.msra.mxu0 0
      %328 = vmatprep.subr.bf16.mxu0 0
      %329 = vmatpush1.bf16.msra.mxu0 %v300
      %330 = vmatprep.subr.bf16.mxu0 0
      %331 = vmatpush1.bf16.msra.mxu0 %v299
      %332 = vmatprep.subr.bf16.mxu0 0
      %333 = vmatpush2.bf16.msra.mxu0 0
      %334 = vmatprep.subr.bf16.mxu0 0
      %335 = vmatpush2.bf16.msra.mxu0 0
      %336 = vmatprep.subr.bf16.mxu0 0
      %337 = vmatpush2.bf16.msra.mxu0 0
      %338 = vmatprep.subr.bf16.mxu0 0
      %339 = vmatpush2.bf16.msra.mxu0 0
      %340 = vmatprep.subr.bf16.mxu0 0
      %341 = vmatpush2.bf16.msra.mxu0 0
      %342 = vmatprep.subr.bf16.mxu0 0
      %343 = vmatpush2.bf16.msra.mxu0 0
      %344 = vmatprep.subr.bf16.mxu0 0
      %345 = vmatpush2.bf16.msra.mxu0 0
      %346 = vmatprep.subr.bf16.mxu0 0
      %347 = vmatpush2.bf16.msra.mxu0 0
      %348 = vmatprep.mubr.bf16.mxu0 0
      %349 = vmatmul.mubr.bf16.gmra.mxu0 %v305
      %v350 = vpop.f32.mrf.mxu0
      %v351 = vadd.f32 0.0, %v350
      %v352 = vpop.f32.mrf.mxu0
      %v353 = vpop.f32.mrf.mxu0
      %v354 = vadd.f32 0.0, %v353
      %v355 = vpop.f32.mrf.mxu0
      %356 = vmatprep.mubr.bf16.mxu0 0
      %357 = vmatmul.mubr.bf16.gmra.mxu0 %v308
      %v358 = vpop.f32.mrf.mxu0
      %v359 = vadd.f32 0.0, %v358
      %v360 = vpop.f32.mrf.mxu0
      %v361 = vpop.f32.mrf.mxu0
      %v362 = vadd.f32 0.0, %v361
      %v363 = vpop.f32.mrf.mxu0
      %364 = vmatprep.mubr.bf16.mxu0 0
      %365 = vmatmul.mubr.bf16.gmra.mxu0 %v311
      %v366 = vpop.f32.mrf.mxu0
      %v367 = vadd.f32 0.0, %v366
      %v368 = vpop.f32.mrf.mxu0
      %v369 = vpop.f32.mrf.mxu0
      %v370 = vadd.f32 0.0, %v369
      %v371 = vpop.f32.mrf.mxu0
      %372 = vmatprep.mubr.bf16.mxu0 0
      %373 = vmatmul.mubr.bf16.gmra.mxu0 %v314
      %v374 = vpop.f32.mrf.mxu0
      %v375 = vadd.f32 0.0, %v374
      %v376 = vpop.f32.mrf.mxu0
      %v377 = vpop.f32.mrf.mxu0
      %v378 = vadd.f32 0.0, %v377
      %v379 = vpop.f32.mrf.mxu0
      %380 = vdwg.mxu0
      %v381 = vld [vmem:[%s1] sm:$0xf]
      %v382 = vld [vmem:[%s1 + $0x4] sm:$0xf]
      %v383 = vld [vmem:[%s1 + $0x8] sm:$0xf]
      %v384 = vld [vmem:[%s1 + $0xc] sm:$0xf]
      %vm385 = vsmask.f32 3328
      %vm386 = vsmask.f32 7440
      %vm387 = vmor %vm385, %vm386
      %v389 = vshrl.u32 %v249, 16
      %v391 = vrot.slane %v389, 4
      %v392 = vshll.u32 %v249, 16
      %v394 = vrot.slane %v392, 5
      %v395 = vor.u32 %v391, %v394
      %v396 = vrot.slane %v395, 4
      %v398 = vshll.u32 %v250, 16
      %v400 = vrot.slane %v398, 5
      %v401 = vsel %vm387, %v396, %v400
      %v403 = vshrl.u32 %v251, 16
      %v405 = vrot.slane %v403, 4
      %v406 = vshll.u32 %v251, 16
      %v408 = vrot.slane %v406, 5
      %v409 = vor.u32 %v405, %v408
      %v410 = vrot.slane %v409, 4
      %v412 = vshll.u32 %v252, 16
      %v414 = vrot.slane %v412, 5
      %v415 = vsel %vm387, %v410, %v414
      %v417 = vshrl.u32 %v253, 16
      %v419 = vrot.slane %v417, 4
      %v420 = vshll.u32 %v253, 16
      %v422 = vrot.slane %v420, 5
      %v423 = vor.u32 %v419, %v422
      %v424 = vrot.slane %v423, 4
      %v426 = vshll.u32 %v254, 16
      %v428 = vrot.slane %v426, 5
      %v429 = vsel %vm387, %v424, %v428
      %v431 = vshrl.u32 %v255, 16
      %v433 = vrot.slane %v431, 4
      %v434 = vshll.u32 %v255, 16
      %v436 = vrot.slane %v434, 5
      %v437 = vor.u32 %v433, %v436
      %v438 = vrot.slane %v437, 4
      %v440 = vshll.u32 %v256, 16
      %v442 = vrot.slane %v440, 5
      %v443 = vsel %vm387, %v438, %v442
      %v445 = vshrl.u32 %v257, 16
      %v447 = vrot.slane %v445, 4
      %v448 = vshll.u32 %v257, 16
      %v450 = vrot.slane %v448, 5
      %v451 = vor.u32 %v447, %v450
      %v452 = vrot.slane %v451, 4
      %v454 = vshll.u32 %v258, 16
      %v456 = vrot.slane %v454, 5
      %v457 = vsel %vm387, %v452, %v456
      %v459 = vshrl.u32 %v259, 16
      %v461 = vrot.slane %v459, 4
      %v462 = vshll.u32 %v259, 16
      %v464 = vrot.slane %v462, 5
      %v465 = vor.u32 %v461, %v464
      %v466 = vrot.slane %v465, 4
      %v468 = vshll.u32 %v260, 16
      %v470 = vrot.slane %v468, 5
      %v471 = vsel %vm387, %v466, %v470
      %v473 = vshrl.u32 %v261, 16
      %v475 = vrot.slane %v473, 4
      %v476 = vshll.u32 %v261, 16
      %v478 = vrot.slane %v476, 5
      %v479 = vor.u32 %v475, %v478
      %v480 = vrot.slane %v479, 4
      %v482 = vshll.u32 %v262, 16
      %v484 = vrot.slane %v482, 5
      %v485 = vsel %vm387, %v480, %v484
      %v487 = vshrl.u32 %v263, 16
      %v489 = vrot.slane %v487, 4
      %v490 = vshll.u32 %v263, 16
      %v492 = vrot.slane %v490, 5
      %v493 = vor.u32 %v489, %v492
      %v494 = vrot.slane %v493, 4
      %v496 = vshll.u32 %v264, 16
      %v498 = vrot.slane %v496, 5
      %v499 = vsel %vm387, %v494, %v498
      %s500 = scalar_lea.vmem %s1, 16
      %v501 = vld [vmem:[%s500] sm:$0xf]
      %v502 = vld [vmem:[%s500 + $0x4] sm:$0xf]
      %v503 = vld [vmem:[%s500 + $0x8] sm:$0xf]
      %v504 = vld [vmem:[%s500 + $0xc] sm:$0xf]
      %v505 = vunpack.c.l.b16 %v401
      %v506 = vunpack.c.l.b16 %v415
      %v507 = vunpack.c.l.b16 %v429
      %v508 = vunpack.c.l.b16 %v443
      %v509 = vunpack.c.l.b16 %v457
      %v510 = vunpack.c.l.b16 %v471
      %v511 = vunpack.c.l.b16 %v485
      %v512 = vunpack.c.l.b16 %v499
      %v513 = vpack.c.b16 %v506, %v505
      %v514 = vpack.c.b16 %v508, %v507
      %v515 = vpack.c.b16 %v510, %v509
      %v516 = vpack.c.b16 %v512, %v511
      %v521 = vunpack.c.l.b16 %v501
      %v522 = vunpack.c.l.b16 %v502
      %v523 = vunpack.c.l.b16 %v503
      %v524 = vunpack.c.l.b16 %v504
      %v525 = vpack.c.b16 %v522, %v521
      %v526 = vpack.c.b16 %v524, %v523
      %v530 = vsel %vm303, %v513, 0
      %v533 = vsel %vm303, %v514, 0
      %v536 = vsel %vm303, %v515, 0
      %v539 = vsel %vm303, %v516, 0
      %541 = vmatprep.subr.bf16.mxu0 0
      %542 = vmatpush1.bf16.msra.mxu0 0
      %543 = vmatprep.subr.bf16.mxu0 0
      %544 = vmatpush1.bf16.msra.mxu0 0
      %545 = vmatprep.subr.bf16.mxu0 0
      %546 = vmatpush1.bf16.msra.mxu0 0
      %547 = vmatprep.subr.bf16.mxu0 0
      %548 = vmatpush1.bf16.msra.mxu0 0
      %549 = vmatprep.subr.bf16.mxu0 0
      %550 = vmatpush1.bf16.msra.mxu0 0
      %551 = vmatprep.subr.bf16.mxu0 0
      %552 = vmatpush1.bf16.msra.mxu0 0
      %553 = vmatprep.subr.bf16.mxu0 0
      %554 = vmatpush1.bf16.msra.mxu0 %v526
      %555 = vmatprep.subr.bf16.mxu0 0
      %556 = vmatpush1.bf16.msra.mxu0 %v525
      %557 = vmatprep.subr.bf16.mxu0 0
      %558 = vmatpush2.bf16.msra.mxu0 0
      %559 = vmatprep.subr.bf16.mxu0 0
      %560 = vmatpush2.bf16.msra.mxu0 0
      %561 = vmatprep.subr.bf16.mxu0 0
      %562 = vmatpush2.bf16.msra.mxu0 0
      %563 = vmatprep.subr.bf16.mxu0 0
      %564 = vmatpush2.bf16.msra.mxu0 0
      %565 = vmatprep.subr.bf16.mxu0 0
      %566 = vmatpush2.bf16.msra.mxu0 0
      %567 = vmatprep.subr.bf16.mxu0 0
      %568 = vmatpush2.bf16.msra.mxu0 0
      %569 = vmatprep.subr.bf16.mxu0 0
      %570 = vmatpush2.bf16.msra.mxu0 0
      %571 = vmatprep.subr.bf16.mxu0 0
      %572 = vmatpush2.bf16.msra.mxu0 0
      %573 = vmatprep.mubr.bf16.mxu0 0
      %574 = vmatmul.mubr.bf16.gmra.mxu0 %v530
      %v575 = vpop.f32.mrf.mxu0
      %v576 = vadd.f32 0.0, %v575
      %v577 = vpop.f32.mrf.mxu0
      %v578 = vpop.f32.mrf.mxu0
      %v579 = vadd.f32 0.0, %v578
      %v580 = vpop.f32.mrf.mxu0
      %581 = vmatprep.mubr.bf16.mxu0 0
      %582 = vmatmul.mubr.bf16.gmra.mxu0 %v533
      %v583 = vpop.f32.mrf.mxu0
      %v584 = vadd.f32 0.0, %v583
      %v585 = vpop.f32.mrf.mxu0
      %v586 = vpop.f32.mrf.mxu0
      %v587 = vadd.f32 0.0, %v586
      %v588 = vpop.f32.mrf.mxu0
      %589 = vmatprep.mubr.bf16.mxu0 0
      %590 = vmatmul.mubr.bf16.gmra.mxu0 %v536
      %v591 = vpop.f32.mrf.mxu0
      %v592 = vadd.f32 0.0, %v591
      %v593 = vpop.f32.mrf.mxu0
      %v594 = vpop.f32.mrf.mxu0
      %v595 = vadd.f32 0.0, %v594
      %v596 = vpop.f32.mrf.mxu0
      %597 = vmatprep.mubr.bf16.mxu0 0
      %598 = vmatmul.mubr.bf16.gmra.mxu0 %v539
      %v599 = vpop.f32.mrf.mxu0
      %v600 = vadd.f32 0.0, %v599
      %v601 = vpop.f32.mrf.mxu0
      %v602 = vpop.f32.mrf.mxu0
      %v603 = vadd.f32 0.0, %v602
      %v604 = vpop.f32.mrf.mxu0
      %605 = vdwg.mxu0
      %v610 = vunpack.c.l.b16 %v381
      %v611 = vunpack.c.l.b16 %v382
      %v612 = vunpack.c.l.b16 %v383
      %v613 = vunpack.c.l.b16 %v384
      %v614 = vpack.c.b16 %v611, %v610
      %v615 = vpack.c.b16 %v613, %v612
      %618 = vmatprep.subr.bf16.mxu0 0
      %619 = vmatpush1.bf16.msra.mxu0 0
      %620 = vmatprep.subr.bf16.mxu0 0
      %621 = vmatpush1.bf16.msra.mxu0 0
      %622 = vmatprep.subr.bf16.mxu0 0
      %623 = vmatpush1.bf16.msra.mxu0 0
      %624 = vmatprep.subr.bf16.mxu0 0
      %625 = vmatpush1.bf16.msra.mxu0 0
      %626 = vmatprep.subr.bf16.mxu0 0
      %627 = vmatpush1.bf16.msra.mxu0 0
      %628 = vmatprep.subr.bf16.mxu0 0
      %629 = vmatpush1.bf16.msra.mxu0 0
      %630 = vmatprep.subr.bf16.mxu0 0
      %631 = vmatpush1.bf16.msra.mxu0 %v615
      %632 = vmatprep.subr.bf16.mxu0 0
      %633 = vmatpush1.bf16.msra.mxu0 %v614
      %634 = vmatprep.subr.bf16.mxu0 0
      %635 = vmatpush2.bf16.msra.mxu0 0
      %636 = vmatprep.subr.bf16.mxu0 0
      %637 = vmatpush2.bf16.msra.mxu0 0
      %638 = vmatprep.subr.bf16.mxu0 0
      %639 = vmatpush2.bf16.msra.mxu0 0
      %640 = vmatprep.subr.bf16.mxu0 0
      %641 = vmatpush2.bf16.msra.mxu0 0
      %642 = vmatprep.subr.bf16.mxu0 0
      %643 = vmatpush2.bf16.msra.mxu0 0
      %644 = vmatprep.subr.bf16.mxu0 0
      %645 = vmatpush2.bf16.msra.mxu0 0
      %646 = vmatprep.subr.bf16.mxu0 0
      %647 = vmatpush2.bf16.msra.mxu0 0
      %648 = vmatprep.subr.bf16.mxu0 0
      %649 = vmatpush2.bf16.msra.mxu0 0
      %650 = vmatprep.mubr.bf16.mxu0 0
      %651 = vmatmul.mubr.bf16.gmra.mxu0 %v305
      %v652 = vpop.f32.mrf.mxu0
      %v653 = vadd.f32 %v576, %v652
      %v654 = vpop.f32.mrf.mxu0
      %v655 = vpop.f32.mrf.mxu0
      %v656 = vadd.f32 %v579, %v655
      %v657 = vpop.f32.mrf.mxu0
      %658 = vmatprep.mubr.bf16.mxu0 0
      %659 = vmatmul.mubr.bf16.gmra.mxu0 %v308
      %v660 = vpop.f32.mrf.mxu0
      %v661 = vadd.f32 %v584, %v660
      %v662 = vpop.f32.mrf.mxu0
      %v663 = vpop.f32.mrf.mxu0
      %v664 = vadd.f32 %v587, %v663
      %v665 = vpop.f32.mrf.mxu0
      %666 = vmatprep.mubr.bf16.mxu0 0
      %667 = vmatmul.mubr.bf16.gmra.mxu0 %v311
      %v668 = vpop.f32.mrf.mxu0
      %v669 = vadd.f32 %v592, %v668
      %v670 = vpop.f32.mrf.mxu0
      %v671 = vpop.f32.mrf.mxu0
      %v672 = vadd.f32 %v595, %v671
      %v673 = vpop.f32.mrf.mxu0
      %674 = vmatprep.mubr.bf16.mxu0 0
      %675 = vmatmul.mubr.bf16.gmra.mxu0 %v314
      %v676 = vpop.f32.mrf.mxu0
      %v677 = vadd.f32 %v600, %v676
      %v678 = vpop.f32.mrf.mxu0
      %v679 = vpop.f32.mrf.mxu0
      %v680 = vadd.f32 %v603, %v679
      %v681 = vpop.f32.mrf.mxu0
      %682 = vdwg.mxu0
      %s683 = scalar_lea.vmem %s1, 32
      %v684 = vld [vmem:[%s683] sm:$0xf]
      %v685 = vld [vmem:[%s683 + $0x4] sm:$0xf]
      %v686 = vld [vmem:[%s683 + $0x8] sm:$0xf]
      %v687 = vld [vmem:[%s683 + $0xc] sm:$0xf]
      %v689 = vunpack.c.l.b16 %v265
      %v690 = vpack.c.b16 %v281, %v280
      %v691 = vpack.c.b16 %v283, %v282
      %v692 = vpack.c.b16 %v285, %v284
      %v693 = vpack.c.b16 %v689, %v286
      %v698 = vunpack.c.l.b16 %v684
      %v699 = vunpack.c.l.b16 %v685
      %v700 = vunpack.c.l.b16 %v686
      %v701 = vunpack.c.l.b16 %v687
      %v702 = vpack.c.b16 %v699, %v698
      %v703 = vpack.c.b16 %v701, %v700
      %v707 = vsel %vm303, %v690, 0
      %v710 = vsel %vm303, %v691, 0
      %v713 = vsel %vm303, %v692, 0
      %v716 = vsel %vm303, %v693, 0
      %718 = vmatprep.subr.bf16.mxu0 0
      %719 = vmatpush1.bf16.msra.mxu0 0
      %720 = vmatprep.subr.bf16.mxu0 0
      %721 = vmatpush1.bf16.msra.mxu0 0
      %722 = vmatprep.subr.bf16.mxu0 0
      %723 = vmatpush1.bf16.msra.mxu0 0
      %724 = vmatprep.subr.bf16.mxu0 0
      %725 = vmatpush1.bf16.msra.mxu0 0
      %726 = vmatprep.subr.bf16.mxu0 0
      %727 = vmatpush1.bf16.msra.mxu0 0
      %728 = vmatprep.subr.bf16.mxu0 0
      %729 = vmatpush1.bf16.msra.mxu0 0
      %730 = vmatprep.subr.bf16.mxu0 0
      %731 = vmatpush1.bf16.msra.mxu0 %v703
      %732 = vmatprep.subr.bf16.mxu0 0
      %733 = vmatpush1.bf16.msra.mxu0 %v702
      %734 = vmatprep.subr.bf16.mxu0 0
      %735 = vmatpush2.bf16.msra.mxu0 0
      %736 = vmatprep.subr.bf16.mxu0 0
      %737 = vmatpush2.bf16.msra.mxu0 0
      %738 = vmatprep.subr.bf16.mxu0 0
      %739 = vmatpush2.bf16.msra.mxu0 0
      %740 = vmatprep.subr.bf16.mxu0 0
      %741 = vmatpush2.bf16.msra.mxu0 0
      %742 = vmatprep.subr.bf16.mxu0 0
      %743 = vmatpush2.bf16.msra.mxu0 0
      %744 = vmatprep.subr.bf16.mxu0 0
      %745 = vmatpush2.bf16.msra.mxu0 0
      %746 = vmatprep.subr.bf16.mxu0 0
      %747 = vmatpush2.bf16.msra.mxu0 0
      %748 = vmatprep.subr.bf16.mxu0 0
      %749 = vmatpush2.bf16.msra.mxu0 0
      %750 = vmatprep.mubr.bf16.mxu0 0
      %751 = vmatmul.mubr.bf16.gmra.mxu0 %v707
      %v752 = vpop.f32.mrf.mxu0
      %v753 = vadd.f32 0.0, %v752
      %v754 = vpop.f32.mrf.mxu0
      %v755 = vpop.f32.mrf.mxu0
      %v756 = vadd.f32 0.0, %v755
      %v757 = vpop.f32.mrf.mxu0
      %758 = vmatprep.mubr.bf16.mxu0 0
      %759 = vmatmul.mubr.bf16.gmra.mxu0 %v710
      %v760 = vpop.f32.mrf.mxu0
      %v761 = vadd.f32 0.0, %v760
      %v762 = vpop.f32.mrf.mxu0
      %v763 = vpop.f32.mrf.mxu0
      %v764 = vadd.f32 0.0, %v763
      %v765 = vpop.f32.mrf.mxu0
      %766 = vmatprep.mubr.bf16.mxu0 0
      %767 = vmatmul.mubr.bf16.gmra.mxu0 %v713
      %v768 = vpop.f32.mrf.mxu0
      %v769 = vadd.f32 0.0, %v768
      %v770 = vpop.f32.mrf.mxu0
      %v771 = vpop.f32.mrf.mxu0
      %v772 = vadd.f32 0.0, %v771
      %v773 = vpop.f32.mrf.mxu0
      %774 = vmatprep.mubr.bf16.mxu0 0
      %775 = vmatmul.mubr.bf16.gmra.mxu0 %v716
      %v776 = vpop.f32.mrf.mxu0
      %v777 = vadd.f32 0.0, %v776
      %v778 = vpop.f32.mrf.mxu0
      %v779 = vpop.f32.mrf.mxu0
      %v780 = vadd.f32 0.0, %v779
      %v781 = vpop.f32.mrf.mxu0
      %782 = vdwg.mxu0
      %v783 = vadd.f32 %v653, %v753
      %v784 = vadd.f32 %v656, %v756
      %v785 = vadd.f32 %v661, %v761
      %v786 = vadd.f32 %v664, %v764
      %v787 = vadd.f32 %v669, %v769
      %v788 = vadd.f32 %v672, %v772
      %v789 = vadd.f32 %v677, %v777
      %v790 = vadd.f32 %v680, %v780
      %v792 = vshrl.u32 %v265, 16
      %v794 = vrot.slane %v792, 4
      %v795 = vshll.u32 %v265, 16
      %v797 = vrot.slane %v795, 5
      %v798 = vor.u32 %v794, %v797
      %v799 = vrot.slane %v798, 4
      %v801 = vshll.u32 %v266, 16
      %v803 = vrot.slane %v801, 5
      %v804 = vsel %vm387, %v799, %v803
      %s805 = scalar_lea.vmem %s1, 48
      %v806 = vld [vmem:[%s805] sm:$0xf]
      %v807 = vld [vmem:[%s805 + $0x4] sm:$0xf]
      %v808 = vld [vmem:[%s805 + $0x8] sm:$0xf]
      %v809 = vld [vmem:[%s805 + $0xc] sm:$0xf]
      %v810 = vunpack.c.l.b16 %v804
      %v811 = vpack.c.b16 %v507, %v506
      %v812 = vpack.c.b16 %v509, %v508
      %v813 = vpack.c.b16 %v511, %v510
      %v814 = vpack.c.b16 %v810, %v512
      %v819 = vunpack.c.l.b16 %v806
      %v820 = vunpack.c.l.b16 %v807
      %v821 = vunpack.c.l.b16 %v808
      %v822 = vunpack.c.l.b16 %v809
      %v823 = vpack.c.b16 %v820, %v819
      %v824 = vpack.c.b16 %v822, %v821
      %v828 = vsel %vm303, %v811, 0
      %v831 = vsel %vm303, %v812, 0
      %v834 = vsel %vm303, %v813, 0
      %v837 = vsel %vm303, %v814, 0
      %839 = vmatprep.subr.bf16.mxu0 0
      %840 = vmatpush1.bf16.msra.mxu0 0
      %841 = vmatprep.subr.bf16.mxu0 0
      %842 = vmatpush1.bf16.msra.mxu0 0
      %843 = vmatprep.subr.bf16.mxu0 0
      %844 = vmatpush1.bf16.msra.mxu0 0
      %845 = vmatprep.subr.bf16.mxu0 0
      %846 = vmatpush1.bf16.msra.mxu0 0
      %847 = vmatprep.subr.bf16.mxu0 0
      %848 = vmatpush1.bf16.msra.mxu0 0
      %849 = vmatprep.subr.bf16.mxu0 0
      %850 = vmatpush1.bf16.msra.mxu0 0
      %851 = vmatprep.subr.bf16.mxu0 0
      %852 = vmatpush1.bf16.msra.mxu0 %v824
      %853 = vmatprep.subr.bf16.mxu0 0
      %854 = vmatpush1.bf16.msra.mxu0 %v823
      %855 = vmatprep.subr.bf16.mxu0 0
      %856 = vmatpush2.bf16.msra.mxu0 0
      %857 = vmatprep.subr.bf16.mxu0 0
      %858 = vmatpush2.bf16.msra.mxu0 0
      %859 = vmatprep.subr.bf16.mxu0 0
      %860 = vmatpush2.bf16.msra.mxu0 0
      %861 = vmatprep.subr.bf16.mxu0 0
      %862 = vmatpush2.bf16.msra.mxu0 0
      %863 = vmatprep.subr.bf16.mxu0 0
      %864 = vmatpush2.bf16.msra.mxu0 0
      %865 = vmatprep.subr.bf16.mxu0 0
      %866 = vmatpush2.bf16.msra.mxu0 0
      %867 = vmatprep.subr.bf16.mxu0 0
      %868 = vmatpush2.bf16.msra.mxu0 0
      %869 = vmatprep.subr.bf16.mxu0 0
      %870 = vmatpush2.bf16.msra.mxu0 0
      %871 = vmatprep.mubr.bf16.mxu0 0
      %872 = vmatmul.mubr.bf16.gmra.mxu0 %v828
      %v873 = vpop.f32.mrf.mxu0
      %v874 = vadd.f32 0.0, %v873
      %v875 = vpop.f32.mrf.mxu0
      %v876 = vpop.f32.mrf.mxu0
      %v877 = vadd.f32 0.0, %v876
      %v878 = vpop.f32.mrf.mxu0
      %879 = vmatprep.mubr.bf16.mxu0 0
      %880 = vmatmul.mubr.bf16.gmra.mxu0 %v831
      %v881 = vpop.f32.mrf.mxu0
      %v882 = vadd.f32 0.0, %v881
      %v883 = vpop.f32.mrf.mxu0
      %v884 = vpop.f32.mrf.mxu0
      %v885 = vadd.f32 0.0, %v884
      %v886 = vpop.f32.mrf.mxu0
      %887 = vmatprep.mubr.bf16.mxu0 0
      %888 = vmatmul.mubr.bf16.gmra.mxu0 %v834
      %v889 = vpop.f32.mrf.mxu0
      %v890 = vadd.f32 0.0, %v889
      %v891 = vpop.f32.mrf.mxu0
      %v892 = vpop.f32.mrf.mxu0
      %v893 = vadd.f32 0.0, %v892
      %v894 = vpop.f32.mrf.mxu0
      %895 = vmatprep.mubr.bf16.mxu0 0
      %896 = vmatmul.mubr.bf16.gmra.mxu0 %v837
      %v897 = vpop.f32.mrf.mxu0
      %v898 = vadd.f32 0.0, %v897
      %v899 = vpop.f32.mrf.mxu0
      %v900 = vpop.f32.mrf.mxu0
      %v901 = vadd.f32 0.0, %v900
      %v902 = vpop.f32.mrf.mxu0
      %903 = vdwg.mxu0
      %v904 = vadd.f32 %v783, %v874
      %v905 = vadd.f32 %v784, %v877
      %v906 = vadd.f32 %v785, %v882
      %v907 = vadd.f32 %v786, %v885
      %v908 = vadd.f32 %v787, %v890
      %v909 = vadd.f32 %v788, %v893
      %v910 = vadd.f32 %v789, %v898
      %v911 = vadd.f32 %v790, %v901
      %v912 = vpack.c.bf16 %v905, %v904
      %v913 = vpack.c.bf16 %v907, %v906
      %v914 = vpack.c.bf16 %v909, %v908
      %v915 = vpack.c.bf16 %v911, %v910
      %v920 = vunpack.c.l.b16 %v912
      %v921 = vunpack.c.h.b16 %v912
      %v922 = vunpack.c.l.b16 %v913
      %v923 = vunpack.c.h.b16 %v913
      %v924 = vunpack.c.l.b16 %v914
      %v925 = vunpack.c.h.b16 %v914
      %v926 = vunpack.c.l.b16 %v915
      %v927 = vunpack.c.h.b16 %v915
      %v928 = vpack.c.b16 %v920, %v920
      %v929 = vpack.c.b16 %v921, %v921
      %v930 = vpack.c.b16 %v922, %v922
      %v931 = vpack.c.b16 %v923, %v923
      %v932 = vpack.c.b16 %v924, %v924
      %v933 = vpack.c.b16 %v925, %v925
      %v934 = vpack.c.b16 %v926, %v926
      %v935 = vpack.c.b16 %v927, %v927
      %944 = vst [vmem:[%s238] sm:$0xf] %v928
      %945 = vst [vmem:[%s238 + $0x4] sm:$0xf] %v929
      %946 = vst [vmem:[%s238 + $0x8] sm:$0xf] %v930
      %947 = vst [vmem:[%s238 + $0xc] sm:$0xf] %v931
      %948 = vst [vmem:[%s238 + $0x10] sm:$0xf] %v932
      %949 = vst [vmem:[%s238 + $0x14] sm:$0xf] %v933
      %950 = vst [vmem:[%s238 + $0x18] sm:$0xf] %v934
      %951 = vst [vmem:[%s238 + $0x1c] sm:$0xf] %v935
      %v952 = vpack.c.bf16 %v354, %v351
      %v953 = vpack.c.bf16 %v362, %v359
      %v954 = vpack.c.bf16 %v370, %v367
      %v955 = vpack.c.bf16 %v378, %v375
      %v960 = vunpack.c.l.b16 %v952
      %v961 = vunpack.c.h.b16 %v952
      %v962 = vunpack.c.l.b16 %v953
      %v963 = vunpack.c.h.b16 %v953
      %v964 = vunpack.c.l.b16 %v954
      %v965 = vunpack.c.h.b16 %v954
      %v966 = vunpack.c.l.b16 %v955
      %v967 = vunpack.c.h.b16 %v955
      %v968 = vpack.c.b16 %v960, %v960
      %v969 = vpack.c.b16 %v961, %v961
      %v970 = vpack.c.b16 %v962, %v962
      %v971 = vpack.c.b16 %v963, %v963
      %v972 = vpack.c.b16 %v964, %v964
      %v973 = vpack.c.b16 %v965, %v965
      %v974 = vpack.c.b16 %v966, %v966
      %v975 = vpack.c.b16 %v967, %v967
      %984 = vst [vmem:[%s243] sm:$0xf] %v968
      %985 = vst [vmem:[%s243 + $0x4] sm:$0xf] %v969
      %986 = vst [vmem:[%s243 + $0x8] sm:$0xf] %v970
      %987 = vst [vmem:[%s243 + $0xc] sm:$0xf] %v971
      %988 = vst [vmem:[%s243 + $0x10] sm:$0xf] %v972
      %989 = vst [vmem:[%s243 + $0x14] sm:$0xf] %v973
      %990 = vst [vmem:[%s243 + $0x18] sm:$0xf] %v974
      %991 = vst [vmem:[%s243 + $0x1c] sm:$0xf] %v975
      %vm992 = vcmask 523264
      %v994 = vsel %vm992, 1.0, 0
      %996 = vmatprep.subr.mxu0 0.0
      %997 = vmatpush1.msra.mxu0 0.0
      %998 = vmatprep.subr.mxu0 0.0
      %999 = vmatpush1.msra.mxu0 0.0
      %1000 = vmatprep.subr.mxu0 0.0
      %1001 = vmatpush1.msra.mxu0 0.0
      %1002 = vmatprep.subr.mxu0 0.0
      %1003 = vmatpush1.msra.mxu0 0.0
      %1004 = vmatprep.subr.mxu0 0.0
      %1005 = vmatpush1.msra.mxu0 0.0
      %1006 = vmatprep.subr.mxu0 0.0
      %1007 = vmatpush1.msra.mxu0 0.0
      %1008 = vmatprep.subr.mxu0 0.0
      %1009 = vmatpush1.msra.mxu0 0.0
      %1010 = vmatprep.subr.mxu0 0.0
      %1011 = vmatpush1.msra.mxu0 0.0
      %1012 = vmatprep.subr.mxu0 0.0
      %1013 = vmatpush1.msra.mxu0 %v911
      %1014 = vmatprep.subr.mxu0 0.0
      %1015 = vmatpush1.msra.mxu0 %v910
      %1016 = vmatprep.subr.mxu0 0.0
      %1017 = vmatpush1.msra.mxu0 %v909
      %1018 = vmatprep.subr.mxu0 0.0
      %1019 = vmatpush1.msra.mxu0 %v908
      %1020 = vmatprep.subr.mxu0 0.0
      %1021 = vmatpush1.msra.mxu0 %v907
      %1022 = vmatprep.subr.mxu0 0.0
      %1023 = vmatpush1.msra.mxu0 %v906
      %1024 = vmatprep.subr.mxu0 0.0
      %1025 = vmatpush1.msra.mxu0 %v905
      %1026 = vmatprep.subr.mxu0 0.0
      %1027 = vmatpush1.msra.mxu0 %v904
      %1028 = vmatprep.subr.mxu0 0.0
      %1029 = vmatpush2.msra.mxu0 0.0
      %1030 = vmatprep.subr.mxu0 0.0
      %1031 = vmatpush2.msra.mxu0 0.0
      %1032 = vmatprep.subr.mxu0 0.0
      %1033 = vmatpush2.msra.mxu0 0.0
      %1034 = vmatprep.subr.mxu0 0.0
      %1035 = vmatpush2.msra.mxu0 0.0
      %1036 = vmatprep.subr.mxu0 0.0
      %1037 = vmatpush2.msra.mxu0 0.0
      %1038 = vmatprep.subr.mxu0 0.0
      %1039 = vmatpush2.msra.mxu0 0.0
      %1040 = vmatprep.subr.mxu0 0.0
      %1041 = vmatpush2.msra.mxu0 0.0
      %1042 = vmatprep.subr.mxu0 0.0
      %1043 = vmatpush2.msra.mxu0 0.0
      %1044 = vmatprep.subr.mxu0 0.0
      %1045 = vmatpush2.msra.mxu0 0.0
      %1046 = vmatprep.subr.mxu0 0.0
      %1047 = vmatpush2.msra.mxu0 0.0
      %1048 = vmatprep.subr.mxu0 0.0
      %1049 = vmatpush2.msra.mxu0 0.0
      %1050 = vmatprep.subr.mxu0 0.0
      %1051 = vmatpush2.msra.mxu0 0.0
      %1052 = vmatprep.subr.mxu0 0.0
      %1053 = vmatpush2.msra.mxu0 0.0
      %1054 = vmatprep.subr.mxu0 0.0
      %1055 = vmatpush2.msra.mxu0 0.0
      %1056 = vmatprep.subr.mxu0 0.0
      %1057 = vmatpush2.msra.mxu0 0.0
      %1058 = vmatprep.subr.mxu0 0.0
      %1059 = vmatpush2.msra.mxu0 0.0
      %1060 = vmatprep.mubr.f32.mxu0 0.0
      %1061 = vmatmul.mubr.f32.gmra.mxu0 %v994
      %v1062 = vpop.f32.mrf.mxu0
      %v1063 = vadd.f32 0.0, %v1062
      %v1064 = vpop.f32.mrf.mxu0
      %1065 = vdwg.mxu0
      %1066 = vst [vmem:[%s247] sm:$0x1] %v1063
      %v1067 = vmul.f32 %v904, %v904
      %v1068 = vmul.f32 %v905, %v905
      %v1069 = vmul.f32 %v906, %v906
      %v1070 = vmul.f32 %v907, %v907
      %v1071 = vmul.f32 %v908, %v908
      %v1072 = vmul.f32 %v909, %v909
      %v1073 = vmul.f32 %v910, %v910
      %v1074 = vmul.f32 %v911, %v911
      %1075 = vmatprep.subr.mxu0 0.0
      %1076 = vmatpush1.msra.mxu0 0.0
      %1077 = vmatprep.subr.mxu0 0.0
      %1078 = vmatpush1.msra.mxu0 0.0
      %1079 = vmatprep.subr.mxu0 0.0
      %1080 = vmatpush1.msra.mxu0 0.0
      %1081 = vmatprep.subr.mxu0 0.0
      %1082 = vmatpush1.msra.mxu0 0.0
      %1083 = vmatprep.subr.mxu0 0.0
      %1084 = vmatpush1.msra.mxu0 0.0
      %1085 = vmatprep.subr.mxu0 0.0
      %1086 = vmatpush1.msra.mxu0 0.0
      %1087 = vmatprep.subr.mxu0 0.0
      %1088 = vmatpush1.msra.mxu0 0.0
      %1089 = vmatprep.subr.mxu0 0.0
      %1090 = vmatpush1.msra.mxu0 0.0
      %1091 = vmatprep.subr.mxu0 0.0
      %1092 = vmatpush1.msra.mxu0 %v1074
      %1093 = vmatprep.subr.mxu0 0.0
      %1094 = vmatpush1.msra.mxu0 %v1073
      %1095 = vmatprep.subr.mxu0 0.0
      %1096 = vmatpush1.msra.mxu0 %v1072
      %1097 = vmatprep.subr.mxu0 0.0
      %1098 = vmatpush1.msra.mxu0 %v1071
      %1099 = vmatprep.subr.mxu0 0.0
      %1100 = vmatpush1.msra.mxu0 %v1070
      %1101 = vmatprep.subr.mxu0 0.0
      %1102 = vmatpush1.msra.mxu0 %v1069
      %1103 = vmatprep.subr.mxu0 0.0
      %1104 = vmatpush1.msra.mxu0 %v1068
      %1105 = vmatprep.subr.mxu0 0.0
      %1106 = vmatpush1.msra.mxu0 %v1067
      %1107 = vmatprep.subr.mxu0 0.0
      %1108 = vmatpush2.msra.mxu0 0.0
      %1109 = vmatprep.subr.mxu0 0.0
      %1110 = vmatpush2.msra.mxu0 0.0
      %1111 = vmatprep.subr.mxu0 0.0
      %1112 = vmatpush2.msra.mxu0 0.0
      %1113 = vmatprep.subr.mxu0 0.0
      %1114 = vmatpush2.msra.mxu0 0.0
      %1115 = vmatprep.subr.mxu0 0.0
      %1116 = vmatpush2.msra.mxu0 0.0
      %1117 = vmatprep.subr.mxu0 0.0
      %1118 = vmatpush2.msra.mxu0 0.0
      %1119 = vmatprep.subr.mxu0 0.0
      %1120 = vmatpush2.msra.mxu0 0.0
      %1121 = vmatprep.subr.mxu0 0.0
      %1122 = vmatpush2.msra.mxu0 0.0
      %1123 = vmatprep.subr.mxu0 0.0
      %1124 = vmatpush2.msra.mxu0 0.0
      %1125 = vmatprep.subr.mxu0 0.0
      %1126 = vmatpush2.msra.mxu0 0.0
      %1127 = vmatprep.subr.mxu0 0.0
      %1128 = vmatpush2.msra.mxu0 0.0
      %1129 = vmatprep.subr.mxu0 0.0
      %1130 = vmatpush2.msra.mxu0 0.0
      %1131 = vmatprep.subr.mxu0 0.0
      %1132 = vmatpush2.msra.mxu0 0.0
      %1133 = vmatprep.subr.mxu0 0.0
      %1134 = vmatpush2.msra.mxu0 0.0
      %1135 = vmatprep.subr.mxu0 0.0
      %1136 = vmatpush2.msra.mxu0 0.0
      %1137 = vmatprep.subr.mxu0 0.0
      %1138 = vmatpush2.msra.mxu0 0.0
      %1139 = vmatprep.mubr.f32.mxu0 0.0
      %1140 = vmatmul.mubr.f32.gmra.mxu0 %v994
      %v1141 = vpop.f32.mrf.mxu0
      %v1142 = vadd.f32 0.0, %v1141
      %v1143 = vpop.f32.mrf.mxu0
      %1144 = vdwg.mxu0
      %1145 = vst [vmem:[%s247 + $0x1] sm:$0x1] %v1142
      %1146 = vmatprep.subr.mxu0 0.0
      %1147 = vmatpush1.msra.mxu0 0.0
      %1148 = vmatprep.subr.mxu0 0.0
      %1149 = vmatpush1.msra.mxu0 0.0
      %1150 = vmatprep.subr.mxu0 0.0
      %1151 = vmatpush1.msra.mxu0 0.0
      %1152 = vmatprep.subr.mxu0 0.0
      %1153 = vmatpush1.msra.mxu0 0.0
      %1154 = vmatprep.subr.mxu0 0.0
      %1155 = vmatpush1.msra.mxu0 0.0
      %1156 = vmatprep.subr.mxu0 0.0
      %1157 = vmatpush1.msra.mxu0 0.0
      %1158 = vmatprep.subr.mxu0 0.0
      %1159 = vmatpush1.msra.mxu0 0.0
      %1160 = vmatprep.subr.mxu0 0.0
      %1161 = vmatpush1.msra.mxu0 0.0
      %1162 = vmatprep.subr.mxu0 0.0
      %1163 = vmatpush1.msra.mxu0 %v378
      %1164 = vmatprep.subr.mxu0 0.0
      %1165 = vmatpush1.msra.mxu0 %v375
      %1166 = vmatprep.subr.mxu0 0.0
      %1167 = vmatpush1.msra.mxu0 %v370
      %1168 = vmatprep.subr.mxu0 0.0
      %1169 = vmatpush1.msra.mxu0 %v367
      %1170 = vmatprep.subr.mxu0 0.0
      %1171 = vmatpush1.msra.mxu0 %v362
      %1172 = vmatprep.subr.mxu0 0.0
      %1173 = vmatpush1.msra.mxu0 %v359
      %1174 = vmatprep.subr.mxu0 0.0
      %1175 = vmatpush1.msra.mxu0 %v354
      %1176 = vmatprep.subr.mxu0 0.0
      %1177 = vmatpush1.msra.mxu0 %v351
      %1178 = vmatprep.subr.mxu0 0.0
      %1179 = vmatpush2.msra.mxu0 0.0
      %1180 = vmatprep.subr.mxu0 0.0
      %1181 = vmatpush2.msra.mxu0 0.0
      %1182 = vmatprep.subr.mxu0 0.0
      %1183 = vmatpush2.msra.mxu0 0.0
      %1184 = vmatprep.subr.mxu0 0.0
      %1185 = vmatpush2.msra.mxu0 0.0
      %1186 = vmatprep.subr.mxu0 0.0
      %1187 = vmatpush2.msra.mxu0 0.0
      %1188 = vmatprep.subr.mxu0 0.0
      %1189 = vmatpush2.msra.mxu0 0.0
      %1190 = vmatprep.subr.mxu0 0.0
      %1191 = vmatpush2.msra.mxu0 0.0
      %1192 = vmatprep.subr.mxu0 0.0
      %1193 = vmatpush2.msra.mxu0 0.0
      %1194 = vmatprep.subr.mxu0 0.0
      %1195 = vmatpush2.msra.mxu0 0.0
      %1196 = vmatprep.subr.mxu0 0.0
      %1197 = vmatpush2.msra.mxu0 0.0
      %1198 = vmatprep.subr.mxu0 0.0
      %1199 = vmatpush2.msra.mxu0 0.0
      %1200 = vmatprep.subr.mxu0 0.0
      %1201 = vmatpush2.msra.mxu0 0.0
      %1202 = vmatprep.subr.mxu0 0.0
      %1203 = vmatpush2.msra.mxu0 0.0
      %1204 = vmatprep.subr.mxu0 0.0
      %1205 = vmatpush2.msra.mxu0 0.0
      %1206 = vmatprep.subr.mxu0 0.0
      %1207 = vmatpush2.msra.mxu0 0.0
      %1208 = vmatprep.subr.mxu0 0.0
      %1209 = vmatpush2.msra.mxu0 0.0
      %1210 = vmatprep.mubr.f32.mxu0 0.0
      %1211 = vmatmul.mubr.f32.gmra.mxu0 %v994
      %v1212 = vpop.f32.mrf.mxu0
      %v1213 = vadd.f32 0.0, %v1212
      %v1214 = vpop.f32.mrf.mxu0
      %1215 = vdwg.mxu0
      %1216 = vst [vmem:[%s247 + $0x2] sm:$0x1] %v1213
      %v1217 = vmul.f32 %v351, %v351
      %v1218 = vmul.f32 %v354, %v354
      %v1219 = vmul.f32 %v359, %v359
      %v1220 = vmul.f32 %v362, %v362
      %v1221 = vmul.f32 %v367, %v367
      %v1222 = vmul.f32 %v370, %v370
      %v1223 = vmul.f32 %v375, %v375
      %v1224 = vmul.f32 %v378, %v378
      %1225 = vmatprep.subr.mxu0 0.0
      %1226 = vmatpush1.msra.mxu0 0.0
      %1227 = vmatprep.subr.mxu0 0.0
      %1228 = vmatpush1.msra.mxu0 0.0
      %1229 = vmatprep.subr.mxu0 0.0
      %1230 = vmatpush1.msra.mxu0 0.0
      %1231 = vmatprep.subr.mxu0 0.0
      %1232 = vmatpush1.msra.mxu0 0.0
      %1233 = vmatprep.subr.mxu0 0.0
      %1234 = vmatpush1.msra.mxu0 0.0
      %1235 = vmatprep.subr.mxu0 0.0
      %1236 = vmatpush1.msra.mxu0 0.0
      %1237 = vmatprep.subr.mxu0 0.0
      %1238 = vmatpush1.msra.mxu0 0.0
      %1239 = vmatprep.subr.mxu0 0.0
      %1240 = vmatpush1.msra.mxu0 0.0
      %1241 = vmatprep.subr.mxu0 0.0
      %1242 = vmatpush1.msra.mxu0 %v1224
      %1243 = vmatprep.subr.mxu0 0.0
      %1244 = vmatpush1.msra.mxu0 %v1223
      %1245 = vmatprep.subr.mxu0 0.0
      %1246 = vmatpush1.msra.mxu0 %v1222
      %1247 = vmatprep.subr.mxu0 0.0
      %1248 = vmatpush1.msra.mxu0 %v1221
      %1249 = vmatprep.subr.mxu0 0.0
      %1250 = vmatpush1.msra.mxu0 %v1220
      %1251 = vmatprep.subr.mxu0 0.0
      %1252 = vmatpush1.msra.mxu0 %v1219
      %1253 = vmatprep.subr.mxu0 0.0
      %1254 = vmatpush1.msra.mxu0 %v1218
      %1255 = vmatprep.subr.mxu0 0.0
      %1256 = vmatpush1.msra.mxu0 %v1217
      %1257 = vmatprep.subr.mxu0 0.0
      %1258 = vmatpush2.msra.mxu0 0.0
      %1259 = vmatprep.subr.mxu0 0.0
      %1260 = vmatpush2.msra.mxu0 0.0
      %1261 = vmatprep.subr.mxu0 0.0
      %1262 = vmatpush2.msra.mxu0 0.0
      %1263 = vmatprep.subr.mxu0 0.0
      %1264 = vmatpush2.msra.mxu0 0.0
      %1265 = vmatprep.subr.mxu0 0.0
      %1266 = vmatpush2.msra.mxu0 0.0
      %1267 = vmatprep.subr.mxu0 0.0
      %1268 = vmatpush2.msra.mxu0 0.0
      %1269 = vmatprep.subr.mxu0 0.0
      %1270 = vmatpush2.msra.mxu0 0.0
      %1271 = vmatprep.subr.mxu0 0.0
      %1272 = vmatpush2.msra.mxu0 0.0
      %1273 = vmatprep.subr.mxu0 0.0
      %1274 = vmatpush2.msra.mxu0 0.0
      %1275 = vmatprep.subr.mxu0 0.0
      %1276 = vmatpush2.msra.mxu0 0.0
      %1277 = vmatprep.subr.mxu0 0.0
      %1278 = vmatpush2.msra.mxu0 0.0
      %1279 = vmatprep.subr.mxu0 0.0
      %1280 = vmatpush2.msra.mxu0 0.0
      %1281 = vmatprep.subr.mxu0 0.0
      %1282 = vmatpush2.msra.mxu0 0.0
      %1283 = vmatprep.subr.mxu0 0.0
      %1284 = vmatpush2.msra.mxu0 0.0
      %1285 = vmatprep.subr.mxu0 0.0
      %1286 = vmatpush2.msra.mxu0 0.0
      %1287 = vmatprep.subr.mxu0 0.0
      %1288 = vmatpush2.msra.mxu0 0.0
      %1289 = vmatprep.mubr.f32.mxu0 0.0
      %1290 = vmatmul.mubr.f32.gmra.mxu0 %v994
      %v1291 = vpop.f32.mrf.mxu0
      %v1292 = vadd.f32 0.0, %v1291
      %v1293 = vpop.f32.mrf.mxu0
      %1294 = vdwg.mxu0
      %1295 = vst [vmem:[%s247 + $0x3] sm:$0x1] %v1292
      %p1296 = scmp.lt.s32.totalorder %s17, 1
      %s1297 = scalar_select %p1296, %s17, 1
      %s1298 = smul.addr %s1297, 8
      %s1299 = smul.addr %s1298, 4
      %s1300 = scalar_lea.vmem %s3, %s1299
      %p1301 = scmp.lt.s32.totalorder %s17, 1
      %s1302 = scalar_select %p1301, %s17, 1
      %s1303 = smul.addr %s1302, 8
      %s1304 = smul.addr %s1303, 4
      %s1305 = scalar_lea.vmem %s4, %s1304
      %p1306 = scmp.lt.s32.totalorder %s17, 1
      %s1307 = scalar_select %p1306, %s17, 1
      %s1308 = smul.addr %s1307, 4
      %s1309 = scalar_lea.vmem %s5, %s1308
      // Predicated region
      $region33: #{residual8_forward.3} parent=31 // pred_check
        %p1310 = pneg %p103
      $region34: #{residual8_forward.3} parent=31 // pred_check_branch
        %1312 = sbr.rel (%p1310) target = $region36
      $region35: #{residual8_forward.3} parent=31 // pred_region
        _
      $region36: #{residual8_forward.3} parent=31 // pred_fallthru
        _
      // Predicated region
      $region37: #{residual8_forward.3} parent=31 // pred_check
        %p1313 = pneg %p129
      $region38: #{residual8_forward.3} parent=31 // pred_check_branch
        %1315 = sbr.rel (%p1313) target = $region40
      $region39: #{residual8_forward.3} parent=31 // pred_region
        _
      $region40: #{residual8_forward.3} parent=31 // pred_fallthru
        _
      // Predicated region
      $region41: #{residual8_forward.3} parent=31 // pred_check
        %p1316 = pneg %p155
      $region42: #{residual8_forward.3} parent=31 // pred_check_branch
        %1318 = sbr.rel (%p1316) target = $region44
      $region43: #{residual8_forward.3} parent=31 // pred_region
        _
      $region44: #{residual8_forward.3} parent=31 // pred_fallthru
        _
    $region32: #{residual8_forward.3} parent=5 // pred_fallthru
      _
    %p1319 = scmp.le.s32.totalorder 2, %s12
    // Predicated region
    $region45: #{residual8_forward.3} parent=5 // pred_check
      %p1320 = pneg %p1319
    $region46: #{residual8_forward.3} parent=5 // pred_check_branch
      %1322 = sbr.rel (%p1320) target = $region48
    $region47: #{residual8_forward.3} parent=5 // pred_region
      %s1323 = ssub.s32 %s12, 2
      // Predicated region
      $region49: #{residual8_forward.3} parent=47 // pred_check
        %p1324 = pneg %p109
      $region50: #{residual8_forward.3} parent=47 // pred_check_branch
        %1326 = sbr.rel (%p1324) target = $region52
      $region51: #{residual8_forward.3} parent=47 // pred_region
        %p1327 = scmp.lt.s32.totalorder %s18, 1
        %s1328 = scalar_select %p1327, %s18, 1
        %s1329 = smul.addr %s1328, 8
        %s1330 = smul.addr %s1329, 4
        %s1331 = scalar_lea.vmem %s3, %s1330
      $region52: #{residual8_forward.3} parent=47 // pred_fallthru
        _
      // Predicated region
      $region53: #{residual8_forward.3} parent=47 // pred_check
        %p1332 = pneg %p135
      $region54: #{residual8_forward.3} parent=47 // pred_check_branch
        %1334 = sbr.rel (%p1332) target = $region56
      $region55: #{residual8_forward.3} parent=47 // pred_region
        %p1335 = scmp.lt.s32.totalorder %s18, 1
        %s1336 = scalar_select %p1335, %s18, 1
        %s1337 = smul.addr %s1336, 8
        %s1338 = smul.addr %s1337, 4
        %s1339 = scalar_lea.vmem %s4, %s1338
      $region56: #{residual8_forward.3} parent=47 // pred_fallthru
        _
      // Predicated region
      $region57: #{residual8_forward.3} parent=47 // pred_check
        %p1340 = pneg %p161
      $region58: #{residual8_forward.3} parent=47 // pred_check_branch
        %1342 = sbr.rel (%p1340) target = $region60
      $region59: #{residual8_forward.3} parent=47 // pred_region
        %p1343 = scmp.lt.s32.totalorder %s18, 1
        %s1344 = scalar_select %p1343, %s18, 1
        %s1345 = smul.addr %s1344, 4
        %s1346 = scalar_lea.vmem %s5, %s1345
      $region60: #{residual8_forward.3} parent=47 // pred_fallthru
        _
    $region48: #{residual8_forward.3} parent=5 // pred_fallthru
      _
  $region6: #{residual8_forward.3} parent=0 // loop_footer
    %s16 = sadd.s32 1, %s12
  $region7: #{residual8_forward.3} parent=0 // loop_footer_branch
    %11 = sbr.rel target = $region3
  $region8: #{residual8_forward.3} parent=0 // loop_exit
    _

// kernel: residual8_forward.4
$region0: #{residual8_forward.4}
  #allocation0 [shape = 'u32[]', space=smem, size = 0x4, offset = 0x4, fixed_abs, tag = 'smem constant byte address 0x4 - core index']
  #allocation1 [shape = 'u32[144,128]{1,0:T(1,128)}', space=vmem, size = 0x12000, scoped, tag = 'internal scratch']
  #allocation2 [shape = 'bf16[10,10,128]{2,1,0:T(8,128)(2,1)}', space=vmem, size = 0xa000, scoped, tag = 'scratch operand']
  %s0 = inlined_call_operand.vmem [shape: bf16[2,8,8,128], index: 0, kind: input, shape index: {}]
  %s1 = inlined_call_operand.vmem [shape: bf16[9,128,128], index: 1, kind: input, shape index: {}]
  %s2 = inlined_call_operand.vmem [shape: f32[1,128], index: 2, kind: input, shape index: {}]
  %s3 = inlined_call_operand.vmem [shape: f32[1,128], index: 3, kind: input, shape index: {}]
  %s4 = inlined_call_operand.vmem [shape: bf16[2,8,8,128], index: 4, kind: output, shape index: {0}]
  %s5 = inlined_call_operand.vmem [shape: f32[2,2,128], index: 5, kind: output, shape index: {1}]
  %6 = xla_tuple %s4, %s5
  %s7 = sld [smem:[#allocation0]]
  $region57: #{residual8_forward.4} parent=0
    _
  %s9 = ssub.s32 1, %s7
  %s10 = scalar_select 0, %s9, %s7
  loop: start=0, step=1, limit=4
  $region2: #{residual8_forward.4} parent=0 // loop_pre_header
    _
  $region3: #{residual8_forward.4} parent=0 // loop_header
    %s12 = sphi 0, %s16
    %p13 = scmp.ge.s32.totalorder %s12, 4
    %s22 = sphi 0, %s24
    %s25 = sphi 0, %s22
    %s26 = sphi 0, %s25
    %s42 = sphi 0, %s26
    %s46 = sphi 0, %s46
    %s48 = sphi 0, %s46
    %s49 = sphi 0, %s48
    %s63 = sphi 0, %s49
    %s67 = sphi 0, %s67
    %s69 = sphi 0, %s67
    %s70 = sphi 0, %s69
    %s84 = sphi 0, %s70
    %s88 = sphi 0, %s88
    %s90 = sphi 0, %s88
    %s91 = sphi 0, %s90
    %s105 = sphi 0, %s91
    %s111 = sphi 0, %s113
    %s114 = sphi 0, %s111
    %s115 = sphi 0, %s114
    %s131 = sphi 0, %s115
    %s137 = sphi 0, %s139
    %s140 = sphi 0, %s137
    %s141 = sphi 0, %s140
    %s157 = sphi 0, %s141
  $region4: #{residual8_forward.4} parent=0 // loop_header_branch
    %15 = sbr.rel (%p13) target = $region8
  $region5: #{residual8_forward.4} parent=0 // loop_body
    %s17 = ssub.s32 %s12, 1
    %s18 = ssub.s32 %s12, 2
    %s19 = sadd.s32 %s12, 1
    %s20 = ssub.s32 %s12, %s19
    %p21 = scmp.eq.s32.totalorder %s20, 0
    %s23 = sadd.s32 %s22, 1
    %s24 = scalar_select %p21, %s22, %s23
    %p27 = pneg %p21
    %p28 = scmp.eq.s32.totalorder %s12, 1
    %p29 = por %p27, %p28
    %p30 = scmp.ne.s32.totalorder %s22, %s25
    %p31 = scmp.eq.s32.totalorder %s12, 0
    %p32 = por %p30, %p31
    %p33 = scmp.ne.s32.totalorder %s22, %s25
    %p34 = scmp.eq.s32.totalorder %s17, 1
    %p35 = por %p33, %p34
    %p36 = scmp.ne.s32.totalorder %s25, %s26
    %p37 = scmp.eq.s32.totalorder %s17, 0
    %p38 = por %p36, %p37
    %p39 = scmp.ne.s32.totalorder %s25, %s26
    %p40 = scmp.eq.s32.totalorder %s18, 1
    %p41 = por %p39, %p40
    %p43 = scmp.ne.s32.totalorder %s26, %s42
    %p44 = scmp.eq.s32.totalorder %s18, 0
    %p45 = por %p43, %p44
    %s47 = sadd.s32 %s46, 1
    %p50 = scmp.eq.s32.totalorder %s12, 1
    %p51 = scmp.ne.s32.totalorder %s46, %s48
    %p52 = scmp.eq.s32.totalorder %s12, 0
    %p53 = por %p51, %p52
    %p54 = scmp.ne.s32.totalorder %s46, %s48
    %p55 = scmp.eq.s32.totalorder %s17, 1
    %p56 = por %p54, %p55
    %p57 = scmp.ne.s32.totalorder %s48, %s49
    %p58 = scmp.eq.s32.totalorder %s17, 0
    %p59 = por %p57, %p58
    %p60 = scmp.ne.s32.totalorder %s48, %s49
    %p61 = scmp.eq.s32.totalorder %s18, 1
    %p62 = por %p60, %p61
    %p64 = scmp.ne.s32.totalorder %s49, %s63
    %p65 = scmp.eq.s32.totalorder %s18, 0
    %p66 = por %p64, %p65
    %s68 = sadd.s32 %s67, 1
    %p71 = scmp.eq.s32.totalorder %s12, 1
    %p72 = scmp.ne.s32.totalorder %s67, %s69
    %p73 = scmp.eq.s32.totalorder %s12, 0
    %p74 = por %p72, %p73
    %p75 = scmp.ne.s32.totalorder %s67, %s69
    %p76 = scmp.eq.s32.totalorder %s17, 1
    %p77 = por %p75, %p76
    %p78 = scmp.ne.s32.totalorder %s69, %s70
    %p79 = scmp.eq.s32.totalorder %s17, 0
    %p80 = por %p78, %p79
    %p81 = scmp.ne.s32.totalorder %s69, %s70
    %p82 = scmp.eq.s32.totalorder %s18, 1
    %p83 = por %p81, %p82
    %p85 = scmp.ne.s32.totalorder %s70, %s84
    %p86 = scmp.eq.s32.totalorder %s18, 0
    %p87 = por %p85, %p86
    %s89 = sadd.s32 %s88, 1
    %p92 = scmp.eq.s32.totalorder %s12, 1
    %p93 = scmp.ne.s32.totalorder %s88, %s90
    %p94 = scmp.eq.s32.totalorder %s12, 0
    %p95 = por %p93, %p94
    %p96 = scmp.ne.s32.totalorder %s88, %s90
    %p97 = scmp.eq.s32.totalorder %s17, 1
    %p98 = por %p96, %p97
    %p99 = scmp.ne.s32.totalorder %s90, %s91
    %p100 = scmp.eq.s32.totalorder %s17, 0
    %p101 = por %p99, %p100
    %p102 = scmp.ne.s32.totalorder %s90, %s91
    %p103 = scmp.eq.s32.totalorder %s18, 1
    %p104 = por %p102, %p103
    %p106 = scmp.ne.s32.totalorder %s91, %s105
    %p107 = scmp.eq.s32.totalorder %s18, 0
    %p108 = por %p106, %p107
    %s109 = ssub.s32 %s12, %s19
    %p110 = scmp.eq.s32.totalorder %s109, 0
    %s112 = sadd.s32 %s111, 1
    %s113 = scalar_select %p110, %s111, %s112
    %p116 = pneg %p110
    %p117 = scmp.eq.s32.totalorder %s12, 1
    %p118 = por %p116, %p117
    %p119 = scmp.ne.s32.totalorder %s111, %s114
    %p120 = scmp.eq.s32.totalorder %s12, 0
    %p121 = por %p119, %p120
    %p122 = scmp.ne.s32.totalorder %s111, %s114
    %p123 = scmp.eq.s32.totalorder %s17, 1
    %p124 = por %p122, %p123
    %p125 = scmp.ne.s32.totalorder %s114, %s115
    %p126 = scmp.eq.s32.totalorder %s17, 0
    %p127 = por %p125, %p126
    %p128 = scmp.ne.s32.totalorder %s114, %s115
    %p129 = scmp.eq.s32.totalorder %s18, 1
    %p130 = por %p128, %p129
    %p132 = scmp.ne.s32.totalorder %s115, %s131
    %p133 = scmp.eq.s32.totalorder %s18, 0
    %p134 = por %p132, %p133
    %s135 = ssub.s32 %s12, %s19
    %p136 = scmp.eq.s32.totalorder %s135, 0
    %s138 = sadd.s32 %s137, 1
    %s139 = scalar_select %p136, %s137, %s138
    %p142 = pneg %p136
    %p143 = scmp.eq.s32.totalorder %s12, 1
    %p144 = por %p142, %p143
    %p145 = scmp.ne.s32.totalorder %s137, %s140
    %p146 = scmp.eq.s32.totalorder %s12, 0
    %p147 = por %p145, %p146
    %p148 = scmp.ne.s32.totalorder %s137, %s140
    %p149 = scmp.eq.s32.totalorder %s17, 1
    %p150 = por %p148, %p149
    %p151 = scmp.ne.s32.totalorder %s140, %s141
    %p152 = scmp.eq.s32.totalorder %s17, 0
    %p153 = por %p151, %p152
    %p154 = scmp.ne.s32.totalorder %s140, %s141
    %p155 = scmp.eq.s32.totalorder %s18, 1
    %p156 = por %p154, %p155
    %p158 = scmp.ne.s32.totalorder %s141, %s157
    %p159 = scmp.eq.s32.totalorder %s18, 0
    %p160 = por %p158, %p159
    %p161 = scmp.le.s32.totalorder 1, %s12
    %p162 = scmp.lt.s32.totalorder %s12, 3
    %p163 = pnand %p161, %p162
    %p164 = pneg %p163
    // Predicated region
    $region9: #{residual8_forward.4} parent=5 // pred_check
      _
    $region10: #{residual8_forward.4} parent=5 // pred_check_branch
      %166 = sbr.rel (%p163) target = $region12
    $region11: #{residual8_forward.4} parent=5 // pred_region
      %s167 = ssub.s32 %s12, 1
      // Predicated region
      $region13: #{residual8_forward.4} parent=11 // pred_check
        %p168 = pneg %p59
      $region14: #{residual8_forward.4} parent=11 // pred_check_branch
        %170 = sbr.rel (%p168) target = $region16
      $region15: #{residual8_forward.4} parent=11 // pred_region
        _
      $region16: #{residual8_forward.4} parent=11 // pred_fallthru
        _
      // Predicated region
      $region17: #{residual8_forward.4} parent=11 // pred_check
        %p171 = pneg %p80
      $region18: #{residual8_forward.4} parent=11 // pred_check_branch
        %173 = sbr.rel (%p171) target = $region20
      $region19: #{residual8_forward.4} parent=11 // pred_region
        _
      $region20: #{residual8_forward.4} parent=11 // pred_fallthru
        _
      // Predicated region
      $region21: #{residual8_forward.4} parent=11 // pred_check
        %p174 = pneg %p101
      $region22: #{residual8_forward.4} parent=11 // pred_check_branch
        %176 = sbr.rel (%p174) target = $region24
      $region23: #{residual8_forward.4} parent=11 // pred_region
        _
      $region24: #{residual8_forward.4} parent=11 // pred_fallthru
        _
    $region12: #{residual8_forward.4} parent=5 // pred_fallthru
      _
    %p177 = scmp.lt.s32.totalorder %s12, 2
    // Predicated region
    $region25: #{residual8_forward.4} parent=5 // pred_check
      %p178 = pneg %p177
    $region26: #{residual8_forward.4} parent=5 // pred_check_branch
      %180 = sbr.rel (%p178) target = $region28
    $region27: #{residual8_forward.4} parent=5 // pred_region
      // Predicated region
      $region29: #{residual8_forward.4} parent=27 // pred_check
        %p181 = pneg %p32
      $region30: #{residual8_forward.4} parent=27 // pred_check_branch
        %183 = sbr.rel (%p181) target = $region32
      $region31: #{residual8_forward.4} parent=27 // pred_region
        %p184 = scmp.lt.s32.totalorder %s12, 1
        %s185 = scalar_select %p184, %s12, 1
        %s186 = smul.addr %s185, 8
        %s187 = smul.addr %s186, 4
        %s188 = scalar_lea.vmem %s0, %s187
      $region32: #{residual8_forward.4} parent=27 // pred_fallthru
        _
    $region28: #{residual8_forward.4} parent=5 // pred_fallthru
      _
    %p189 = scmp.le.s32.totalorder 1, %s12
    %p190 = scmp.lt.s32.totalorder %s12, 3
    %p191 = pnand %p189, %p190
    %p192 = pneg %p191
    // Predicated region
    $region33: #{residual8_forward.4} parent=5 // pred_check
      _
    $region34: #{residual8_forward.4} parent=5 // pred_check_branch
      %194 = sbr.rel (%p191) target = $region36
    $region35: #{residual8_forward.4} parent=5 // pred_region
      %s195 = ssub.s32 %s12, 1
      %p196 = scmp.lt.s32.totalorder %s17, 1
      %s197 = scalar_select %p196, %s17, 1
      %s198 = smul.addr %s197, 8
      %s199 = smul.addr %s198, 4
      %s200 = scalar_lea.vmem %s0, %s199
      %p201 = pneg %p38
      %p202 = pneg %p35
      %p203 = pneg %p59
      %p204 = pneg %p56
      %p205 = pneg %p80
      %p206 = pneg %p77
      %p207 = pneg %p101
      %p208 = pneg %p98
      %p209 = pneg %p127
      %p210 = pneg %p124
      %p211 = scmp.lt.s32.totalorder %s17, 1
      %s212 = scalar_select %p211, %s17, 1
      %s213 = smul.addr %s212, 8
      %s214 = smul.addr %s213, 4
      %s215 = scalar_lea.vmem %s4, %s214
      %p216 = pneg %p153
      %p217 = pneg %p150
      %p218 = scmp.lt.s32.totalorder %s17, 1
      %s219 = scalar_select %p218, %s17, 1
      %s220 = smul.addr %s219, 2
      %s221 = scalar_lea.vmem %s5, %s220
      %p222 = scmp.lt.s32.totalorder %s17, 1
      %s223 = scalar_select %p222, %s17, 1
      %s224 = smul.addr %s223, 8
      %s225 = smul.addr %s224, 4
      %s226 = scalar_lea.vmem %s0, %s225
      %p227 = scmp.lt.s32.totalorder %s17, 1
      %s228 = scalar_select %p227, %s17, 1
      %s229 = smul.addr %s228, 8
      %s230 = smul.addr %s229, 4
      %s231 = scalar_lea.vmem %s4, %s230
      %p232 = scmp.lt.s32.totalorder %s17, 1
      %s233 = scalar_select %p232, %s17, 1
      %s234 = smul.addr %s233, 2
      %s235 = scalar_lea.vmem %s5, %s234
      %v237 = vld [vmem:[%s226] sm:$0xf]
      %v238 = vld [vmem:[%s226 + $0x4] sm:$0xf]
      %v239 = vld [vmem:[%s226 + $0x8] sm:$0xf]
      %v240 = vld [vmem:[%s226 + $0xc] sm:$0xf]
      %v241 = vld [vmem:[%s226 + $0x10] sm:$0xf]
      %v242 = vld [vmem:[%s226 + $0x14] sm:$0xf]
      %v243 = vld [vmem:[%s226 + $0x18] sm:$0xf]
      %v244 = vld [vmem:[%s226 + $0x1c] sm:$0xf]
      %v245 = vunpack.c.l.bf16 %v237
      %v246 = vunpack.c.l.bf16 %v238
      %v247 = vunpack.c.l.bf16 %v239
      %v248 = vunpack.c.l.bf16 %v240
      %v249 = vunpack.c.l.bf16 %v241
      %v250 = vunpack.c.l.bf16 %v242
      %v251 = vunpack.c.l.bf16 %v243
      %v252 = vunpack.c.l.bf16 %v244
      %v253 = vld [vmem:[%s2] sm:$0x1]
      %v255 = vlaneseq
      %v256 = vshrl.u32 %v255, 7
      %v257 = vsub.s32 0, %v256
      %v258 = vrot.slane %v253, %v257
      %v260 = vmul.f32 %v245, %v258
      %v261 = vmul.f32 %v246, %v258
      %v262 = vmul.f32 %v247, %v258
      %v263 = vmul.f32 %v248, %v258
      %v264 = vmul.f32 %v249, %v258
      %v265 = vmul.f32 %v250, %v258
      %v266 = vmul.f32 %v251, %v258
      %v267 = vmul.f32 %v252, %v258
      %v268 = vld [vmem:[%s3] sm:$0x1]
      %v270 = vlaneseq
      %v271 = vshrl.u32 %v270, 7
      %v272 = vsub.s32 0, %v271
      %v273 = vrot.slane %v268, %v272
      %v275 = vadd.f32 %v260, %v273
      %v276 = vadd.f32 %v261, %v273
      %v277 = vadd.f32 %v262, %v273
      %v278 = vadd.f32 %v263, %v273
      %v279 = vadd.f32 %v264, %v273
      %v280 = vadd.f32 %v265, %v273
      %v281 = vadd.f32 %v266, %v273
      %v282 = vadd.f32 %v267, %v273
      %v283 = vmax.f32 %v275, 0.0
      %v284 = vmax.f32 %v276, 0.0
      %v285 = vmax.f32 %v277, 0.0
      %v286 = vmax.f32 %v278, 0.0
      %v287 = vmax.f32 %v279, 0.0
      %v288 = vmax.f32 %v280, 0.0
      %v289 = vmax.f32 %v281, 0.0
      %v290 = vmax.f32 %v282, 0.0
      %291 = vst [vmem:[#allocation2] sm:$0xf] 0
      %292 = vst [vmem:[#allocation2 + $0x4] sm:$0x1] 0
      %s293 = scalar_lea.vmem [#allocation2], 72
      %294 = vst [vmem:[%s293] sm:$0xf] 0
      %295 = vst [vmem:[%s293 + $0x4] sm:$0x1] 0
      %vm296 = vcmask 1040384
      %vm297 = vsmask.f32 256
      %vm298 = vmand %vm296, %vm297
      %v299 = vld [vmem:[#allocation2] sm:$0x1]
      %v300 = vsel %vm298, 0, %v299
      %301 = vst [vmem:[#allocation2] sm:$0x1] %v300
      %v302 = vld [vmem:[#allocation2 + $0x8] sm:$0x1]
      %v303 = vsel %vm298, 0, %v302
      %304 = vst [vmem:[#allocation2 + $0x8] sm:$0x1] %v303
      %v305 = vld [vmem:[#allocation2 + $0x10] sm:$0x1]
      %v306 = vsel %vm298, 0, %v305
      %307 = vst [vmem:[#allocation2 + $0x10] sm:$0x1] %v306
      %v308 = vld [vmem:[#allocation2 + $0x18] sm:$0x1]
      %v309 = vsel %vm298, 0, %v308
      %310 = vst [vmem:[#allocation2 + $0x18] sm:$0x1] %v309
      %v311 = vld [vmem:[#allocation2 + $0x20] sm:$0x1]
      %v312 = vsel %vm298, 0, %v311
      %313 = vst [vmem:[#allocation2 + $0x20] sm:$0x1] %v312
      %v314 = vld [vmem:[#allocation2 + $0x28] sm:$0x1]
      %v315 = vsel %vm298, 0, %v314
      %316 = vst [vmem:[#allocation2 + $0x28] sm:$0x1] %v315
      %v317 = vld [vmem:[#allocation2 + $0x30] sm:$0x1]
      %v318 = vsel %vm298, 0, %v317
      %319 = vst [vmem:[#allocation2 + $0x30] sm:$0x1] %v318
      %v320 = vld [vmem:[#allocation2 + $0x38] sm:$0x1]
      %v321 = vsel %vm298, 0, %v320
      %322 = vst [vmem:[#allocation2 + $0x38] sm:$0x1] %v321
      %v323 = vld [vmem:[#allocation2 + $0x40] sm:$0x1]
      %v324 = vsel %vm298, 0, %v323
      %325 = vst [vmem:[#allocation2 + $0x40] sm:$0x1] %v324
      %v326 = vld [vmem:[#allocation2 + $0x48] sm:$0x1]
      %v327 = vsel %vm298, 0, %v326
      %328 = vst [vmem:[#allocation2 + $0x48] sm:$0x1] %v327
      %vm329 = vsmask.f32 7938
      %vm330 = vmand %vm296, %vm329
      %v331 = vld [vmem:[#allocation2 + $0x4] sm:$0x1]
      %v332 = vsel %vm330, 0, %v331
      %333 = vst [vmem:[#allocation2 + $0x4] sm:$0x1] %v332
      %v334 = vld [vmem:[#allocation2 + $0xc] sm:$0x1]
      %v335 = vsel %vm330, 0, %v334
      %336 = vst [vmem:[#allocation2 + $0xc] sm:$0x1] %v335
      %v337 = vld [vmem:[#allocation2 + $0x14] sm:$0x1]
      %v338 = vsel %vm330, 0, %v337
      %339 = vst [vmem:[#allocation2 + $0x14] sm:$0x1] %v338
      %v340 = vld [vmem:[#allocation2 + $0x1c] sm:$0x1]
      %v341 = vsel %vm330, 0, %v340
      %342 = vst [vmem:[#allocation2 + $0x1c] sm:$0x1] %v341
      %v343 = vld [vmem:[#allocation2 + $0x24] sm:$0x1]
      %v344 = vsel %vm330, 0, %v343
      %345 = vst [vmem:[#allocation2 + $0x24] sm:$0x1] %v344
      %v346 = vld [vmem:[#allocation2 + $0x2c] sm:$0x1]
      %v347 = vsel %vm330, 0, %v346
      %348 = vst [vmem:[#allocation2 + $0x2c] sm:$0x1] %v347
      %v349 = vld [vmem:[#allocation2 + $0x34] sm:$0x1]
      %v350 = vsel %vm330, 0, %v349
      %351 = vst [vmem:[#allocation2 + $0x34] sm:$0x1] %v350
      %v352 = vld [vmem:[#allocation2 + $0x3c] sm:$0x1]
      %v353 = vsel %vm330, 0, %v352
      %354 = vst [vmem:[#allocation2 + $0x3c] sm:$0x1] %v353
      %v355 = vld [vmem:[#allocation2 + $0x44] sm:$0x1]
      %v356 = vsel %vm330, 0, %v355
      %357 = vst [vmem:[#allocation2 + $0x44] sm:$0x1] %v356
      %v358 = vld [vmem:[#allocation2 + $0x4c] sm:$0x1]
      %v359 = vsel %vm330, 0, %v358
      %360 = vst [vmem:[#allocation2 + $0x4c] sm:$0x1] %v359
      %v361 = vpack.c.bf16 %v283, %v283
      %v362 = vpack.c.bf16 %v284, %v284
      %v363 = vpack.c.bf16 %v285, %v285
      %v364 = vpack.c.bf16 %v286, %v286
      %v365 = vpack.c.bf16 %v287, %v287
      %v366 = vpack.c.bf16 %v288, %v288
      %v367 = vpack.c.bf16 %v289, %v289
      %v368 = vpack.c.bf16 %v290, %v290
      %v377 = vunpack.c.l.b16 %v361
      %v378 = vunpack.c.l.b16 %v362
      %v379 = vunpack.c.l.b16 %v363
      %v380 = vunpack.c.l.b16 %v364
      %v381 = vunpack.c.l.b16 %v365
      %v382 = vunpack.c.l.b16 %v366
      %v383 = vunpack.c.l.b16 %v367
      %v384 = vunpack.c.l.b16 %v368
      %v385 = vpack.c.b16 %v377, %v377
      %v386 = vpack.c.b16 %v378, %v378
      %v387 = vpack.c.b16 %v379, %v379
      %v388 = vpack.c.b16 %v380, %v380
      %v389 = vpack.c.b16 %v381, %v381
      %v390 = vpack.c.b16 %v382, %v382
      %v391 = vpack.c.b16 %v383, %v383
      %v392 = vpack.c.b16 %v384, %v384
      %v394 = vshrl.u32 %v385, 16
      %v396 = vrot.slane %v394, 7
      %v397 = vshll.u32 %v385, 16
      %v399 = vor.u32 %v396, %v397
      %v400 = vrot.slane %v396, 4
      %v402 = vshrl.u32 %v386, 16
      %v404 = vrot.slane %v402, 7
      %v405 = vshll.u32 %v386, 16
      %v407 = vor.u32 %v404, %v405
      %v408 = vrot.slane %v404, 4
      %v410 = vshrl.u32 %v387, 16
      %v412 = vrot.slane %v410, 7
      %v413 = vshll.u32 %v387, 16
      %v415 = vor.u32 %v412, %v413
      %v416 = vrot.slane %v412, 4
      %v418 = vshrl.u32 %v388, 16
      %v420 = vrot.slane %v418, 7
      %v421 = vshll.u32 %v388, 16
      %v423 = vor.u32 %v420, %v421
      %v424 = vrot.slane %v420, 4
      %v426 = vshrl.u32 %v389, 16
      %v428 = vrot.slane %v426, 7
      %v429 = vshll.u32 %v389, 16
      %v431 = vor.u32 %v428, %v429
      %v432 = vrot.slane %v428, 4
      %v434 = vshrl.u32 %v390, 16
      %v436 = vrot.slane %v434, 7
      %v437 = vshll.u32 %v390, 16
      %v439 = vor.u32 %v436, %v437
      %v440 = vrot.slane %v436, 4
      %v442 = vshrl.u32 %v391, 16
      %v444 = vrot.slane %v442, 7
      %v445 = vshll.u32 %v391, 16
      %v447 = vor.u32 %v444, %v445
      %v448 = vrot.slane %v444, 4
      %v450 = vshrl.u32 %v392, 16
      %v452 = vrot.slane %v450, 7
      %v453 = vshll.u32 %v392, 16
      %v455 = vor.u32 %v452, %v453
      %v456 = vrot.slane %v452, 4
      %s473 = scalar_lea.vmem [#allocation2], 8
      %vm474 = vcmask 1043456
      %vm475 = vmand %vm474, %vm329
      %v476 = vld [vmem:[%s473] sm:$0xf]
      %v477 = vsel %vm475, %v399, %v476
      %478 = vst [vmem:[%s473] sm:$0xf] %v477
      %v479 = vld [vmem:[%s473 + $0x4] sm:$0x1]
      %v480 = vsel %vm298, %v400, %v479
      %481 = vst [vmem:[%s473 + $0x4] sm:$0x1] %v480
      %v482 = vld [vmem:[%s473 + $0x8] sm:$0xf]
      %v483 = vsel %vm475, %v407, %v482
      %484 = vst [vmem:[%s473 + $0x8] sm:$0xf] %v483
      %v485 = vld [vmem:[%s473 + $0xc] sm:$0x1]
      %v486 = vsel %vm298, %v408, %v485
      %487 = vst [vmem:[%s473 + $0xc] sm:$0x1] %v486
      %v488 = vld [vmem:[%s473 + $0x10] sm:$0xf]
      %v489 = vsel %vm475, %v415, %v488
      %490 = vst [vmem:[%s473 + $0x10] sm:$0xf] %v489
      %v491 = vld [vmem:[%s473 + $0x14] sm:$0x1]
      %v492 = vsel %vm298, %v416, %v491
      %493 = vst [vmem:[%s473 + $0x14] sm:$0x1] %v492
      %v494 = vld [vmem:[%s473 + $0x18] sm:$0xf]
      %v495 = vsel %vm475, %v423, %v494
      %496 = vst [vmem:[%s473 + $0x18] sm:$0xf] %v495
      %v497 = vld [vmem:[%s473 + $0x1c] sm:$0x1]
      %v498 = vsel %vm298, %v424, %v497
      %499 = vst [vmem:[%s473 + $0x1c] sm:$0x1] %v498
      %v500 = vld [vmem:[%s473 + $0x20] sm:$0xf]
      %v501 = vsel %vm475, %v431, %v500
      %502 = vst [vmem:[%s473 + $0x20] sm:$0xf] %v501
      %v503 = vld [vmem:[%s473 + $0x24] sm:$0x1]
      %v504 = vsel %vm298, %v432, %v503
      %505 = vst [vmem:[%s473 + $0x24] sm:$0x1] %v504
      %v506 = vld [vmem:[%s473 + $0x28] sm:$0xf]
      %v507 = vsel %vm475, %v439, %v506
      %508 = vst [vmem:[%s473 + $0x28] sm:$0xf] %v507
      %v509 = vld [vmem:[%s473 + $0x2c] sm:$0x1]
      %v510 = vsel %vm298, %v440, %v509
      %511 = vst [vmem:[%s473 + $0x2c] sm:$0x1] %v510
      %v512 = vld [vmem:[%s473 + $0x30] sm:$0xf]
      %v513 = vsel %vm475, %v447, %v512
      %514 = vst [vmem:[%s473 + $0x30] sm:$0xf] %v513
      %v515 = vld [vmem:[%s473 + $0x34] sm:$0x1]
      %v516 = vsel %vm298, %v448, %v515
      %517 = vst [vmem:[%s473 + $0x34] sm:$0x1] %v516
      %v518 = vld [vmem:[%s473 + $0x38] sm:$0xf]
      %v519 = vsel %vm475, %v455, %v518
      %520 = vst [vmem:[%s473 + $0x38] sm:$0xf] %v519
      %v521 = vld [vmem:[%s473 + $0x3c] sm:$0x1]
      %v522 = vsel %vm298, %v456, %v521
      %523 = vst [vmem:[%s473 + $0x3c] sm:$0x1] %v522
      %v524 = vld [vmem:[#allocation2] sm:$0xf]
      %v525 = vld [vmem:[#allocation2 + $0x8] sm:$0xf]
      %v526 = vld [vmem:[#allocation2 + $0x10] sm:$0xf]
      %v527 = vld [vmem:[#allocation2 + $0x18] sm:$0xf]
      %v528 = vld [vmem:[#allocation2 + $0x20] sm:$0xf]
      %v529 = vld [vmem:[#allocation2 + $0x28] sm:$0xf]
      %v530 = vld [vmem:[#allocation2 + $0x30] sm:$0xf]
      %v531 = vld [vmem:[#allocation2 + $0x38] sm:$0xf]
      %v532 = vld [vmem:[%s1] sm:$0xf]
      %v533 = vld [vmem:[%s1 + $0x4] sm:$0xf]
      %v534 = vld [vmem:[%s1 + $0x8] sm:$0xf]
      %v535 = vld [vmem:[%s1 + $0xc] sm:$0xf]
      %v536 = vld [vmem:[%s1 + $0x10] sm:$0xf]
      %v537 = vld [vmem:[%s1 + $0x14] sm:$0xf]
      %v538 = vld [vmem:[%s1 + $0x18] sm:$0xf]
      %v539 = vld [vmem:[%s1 + $0x1c] sm:$0xf]
      %v540 = vld [vmem:[%s1 + $0x20] sm:$0xf]
      %v541 = vld [vmem:[%s1 + $0x24] sm:$0xf]
      %v542 = vld [vmem:[%s1 + $0x28] sm:$0xf]
      %v543 = vld [vmem:[%s1 + $0x2c] sm:$0xf]
      %v544 = vld [vmem:[%s1 + $0x30] sm:$0xf]
      %v545 = vld [vmem:[%s1 + $0x34] sm:$0xf]
      %v546 = vld [vmem:[%s1 + $0x38] sm:$0xf]
      %v547 = vld [vmem:[%s1 + $0x3c] sm:$0xf]
      %v548 = vld [vmem:[#allocation2 + $0x4] sm:$0x1]
      %v549 = vld [vmem:[#allocation2 + $0xc] sm:$0x1]
      %v550 = vld [vmem:[#allocation2 + $0x14] sm:$0x1]
      %v551 = vld [vmem:[#allocation2 + $0x1c] sm:$0x1]
      %v552 = vld [vmem:[#allocation2 + $0x24] sm:$0x1]
      %v553 = vld [vmem:[#allocation2 + $0x2c] sm:$0x1]
      %v554 = vld [vmem:[#allocation2 + $0x34] sm:$0x1]
      %v555 = vld [vmem:[#allocation2 + $0x3c] sm:$0x1]
      %vm556 = vsmask.f32 3328
      %vm557 = vsmask.f32 7440
      %vm558 = vmor %vm556, %vm557
      %v560 = vshrl.u32 %v524, 16
      %v562 = vrot.slane %v560, 4
      %v563 = vshll.u32 %v524, 16
      %v565 = vrot.slane %v563, 5
      %v566 = vor.u32 %v562, %v565
      %v567 = vrot.slane %v566, 4
      %v569 = vshll.u32 %v548, 16
      %v571 = vrot.slane %v569, 5
      %v572 = vsel %vm558, %v567, %v571
      %v574 = vshrl.u32 %v525, 16
      %v576 = vrot.slane %v574, 4
      %v577 = vshll.u32 %v525, 16
      %v579 = vrot.slane %v577, 5
      %v580 = vor.u32 %v576, %v579
      %v581 = vrot.slane %v580, 4
      %v583 = vshll.u32 %v549, 16
      %v585 = vrot.slane %v583, 5
      %v586 = vsel %vm558, %v581, %v585
      %v588 = vshrl.u32 %v526, 16
      %v590 = vrot.slane %v588, 4
      %v591 = vshll.u32 %v526, 16
      %v593 = vrot.slane %v591, 5
      %v594 = vor.u32 %v590, %v593
      %v595 = vrot.slane %v594, 4
      %v597 = vshll.u32 %v550, 16
      %v599 = vrot.slane %v597, 5
      %v600 = vsel %vm558, %v595, %v599
      %v602 = vshrl.u32 %v527, 16
      %v604 = vrot.slane %v602, 4
      %v605 = vshll.u32 %v527, 16
      %v607 = vrot.slane %v605, 5
      %v608 = vor.u32 %v604, %v607
      %v609 = vrot.slane %v608, 4
      %v611 = vshll.u32 %v551, 16
      %v613 = vrot.slane %v611, 5
      %v614 = vsel %vm558, %v609, %v613
      %v616 = vshrl.u32 %v528, 16
      %v618 = vrot.slane %v616, 4
      %v619 = vshll.u32 %v528, 16
      %v621 = vrot.slane %v619, 5
      %v622 = vor.u32 %v618, %v621
      %v623 = vrot.slane %v622, 4
      %v625 = vshll.u32 %v552, 16
      %v627 = vrot.slane %v625, 5
      %v628 = vsel %vm558, %v623, %v627
      %v630 = vshrl.u32 %v529, 16
      %v632 = vrot.slane %v630, 4
      %v633 = vshll.u32 %v529, 16
      %v635 = vrot.slane %v633, 5
      %v636 = vor.u32 %v632, %v635
      %v637 = vrot.slane %v636, 4
      %v639 = vshll.u32 %v553, 16
      %v641 = vrot.slane %v639, 5
      %v642 = vsel %vm558, %v637, %v641
      %v644 = vshrl.u32 %v530, 16
      %v646 = vrot.slane %v644, 4
      %v647 = vshll.u32 %v530, 16
      %v649 = vrot.slane %v647, 5
      %v650 = vor.u32 %v646, %v649
      %v651 = vrot.slane %v650, 4
      %v653 = vshll.u32 %v554, 16
      %v655 = vrot.slane %v653, 5
      %v656 = vsel %vm558, %v651, %v655
      %v658 = vshrl.u32 %v531, 16
      %v660 = vrot.slane %v658, 4
      %v661 = vshll.u32 %v531, 16
      %v663 = vrot.slane %v661, 5
      %v664 = vor.u32 %v660, %v663
      %v665 = vrot.slane %v664, 4
      %v667 = vshll.u32 %v555, 16
      %v669 = vrot.slane %v667, 5
      %v670 = vsel %vm558, %v665, %v669
      %s671 = scalar_lea.vmem %s1, 64
      %v672 = vld [vmem:[%s671] sm:$0xf]
      %v673 = vld [vmem:[%s671 + $0x4] sm:$0xf]
      %v674 = vld [vmem:[%s671 + $0x8] sm:$0xf]
      %v675 = vld [vmem:[%s671 + $0xc] sm:$0xf]
      %v676 = vld [vmem:[%s671 + $0x10] sm:$0xf]
      %v677 = vld [vmem:[%s671 + $0x14] sm:$0xf]
      %v678 = vld [vmem:[%s671 + $0x18] sm:$0xf]
      %v679 = vld [vmem:[%s671 + $0x1c] sm:$0xf]
      %v680 = vld [vmem:[%s671 + $0x20] sm:$0xf]
      %v681 = vld [vmem:[%s671 + $0x24] sm:$0xf]
      %v682 = vld [vmem:[%s671 + $0x28] sm:$0xf]
      %v683 = vld [vmem:[%s671 + $0x2c] sm:$0xf]
      %v684 = vld [vmem:[%s671 + $0x30] sm:$0xf]
      %v685 = vld [vmem:[%s671 + $0x34] sm:$0xf]
      %v686 = vld [vmem:[%s671 + $0x38] sm:$0xf]
      %v687 = vld [vmem:[%s671 + $0x3c] sm:$0xf]
      %v688 = vunpack.c.l.b16 %v572
      %v689 = vunpack.c.l.b16 %v586
      %v690 = vunpack.c.l.b16 %v600
      %v691 = vunpack.c.l.b16 %v614
      %v692 = vunpack.c.l.b16 %v628
      %v693 = vunpack.c.l.b16 %v642
      %v694 = vunpack.c.l.b16 %v656
      %v695 = vunpack.c.l.b16 %v670
      %v696 = vpack.c.b16 %v689, %v688
      %v697 = vpack.c.b16 %v691, %v690
      %v698 = vpack.c.b16 %v693, %v692
      %v699 = vpack.c.b16 %v695, %v694
      %v720 = vunpack.c.l.b16 %v672
      %v721 = vunpack.c.l.b16 %v673
      %v722 = vunpack.c.l.b16 %v674
      %v723 = vunpack.c.l.b16 %v675
      %v724 = vunpack.c.l.b16 %v676
      %v725 = vunpack.c.l.b16 %v677
      %v726 = vunpack.c.l.b16 %v678
      %v727 = vunpack.c.l.b16 %v679
      %v728 = vunpack.c.l.b16 %v680
      %v729 = vunpack.c.l.b16 %v681
      %v730 = vunpack.c.l.b16 %v682
      %v731 = vunpack.c.l.b16 %v683
      %v732 = vunpack.c.l.b16 %v684
      %v733 = vunpack.c.l.b16 %v685
      %v734 = vunpack.c.l.b16 %v686
      %v735 = vunpack.c.l.b16 %v687
      %v736 = vpack.c.b16 %v721, %v720
      %v737 = vpack.c.b16 %v723, %v722
      %v738 = vpack.c.b16 %v725, %v724
      %v739 = vpack.c.b16 %v727, %v726
      %v740 = vpack.c.b16 %v729, %v728
      %v741 = vpack.c.b16 %v731, %v730
      %v742 = vpack.c.b16 %v733, %v732
      %v743 = vpack.c.b16 %v735, %v734
      %752 = vmatprep.subr.bf16.mxu0 0
      %753 = vmatpush1.bf16.msra.mxu0 %v743
      %754 = vmatprep.subr.bf16.mxu0 0
      %755 = vmatpush1.bf16.msra.mxu0 %v742
      %756 = vmatprep.subr.bf16.mxu0 0
      %757 = vmatpush1.bf16.msra.mxu0 %v741
      %758 = vmatprep.subr.bf16.mxu0 0
      %759 = vmatpush1.bf16.msra.mxu0 %v740
      %760 = vmatprep.subr.bf16.mxu0 0
      %761 = vmatpush1.bf16.msra.mxu0 %v739
      %762 = vmatprep.subr.bf16.mxu0 0
      %763 = vmatpush1.bf16.msra.mxu0 %v738
      %764 = vmatprep.subr.bf16.mxu0 0
      %765 = vmatpush1.bf16.msra.mxu0 %v737
      %766 = vmatprep.subr.bf16.mxu0 0
      %767 = vmatpush1.bf16.msra.mxu0 %v736
      %768 = vmatprep.subr.bf16.mxu0 0
      %769 = vmatpush2.bf16.msra.mxu0 0
      %770 = vmatprep.subr.bf16.mxu0 0
      %771 = vmatpush2.bf16.msra.mxu0 0
      %772 = vmatprep.subr.bf16.mxu0 0
      %773 = vmatpush2.bf16.msra.mxu0 0
      %774 = vmatprep.subr.bf16.mxu0 0
      %775 = vmatpush2.bf16.msra.mxu0 0
      %776 = vmatprep.subr.bf16.mxu0 0
      %777 = vmatpush2.bf16.msra.mxu0 0
      %778 = vmatprep.subr.bf16.mxu0 0
      %779 = vmatpush2.bf16.msra.mxu0 0
      %780 = vmatprep.subr.bf16.mxu0 0
      %781 = vmatpush2.bf16.msra.mxu0 0
      %782 = vmatprep.subr.bf16.mxu0 0
      %783 = vmatpush2.bf16.msra.mxu0 0
      %784 = vmatprep.mubr.bf16.mxu0 0
      %785 = vmatmul.mubr.bf16.gmra.mxu0 %v696
      %v786 = vpop.f32.mrf.mxu0
      %v787 = vadd.f32 0.0, %v786
      %v788 = vpop.f32.mrf.mxu0
      %v789 = vpop.f32.mrf.mxu0
      %v790 = vadd.f32 0.0, %v789
      %v791 = vpop.f32.mrf.mxu0
      %792 = vmatprep.mubr.bf16.mxu0 0
      %793 = vmatmul.mubr.bf16.gmra.mxu0 %v697
      %v794 = vpop.f32.mrf.mxu0
      %v795 = vadd.f32 0.0, %v794
      %v796 = vpop.f32.mrf.mxu0
      %v797 = vpop.f32.mrf.mxu0
      %v798 = vadd.f32 0.0, %v797
      %v799 = vpop.f32.mrf.mxu0
      %800 = vmatprep.mubr.bf16.mxu0 0
      %801 = vmatmul.mubr.bf16.gmra.mxu0 %v698
      %v802 = vpop.f32.mrf.mxu0
      %v803 = vadd.f32 0.0, %v802
      %v804 = vpop.f32.mrf.mxu0
      %v805 = vpop.f32.mrf.mxu0
      %v806 = vadd.f32 0.0, %v805
      %v807 = vpop.f32.mrf.mxu0
      %808 = vmatprep.mubr.bf16.mxu0 0
      %809 = vmatmul.mubr.bf16.gmra.mxu0 %v699
      %v810 = vpop.f32.mrf.mxu0
      %v811 = vadd.f32 0.0, %v810
      %v812 = vpop.f32.mrf.mxu0
      %v813 = vpop.f32.mrf.mxu0
      %v814 = vadd.f32 0.0, %v813
      %v815 = vpop.f32.mrf.mxu0
      %816 = vdwg.mxu0
      %v825 = vunpack.c.l.b16 %v524
      %v826 = vunpack.c.l.b16 %v525
      %v827 = vunpack.c.l.b16 %v526
      %v828 = vunpack.c.l.b16 %v527
      %v829 = vunpack.c.l.b16 %v528
      %v830 = vunpack.c.l.b16 %v529
      %v831 = vunpack.c.l.b16 %v530
      %v832 = vunpack.c.l.b16 %v531
      %v833 = vpack.c.b16 %v826, %v825
      %v834 = vpack.c.b16 %v828, %v827
      %v835 = vpack.c.b16 %v830, %v829
      %v836 = vpack.c.b16 %v832, %v831
      %v857 = vunpack.c.l.b16 %v532
      %v858 = vunpack.c.l.b16 %v533
      %v859 = vunpack.c.l.b16 %v534
      %v860 = vunpack.c.l.b16 %v535
      %v861 = vunpack.c.l.b16 %v536
      %v862 = vunpack.c.l.b16 %v537
      %v863 = vunpack.c.l.b16 %v538
      %v864 = vunpack.c.l.b16 %v539
      %v865 = vunpack.c.l.b16 %v540
      %v866 = vunpack.c.l.b16 %v541
      %v867 = vunpack.c.l.b16 %v542
      %v868 = vunpack.c.l.b16 %v543
      %v869 = vunpack.c.l.b16 %v544
      %v870 = vunpack.c.l.b16 %v545
      %v871 = vunpack.c.l.b16 %v546
      %v872 = vunpack.c.l.b16 %v547
      %v873 = vpack.c.b16 %v858, %v857
      %v874 = vpack.c.b16 %v860, %v859
      %v875 = vpack.c.b16 %v862, %v861
      %v876 = vpack.c.b16 %v864, %v863
      %v877 = vpack.c.b16 %v866, %v865
      %v878 = vpack.c.b16 %v868, %v867
      %v879 = vpack.c.b16 %v870, %v869
      %v880 = vpack.c.b16 %v872, %v871
      %889 = vmatprep.subr.bf16.mxu0 0
      %890 = vmatpush1.bf16.msra.mxu0 %v880
      %891 = vmatprep.subr.bf16.mxu0 0
      %892 = vmatpush1.bf16.msra.mxu0 %v879
      %893 = vmatprep.subr.bf16.mxu0 0
      %894 = vmatpush1.bf16.msra.mxu0 %v878
      %895 = vmatprep.subr.bf16.mxu0 0
      %896 = vmatpush1.bf16.msra.mxu0 %v877
      %897 = vmatprep.subr.bf16.mxu0 0
      %898 = vmatpush1.bf16.msra.mxu0 %v876
      %899 = vmatprep.subr.bf16.mxu0 0
      %900 = vmatpush1.bf16.msra.mxu0 %v875
      %901 = vmatprep.subr.bf16.mxu0 0
      %902 = vmatpush1.bf16.msra.mxu0 %v874
      %903 = vmatprep.subr.bf16.mxu0 0
      %904 = vmatpush1.bf16.msra.mxu0 %v873
      %905 = vmatprep.subr.bf16.mxu0 0
      %906 = vmatpush2.bf16.msra.mxu0 0
      %907 = vmatprep.subr.bf16.mxu0 0
      %908 = vmatpush2.bf16.msra.mxu0 0
      %909 = vmatprep.subr.bf16.mxu0 0
      %910 = vmatpush2.bf16.msra.mxu0 0
      %911 = vmatprep.subr.bf16.mxu0 0
      %912 = vmatpush2.bf16.msra.mxu0 0
      %913 = vmatprep.subr.bf16.mxu0 0
      %914 = vmatpush2.bf16.msra.mxu0 0
      %915 = vmatprep.subr.bf16.mxu0 0
      %916 = vmatpush2.bf16.msra.mxu0 0
      %917 = vmatprep.subr.bf16.mxu0 0
      %918 = vmatpush2.bf16.msra.mxu0 0
      %919 = vmatprep.subr.bf16.mxu0 0
      %920 = vmatpush2.bf16.msra.mxu0 0
      %921 = vmatprep.mubr.bf16.mxu0 0
      %922 = vmatmul.mubr.bf16.gmra.mxu0 %v833
      %v923 = vpop.f32.mrf.mxu0
      %v924 = vadd.f32 %v787, %v923
      %v925 = vpop.f32.mrf.mxu0
      %v926 = vpop.f32.mrf.mxu0
      %v927 = vadd.f32 %v790, %v926
      %v928 = vpop.f32.mrf.mxu0
      %929 = vmatprep.mubr.bf16.mxu0 0
      %930 = vmatmul.mubr.bf16.gmra.mxu0 %v834
      %v931 = vpop.f32.mrf.mxu0
      %v932 = vadd.f32 %v795, %v931
      %v933 = vpop.f32.mrf.mxu0
      %v934 = vpop.f32.mrf.mxu0
      %v935 = vadd.f32 %v798, %v934
      %v936 = vpop.f32.mrf.mxu0
      %937 = vmatprep.mubr.bf16.mxu0 0
      %938 = vmatmul.mubr.bf16.gmra.mxu0 %v835
      %v939 = vpop.f32.mrf.mxu0
      %v940 = vadd.f32 %v803, %v939
      %v941 = vpop.f32.mrf.mxu0
      %v942 = vpop.f32.mrf.mxu0
      %v943 = vadd.f32 %v806, %v942
      %v944 = vpop.f32.mrf.mxu0
      %945 = vmatprep.mubr.bf16.mxu0 0
      %946 = vmatmul.mubr.bf16.gmra.mxu0 %v836
      %v947 = vpop.f32.mrf.mxu0
      %v948 = vadd.f32 %v811, %v947
      %v949 = vpop.f32.mrf.mxu0
      %v950 = vpop.f32.mrf.mxu0
      %v951 = vadd.f32 %v814, %v950
      %v952 = vpop.f32.mrf.mxu0
      %953 = vdwg.mxu0
      %v954 = vld [vmem:[#allocation2] sm:$0xe]
      %v955 = vld [vmem:[#allocation2 + $0x8] sm:$0xe]
      %v956 = vld [vmem:[#allocation2 + $0x10] sm:$0xe]
      %v957 = vld [vmem:[#allocation2 + $0x18] sm:$0xe]
      %v958 = vld [vmem:[#allocation2 + $0x20] sm:$0xe]
      %v959 = vld [vmem:[#allocation2 + $0x28] sm:$0xe]
      %v960 = vld [vmem:[#allocation2 + $0x30] sm:$0xe]
      %v961 = vld [vmem:[#allocation2 + $0x38] sm:$0xe]
      %vm978 = vcmask 1042432
      %vm979 = vcmask 1046532
      %vm980 = vmor %vm978, %vm979
      %v981 = vrot.slane %v954, 5
      %v982 = vrot.slane %v981, 4
      %v983 = vrot.slane %v548, 5
      %v984 = vsel %vm980, %v982, %v983
      %v985 = vrot.slane %v955, 5
      %v986 = vrot.slane %v985, 4
      %v987 = vrot.slane %v549, 5
      %v988 = vsel %vm980, %v986, %v987
      %v989 = vrot.slane %v956, 5
      %v990 = vrot.slane %v989, 4
      %v991 = vrot.slane %v550, 5
      %v992 = vsel %vm980, %v990, %v991
      %v993 = vrot.slane %v957, 5
      %v994 = vrot.slane %v993, 4
      %v995 = vrot.slane %v551, 5
      %v996 = vsel %vm980, %v994, %v995
      %v997 = vrot.slane %v958, 5
      %v998 = vrot.slane %v997, 4
      %v999 = vrot.slane %v552, 5
      %v1000 = vsel %vm980, %v998, %v999
      %v1001 = vrot.slane %v959, 5
      %v1002 = vrot.slane %v1001, 4
      %v1003 = vrot.slane %v553, 5
      %v1004 = vsel %vm980, %v1002, %v1003
      %v1005 = vrot.slane %v960, 5
      %v1006 = vrot.slane %v1005, 4
      %v1007 = vrot.slane %v554, 5
      %v1008 = vsel %vm980, %v1006, %v1007
      %v1009 = vrot.slane %v961, 5
      %v1010 = vrot.slane %v1009, 4
      %v1011 = vrot.slane %v555, 5
      %v1012 = vsel %vm980, %v1010, %v1011
      %s1013 = scalar_lea.vmem %s1, 128
      %v1014 = vld [vmem:[%s1013] sm:$0xf]
      %v1015 = vld [vmem:[%s1013 + $0x4] sm:$0xf]
      %v1016 = vld [vmem:[%s1013 + $0x8] sm:$0xf]
      %v1017 = vld [vmem:[%s1013 + $0xc] sm:$0xf]
      %v1018 = vld [vmem:[%s1013 + $0x10] sm:$0xf]
      %v1019 = vld [vmem:[%s1013 + $0x14] sm:$0xf]
      %v1020 = vld [vmem:[%s1013 + $0x18] sm:$0xf]
      %v1021 = vld [vmem:[%s1013 + $0x1c] sm:$0xf]
      %v1022 = vld [vmem:[%s1013 + $0x20] sm:$0xf]
      %v1023 = vld [vmem:[%s1013 + $0x24] sm:$0xf]
      %v1024 = vld [vmem:[%s1013 + $0x28] sm:$0xf]
      %v1025 = vld [vmem:[%s1013 + $0x2c] sm:$0xf]
      %v1026 = vld [vmem:[%s1013 + $0x30] sm:$0xf]
      %v1027 = vld [vmem:[%s1013 + $0x34] sm:$0xf]
      %v1028 = vld [vmem:[%s1013 + $0x38] sm:$0xf]
      %v1029 = vld [vmem:[%s1013 + $0x3c] sm:$0xf]
      %v1030 = vunpack.c.l.b16 %v984
      %v1031 = vunpack.c.l.b16 %v988
      %v1032 = vunpack.c.l.b16 %v992
      %v1033 = vunpack.c.l.b16 %v996
      %v1034 = vunpack.c.l.b16 %v1000
      %v1035 = vunpack.c.l.b16 %v1004
      %v1036 = vunpack.c.l.b16 %v1008
      %v1037 = vunpack.c.l.b16 %v1012
      %v1038 = vpack.c.b16 %v1031, %v1030
      %v1039 = vpack.c.b16 %v1033, %v1032
      %v1040 = vpack.c.b16 %v1035, %v1034
      %v1041 = vpack.c.b16 %v1037, %v1036
      %v1062 = vunpack.c.l.b16 %v1014
      %v1063 = vunpack.c.l.b16 %v1015
      %v1064 = vunpack.c.l.b16 %v1016
      %v1065 = vunpack.c.l.b16 %v1017
      %v1066 = vunpack.c.l.b16 %v1018
      %v1067 = vunpack.c.l.b16 %v1019
      %v1068 = vunpack.c.l.b16 %v1020
      %v1069 = vunpack.c.l.b16 %v1021
      %v1070 = vunpack.c.l.b16 %v1022
      %v1071 = vunpack.c.l.b16 %v1023
      %v1072 = vunpack.c.l.b16 %v1024
      %v1073 = vunpack.c.l.b16 %v1025
      %v1074 = vunpack.c.l.b16 %v1026
      %v1075 = vunpack.c.l.b16 %v1027
      %v1076 = vunpack.c.l.b16 %v1028
      %v1077 = vunpack.c.l.b16 %v1029
      %v1078 = vpack.c.b16 %v1063, %v1062
      %v1079 = vpack.c.b16 %v1065, %v1064
      %v1080 = vpack.c.b16 %v1067, %v1066
      %v1081 = vpack.c.b16 %v1069, %v1068
      %v1082 = vpack.c.b16 %v1071, %v1070
      %v1083 = vpack.c.b16 %v1073, %v1072
      %v1084 = vpack.c.b16 %v1075, %v1074
      %v1085 = vpack.c.b16 %v1077, %v1076
      %1094 = vmatprep.subr.bf16.mxu0 0
      %1095 = vmatpush1.bf16.msra.mxu0 %v1085
      %1096 = vmatprep.subr.bf16.mxu0 0
      %1097 = vmatpush1.bf16.msra.mxu0 %v1084
      %1098 = vmatprep.subr.bf16.mxu0 0
      %1099 = vmatpush1.bf16.msra.mxu0 %v1083
      %1100 = vmatprep.subr.bf16.mxu0 0
      %1101 = vmatpush1.bf16.msra.mxu0 %v1082
      %1102 = vmatprep.subr.bf16.mxu0 0
      %1103 = vmatpush1.bf16.msra.mxu0 %v1081
      %1104 = vmatprep.subr.bf16.mxu0 0
      %1105 = vmatpush1.bf16.msra.mxu0 %v1080
      %1106 = vmatprep.subr.bf16.mxu0 0
      %1107 = vmatpush1.bf16.msra.mxu0 %v1079
      %1108 = vmatprep.subr.bf16.mxu0 0
      %1109 = vmatpush1.bf16.msra.mxu0 %v1078
      %1110 = vmatprep.subr.bf16.mxu0 0
      %1111 = vmatpush2.bf16.msra.mxu0 0
      %1112 = vmatprep.subr.bf16.mxu0 0
      %1113 = vmatpush2.bf16.msra.mxu0 0
      %1114 = vmatprep.subr.bf16.mxu0 0
      %1115 = vmatpush2.bf16.msra.mxu0 0
      %1116 = vmatprep.subr.bf16.mxu0 0
      %1117 = vmatpush2.bf16.msra.mxu0 0
      %1118 = vmatprep.subr.bf16.mxu0 0
      %1119 = vmatpush2.bf16.msra.mxu0 0
      %1120 = vmatprep.subr.bf16.mxu0 0
      %1121 = vmatpush2.bf16.msra.mxu0 0
      %1122 = vmatprep.subr.bf16.mxu0 0
      %1123 = vmatpush2.bf16.msra.mxu0 0
      %1124 = vmatprep.subr.bf16.mxu0 0
      %1125 = vmatpush2.bf16.msra.mxu0 0
      %1126 = vmatprep.mubr.bf16.mxu0 0
      %1127 = vmatmul.mubr.bf16.gmra.mxu0 %v1038
      %v1128 = vpop.f32.mrf.mxu0
      %v1129 = vadd.f32 0.0, %v1128
      %v1130 = vpop.f32.mrf.mxu0
      %v1131 = vpop.f32.mrf.mxu0
      %v1132 = vadd.f32 0.0, %v1131
      %v1133 = vpop.f32.mrf.mxu0
      %1134 = vmatprep.mubr.bf16.mxu0 0
      %1135 = vmatmul.mubr.bf16.gmra.mxu0 %v1039
      %v1136 = vpop.f32.mrf.mxu0
      %v1137 = vadd.f32 0.0, %v1136
      %v1138 = vpop.f32.mrf.mxu0
      %v1139 = vpop.f32.mrf.mxu0
      %v1140 = vadd.f32 0.0, %v1139
      %v1141 = vpop.f32.mrf.mxu0
      %1142 = vmatprep.mubr.bf16.mxu0 0
      %1143 = vmatmul.mubr.bf16.gmra.mxu0 %v1040
      %v1144 = vpop.f32.mrf.mxu0
      %v1145 = vadd.f32 0.0, %v1144
      %v1146 = vpop.f32.mrf.mxu0
      %v1147 = vpop.f32.mrf.mxu0
      %v1148 = vadd.f32 0.0, %v1147
      %v1149 = vpop.f32.mrf.mxu0
      %1150 = vmatprep.mubr.bf16.mxu0 0
      %1151 = vmatmul.mubr.bf16.gmra.mxu0 %v1041
      %v1152 = vpop.f32.mrf.mxu0
      %v1153 = vadd.f32 0.0, %v1152
      %v1154 = vpop.f32.mrf.mxu0
      %v1155 = vpop.f32.mrf.mxu0
      %v1156 = vadd.f32 0.0, %v1155
      %v1157 = vpop.f32.mrf.mxu0
      %1158 = vdwg.mxu0
      %v1159 = vadd.f32 %v924, %v1129
      %v1160 = vadd.f32 %v927, %v1132
      %v1161 = vadd.f32 %v932, %v1137
      %v1162 = vadd.f32 %v935, %v1140
      %v1163 = vadd.f32 %v940, %v1145
      %v1164 = vadd.f32 %v943, %v1148
      %v1165 = vadd.f32 %v948, %v1153
      %v1166 = vadd.f32 %v951, %v1156
      %v1167 = vld [vmem:[%s473] sm:$0xf]
      %v1168 = vld [vmem:[%s473 + $0x8] sm:$0xf]
      %v1169 = vld [vmem:[%s473 + $0x10] sm:$0xf]
      %v1170 = vld [vmem:[%s473 + $0x18] sm:$0xf]
      %v1171 = vld [vmem:[%s473 + $0x20] sm:$0xf]
      %v1172 = vld [vmem:[%s473 + $0x28] sm:$0xf]
      %v1173 = vld [vmem:[%s473 + $0x30] sm:$0xf]
      %v1174 = vld [vmem:[%s473 + $0x38] sm:$0xf]
      %s1175 = scalar_lea.vmem %s1, 192
      %v1176 = vld [vmem:[%s1175] sm:$0xf]
      %v1177 = vld [vmem:[%s1175 + $0x4] sm:$0xf]
      %v1178 = vld [vmem:[%s1175 + $0x8] sm:$0xf]
      %v1179 = vld [vmem:[%s1175 + $0xc] sm:$0xf]
      %v1180 = vld [vmem:[%s1175 + $0x10] sm:$0xf]
      %v1181 = vld [vmem:[%s1175 + $0x14] sm:$0xf]
      %v1182 = vld [vmem:[%s1175 + $0x18] sm:$0xf]
      %v1183 = vld [vmem:[%s1175 + $0x1c] sm:$0xf]
      %v1184 = vld [vmem:[%s1175 + $0x20] sm:$0xf]
      %v1185 = vld [vmem:[%s1175 + $0x24] sm:$0xf]
      %v1186 = vld [vmem:[%s1175 + $0x28] sm:$0xf]
      %v1187 = vld [vmem:[%s1175 + $0x2c] sm:$0xf]
      %v1188 = vld [vmem:[%s1175 + $0x30] sm:$0xf]
      %v1189 = vld [vmem:[%s1175 + $0x34] sm:$0xf]
      %v1190 = vld [vmem:[%s1175 + $0x38] sm:$0xf]
      %v1191 = vld [vmem:[%s1175 + $0x3c] sm:$0xf]
      %v1200 = vunpack.c.l.b16 %v1167
      %v1201 = vunpack.c.l.b16 %v1168
      %v1202 = vunpack.c.l.b16 %v1169
      %v1203 = vunpack.c.l.b16 %v1170
      %v1204 = vunpack.c.l.b16 %v1171
      %v1205 = vunpack.c.l.b16 %v1172
      %v1206 = vunpack.c.l.b16 %v1173
      %v1207 = vunpack.c.l.b16 %v1174
      %v1208 = vpack.c.b16 %v1201, %v1200
      %v1209 = vpack.c.b16 %v1203, %v1202
      %v1210 = vpack.c.b16 %v1205, %v1204
      %v1211 = vpack.c.b16 %v1207, %v1206
      %v1232 = vunpack.c.l.b16 %v1176
      %v1233 = vunpack.c.l.b16 %v1177
      %v1234 = vunpack.c.l.b16 %v1178
      %v1235 = vunpack.c.l.b16 %v1179
      %v1236 = vunpack.c.l.b16 %v1180
      %v1237 = vunpack.c.l.b16 %v1181
      %v1238 = vunpack.c.l.b16 %v1182
      %v1239 = vunpack.c.l.b16 %v1183
      %v1240 = vunpack.c.l.b16 %v1184
      %v1241 = vunpack.c.l.b16 %v1185
      %v1242 = vunpack.c.l.b16 %v1186
      %v1243 = vunpack.c.l.b16 %v1187
      %v1244 = vunpack.c.l.b16 %v1188
      %v1245 = vunpack.c.l.b16 %v1189
      %v1246 = vunpack.c.l.b16 %v1190
      %v1247 = vunpack.c.l.b16 %v1191
      %v1248 = vpack.c.b16 %v1233, %v1232
      %v1249 = vpack.c.b16 %v1235, %v1234
      %v1250 = vpack.c.b16 %v1237, %v1236
      %v1251 = vpack.c.b16 %v1239, %v1238
      %v1252 = vpack.c.b16 %v1241, %v1240
      %v1253 = vpack.c.b16 %v1243, %v1242
      %v1254 = vpack.c.b16 %v1245, %v1244
      %v1255 = vpack.c.b16 %v1247, %v1246
      %1264 = vmatprep.subr.bf16.mxu0 0
      %1265 = vmatpush1.bf16.msra.mxu0 %v1255
      %1266 = vmatprep.subr.bf16.mxu0 0
      %1267 = vmatpush1.bf16.msra.mxu0 %v1254
      %1268 = vmatprep.subr.bf16.mxu0 0
      %1269 = vmatpush1.bf16.msra.mxu0 %v1253
      %1270 = vmatprep.subr.bf16.mxu0 0
      %1271 = vmatpush1.bf16.msra.mxu0 %v1252
      %1272 = vmatprep.subr.bf16.mxu0 0
      %1273 = vmatpush1.bf16.msra.mxu0 %v1251
      %1274 = vmatprep.subr.bf16.mxu0 0
      %1275 = vmatpush1.bf16.msra.mxu0 %v1250
      %1276 = vmatprep.subr.bf16.mxu0 0
      %1277 = vmatpush1.bf16.msra.mxu0 %v1249
      %1278 = vmatprep.subr.bf16.mxu0 0
      %1279 = vmatpush1.bf16.msra.mxu0 %v1248
      %1280 = vmatprep.subr.bf16.mxu0 0
      %1281 = vmatpush2.bf16.msra.mxu0 0
      %1282 = vmatprep.subr.bf16.mxu0 0
      %1283 = vmatpush2.bf16.msra.mxu0 0
      %1284 = vmatprep.subr.bf16.mxu0 0
      %1285 = vmatpush2.bf16.msra.mxu0 0
      %1286 = vmatprep.subr.bf16.mxu0 0
      %1287 = vmatpush2.bf16.msra.mxu0 0
      %1288 = vmatprep.subr.bf16.mxu0 0
      %1289 = vmatpush2.bf16.msra.mxu0 0
      %1290 = vmatprep.subr.bf16.mxu0 0
      %1291 = vmatpush2.bf16.msra.mxu0 0
      %1292 = vmatprep.subr.bf16.mxu0 0
      %1293 = vmatpush2.bf16.msra.mxu0 0
      %1294 = vmatprep.subr.bf16.mxu0 0
      %1295 = vmatpush2.bf16.msra.mxu0 0
      %1296 = vmatprep.mubr.bf16.mxu0 0
      %1297 = vmatmul.mubr.bf16.gmra.mxu0 %v1208
      %v1298 = vpop.f32.mrf.mxu0
      %v1299 = vadd.f32 0.0, %v1298
      %v1300 = vpop.f32.mrf.mxu0
      %v1301 = vpop.f32.mrf.mxu0
      %v1302 = vadd.f32 0.0, %v1301
      %v1303 = vpop.f32.mrf.mxu0
      %1304 = vmatprep.mubr.bf16.mxu0 0
      %1305 = vmatmul.mubr.bf16.gmra.mxu0 %v1209
      %v1306 = vpop.f32.mrf.mxu0
      %v1307 = vadd.f32 0.0, %v1306
      %v1308 = vpop.f32.mrf.mxu0
      %v1309 = vpop.f32.mrf.mxu0
      %v1310 = vadd.f32 0.0, %v1309
      %v1311 = vpop.f32.mrf.mxu0
      %1312 = vmatprep.mubr.bf16.mxu0 0
      %1313 = vmatmul.mubr.bf16.gmra.mxu0 %v1210
      %v1314 = vpop.f32.mrf.mxu0
      %v1315 = vadd.f32 0.0, %v1314
      %v1316 = vpop.f32.mrf.mxu0
      %v1317 = vpop.f32.mrf.mxu0
      %v1318 = vadd.f32 0.0, %v1317
      %v1319 = vpop.f32.mrf.mxu0
      %1320 = vmatprep.mubr.bf16.mxu0 0
      %1321 = vmatmul.mubr.bf16.gmra.mxu0 %v1211
      %v1322 = vpop.f32.mrf.mxu0
      %v1323 = vadd.f32 0.0, %v1322
      %v1324 = vpop.f32.mrf.mxu0
      %v1325 = vpop.f32.mrf.mxu0
      %v1326 = vadd.f32 0.0, %v1325
      %v1327 = vpop.f32.mrf.mxu0
      %1328 = vdwg.mxu0
      %v1329 = vadd.f32 %v1159, %v1299
      %v1330 = vadd.f32 %v1160, %v1302
      %v1331 = vadd.f32 %v1161, %v1307
      %v1332 = vadd.f32 %v1162, %v1310
      %v1333 = vadd.f32 %v1163, %v1315
      %v1334 = vadd.f32 %v1164, %v1318
      %v1335 = vadd.f32 %v1165, %v1323
      %v1336 = vadd.f32 %v1166, %v1326
      %v1337 = vld [vmem:[%s473] sm:$0xf]
      %v1338 = vld [vmem:[%s473 + $0x4] sm:$0x1]
      %v1339 = vld [vmem:[%s473 + $0x8] sm:$0xf]
      %v1340 = vld [vmem:[%s473 + $0xc] sm:$0x1]
      %v1341 = vld [vmem:[%s473 + $0x10] sm:$0xf]
      %v1342 = vld [vmem:[%s473 + $0x14] sm:$0x1]
      %v1343 = vld [vmem:[%s473 + $0x18] sm:$0xf]
      %v1344 = vld [vmem:[%s473 + $0x1c] sm:$0x1]
      %v1345 = vld [vmem:[%s473 + $0x20] sm:$0xf]
      %v1346 = vld [vmem:[%s473 + $0x24] sm:$0x1]
      %v1347 = vld [vmem:[%s473 + $0x28] sm:$0xf]
      %v1348 = vld [vmem:[%s473 + $0x2c] sm:$0x1]
      %v1349 = vld [vmem:[%s473 + $0x30] sm:$0xf]
      %v1350 = vld [vmem:[%s473 + $0x34] sm:$0x1]
      %v1351 = vld [vmem:[%s473 + $0x38] sm:$0xf]
      %v1352 = vld [vmem:[%s473 + $0x3c] sm:$0x1]
      %v1354 = vshrl.u32 %v1337, 16
      %v1356 = vrot.slane %v1354, 4
      %v1357 = vshll.u32 %v1337, 16
      %v1359 = vrot.slane %v1357, 5
      %v1360 = vor.u32 %v1356, %v1359
      %v1361 = vrot.slane %v1360, 4
      %v1363 = vshll.u32 %v1338, 16
      %v1365 = vrot.slane %v1363, 5
      %v1366 = vsel %vm558, %v1361, %v1365
      %v1368 = vshrl.u32 %v1339, 16
      %v1370 = vrot.slane %v1368, 4
      %v1371 = vshll.u32 %v1339, 16
      %v1373 = vrot.slane %v1371, 5
      %v1374 = vor.u32 %v1370, %v1373
      %v1375 = vrot.slane %v1374, 4
      %v1377 = vshll.u32 %v1340, 16
      %v1379 = vrot.slane %v1377, 5
      %v1380 = vsel %vm558, %v1375, %v1379
      %v1382 = vshrl.u32 %v1341, 16
      %v1384 = vrot.slane %v1382, 4
      %v1385 = vshll.u32 %v1341, 16
      %v1387 = vrot.slane %v1385, 5
      %v1388 = vor.u32 %v1384, %v1387
      %v1389 = vrot.slane %v1388, 4
      %v1391 = vshll.u32 %v1342, 16
      %v1393 = vrot.slane %v1391, 5
      %v1394 = vsel %vm558, %v1389, %v1393
      %v1396 = vshrl.u32 %v1343, 16
      %v1398 = vrot.slane %v1396, 4
      %v1399 = vshll.u32 %v1343, 16
      %v1401 = vrot.slane %v1399, 5
      %v1402 = vor.u32 %v1398, %v1401
      %v1403 = vrot.slane %v1402, 4
      %v1405 = vshll.u32 %v1344, 16
      %v1407 = vrot.slane %v1405, 5
      %v1408 = vsel %vm558, %v1403, %v1407
      %v1410 = vshrl.u32 %v1345, 16
      %v1412 = vrot.slane %v1410, 4
      %v1413 = vshll.u32 %v1345, 16
      %v1415 = vrot.slane %v1413, 5
      %v1416 = vor.u32 %v1412, %v1415
      %v1417 = vrot.slane %v1416, 4
      %v1419 = vshll.u32 %v1346, 16
      %v1421 = vrot.slane %v1419, 5
      %v1422 = vsel %vm558, %v1417, %v1421
      %v1424 = vshrl.u32 %v1347, 16
      %v1426 = vrot.slane %v1424, 4
      %v1427 = vshll.u32 %v1347, 16
      %v1429 = vrot.slane %v1427, 5
      %v1430 = vor.u32 %v1426, %v1429
      %v1431 = vrot.slane %v1430, 4
      %v1433 = vshll.u32 %v1348, 16
      %v1435 = vrot.slane %v1433, 5
      %v1436 = vsel %vm558, %v1431, %v1435
      %v1438 = vshrl.u32 %v1349, 16
      %v1440 = vrot.slane %v1438, 4
      %v1441 = vshll.u32 %v1349, 16
      %v1443 = vrot.slane %v1441, 5
      %v1444 = vor.u32 %v1440, %v1443
      %v1445 = vrot.slane %v1444, 4
      %v1447 = vshll.u32 %v1350, 16
      %v1449 = vrot.slane %v1447, 5
      %v1450 = vsel %vm558, %v1445, %v1449
      %v1452 = vshrl.u32 %v1351, 16
      %v1454 = vrot.slane %v1452, 4
      %v1455 = vshll.u32 %v1351, 16
      %v1457 = vrot.slane %v1455, 5
      %v1458 = vor.u32 %v1454, %v1457
      %v1459 = vrot.slane %v1458, 4
      %v1461 = vshll.u32 %v1352, 16
      %v1463 = vrot.slane %v1461, 5
      %v1464 = vsel %vm558, %v1459, %v1463
      %s1465 = scalar_lea.vmem %s1, 256
      %v1466 = vld [vmem:[%s1465] sm:$0xf]
      %v1467 = vld [vmem:[%s1465 + $0x4] sm:$0xf]
      %v1468 = vld [vmem:[%s1465 + $0x8] sm:$0xf]
      %v1469 = vld [vmem:[%s1465 + $0xc] sm:$0xf]
      %v1470 = vld [vmem:[%s1465 + $0x10] sm:$0xf]
      %v1471 = vld [vmem:[%s1465 + $0x14] sm:$0xf]
      %v1472 = vld [vmem:[%s1465 + $0x18] sm:$0xf]
      %v1473 = vld [vmem:[%s1465 + $0x1c] sm:$0xf]
      %v1474 = vld [vmem:[%s1465 + $0x20] sm:$0xf]
      %v1475 = vld [vmem:[%s1465 + $0x24] sm:$0xf]
      %v1476 = vld [vmem:[%s1465 + $0x28] sm:$0xf]
      %v1477 = vld [vmem:[%s1465 + $0x2c] sm:$0xf]
      %v1478 = vld [vmem:[%s1465 + $0x30] sm:$0xf]
      %v1479 = vld [vmem:[%s1465 + $0x34] sm:$0xf]
      %v1480 = vld [vmem:[%s1465 + $0x38] sm:$0xf]
      %v1481 = vld [vmem:[%s1465 + $0x3c] sm:$0xf]
      %v1482 = vunpack.c.l.b16 %v1366
      %v1483 = vunpack.c.l.b16 %v1380
      %v1484 = vunpack.c.l.b16 %v1394
      %v1485 = vunpack.c.l.b16 %v1408
      %v1486 = vunpack.c.l.b16 %v1422
      %v1487 = vunpack.c.l.b16 %v1436
      %v1488 = vunpack.c.l.b16 %v1450
      %v1489 = vunpack.c.l.b16 %v1464
      %v1490 = vpack.c.b16 %v1483, %v1482
      %v1491 = vpack.c.b16 %v1485, %v1484
      %v1492 = vpack.c.b16 %v1487, %v1486
      %v1493 = vpack.c.b16 %v1489, %v1488
      %v1514 = vunpack.c.l.b16 %v1466
      %v1515 = vunpack.c.l.b16 %v1467
      %v1516 = vunpack.c.l.b16 %v1468
      %v1517 = vunpack.c.l.b16 %v1469
      %v1518 = vunpack.c.l.b16 %v1470
      %v1519 = vunpack.c.l.b16 %v1471
      %v1520 = vunpack.c.l.b16 %v1472
      %v1521 = vunpack.c.l.b16 %v1473
      %v1522 = vunpack.c.l.b16 %v1474
      %v1523 = vunpack.c.l.b16 %v1475
      %v1524 = vunpack.c.l.b16 %v1476
      %v1525 = vunpack.c.l.b16 %v1477
      %v1526 = vunpack.c.l.b16 %v1478
      %v1527 = vunpack.c.l.b16 %v1479
      %v1528 = vunpack.c.l.b16 %v1480
      %v1529 = vunpack.c.l.b16 %v1481
      %v1530 = vpack.c.b16 %v1515, %v1514
      %v1531 = vpack.c.b16 %v1517, %v1516
      %v1532 = vpack.c.b16 %v1519, %v1518
      %v1533 = vpack.c.b16 %v1521, %v1520
      %v1534 = vpack.c.b16 %v1523, %v1522
      %v1535 = vpack.c.b16 %v1525, %v1524
      %v1536 = vpack.c.b16 %v1527, %v1526
      %v1537 = vpack.c.b16 %v1529, %v1528
      %1546 = vmatprep.subr.bf16.mxu0 0
      %1547 = vmatpush1.bf16.msra.mxu0 %v1537
      %1548 = vmatprep.subr.bf16.mxu0 0
      %1549 = vmatpush1.bf16.msra.mxu0 %v1536
      %1550 = vmatprep.subr.bf16.mxu0 0
      %1551 = vmatpush1.bf16.msra.mxu0 %v1535
      %1552 = vmatprep.subr.bf16.mxu0 0
      %1553 = vmatpush1.bf16.msra.mxu0 %v1534
      %1554 = vmatprep.subr.bf16.mxu0 0
      %1555 = vmatpush1.bf16.msra.mxu0 %v1533
      %1556 = vmatprep.subr.bf16.mxu0 0
      %1557 = vmatpush1.bf16.msra.mxu0 %v1532
      %1558 = vmatprep.subr.bf16.mxu0 0
      %1559 = vmatpush1.bf16.msra.mxu0 %v1531
      %1560 = vmatprep.subr.bf16.mxu0 0
      %1561 = vmatpush1.bf16.msra.mxu0 %v1530
      %1562 = vmatprep.subr.bf16.mxu0 0
      %1563 = vmatpush2.bf16.msra.mxu0 0
      %1564 = vmatprep.subr.bf16.mxu0 0
      %1565 = vmatpush2.bf16.msra.mxu0 0
      %1566 = vmatprep.subr.bf16.mxu0 0
      %1567 = vmatpush2.bf16.msra.mxu0 0
      %1568 = vmatprep.subr.bf16.mxu0 0
      %1569 = vmatpush2.bf16.msra.mxu0 0
      %1570 = vmatprep.subr.bf16.mxu0 0
      %1571 = vmatpush2.bf16.msra.mxu0 0
      %1572 = vmatprep.subr.bf16.mxu0 0
      %1573 = vmatpush2.bf16.msra.mxu0 0
      %1574 = vmatprep.subr.bf16.mxu0 0
      %1575 = vmatpush2.bf16.msra.mxu0 0
      %1576 = vmatprep.subr.bf16.mxu0 0
      %1577 = vmatpush2.bf16.msra.mxu0 0
      %1578 = vmatprep.mubr.bf16.mxu0 0
      %1579 = vmatmul.mubr.bf16.gmra.mxu0 %v1490
      %v1580 = vpop.f32.mrf.mxu0
      %v1581 = vadd.f32 0.0, %v1580
      %v1582 = vpop.f32.mrf.mxu0
      %v1583 = vpop.f32.mrf.mxu0
      %v1584 = vadd.f32 0.0, %v1583
      %v1585 = vpop.f32.mrf.mxu0
      %1586 = vmatprep.mubr.bf16.mxu0 0
      %1587 = vmatmul.mubr.bf16.gmra.mxu0 %v1491
      %v1588 = vpop.f32.mrf.mxu0
      %v1589 = vadd.f32 0.0, %v1588
      %v1590 = vpop.f32.mrf.mxu0
      %v1591 = vpop.f32.mrf.mxu0
      %v1592 = vadd.f32 0.0, %v1591
      %v1593 = vpop.f32.mrf.mxu0
      %1594 = vmatprep.mubr.bf16.mxu0 0
      %1595 = vmatmul.mubr.bf16.gmra.mxu0 %v1492
      %v1596 = vpop.f32.mrf.mxu0
      %v1597 = vadd.f32 0.0, %v1596
      %v1598 = vpop.f32.mrf.mxu0
      %v1599 = vpop.f32.mrf.mxu0
      %v1600 = vadd.f32 0.0, %v1599
      %v1601 = vpop.f32.mrf.mxu0
      %1602 = vmatprep.mubr.bf16.mxu0 0
      %1603 = vmatmul.mubr.bf16.gmra.mxu0 %v1493
      %v1604 = vpop.f32.mrf.mxu0
      %v1605 = vadd.f32 0.0, %v1604
      %v1606 = vpop.f32.mrf.mxu0
      %v1607 = vpop.f32.mrf.mxu0
      %v1608 = vadd.f32 0.0, %v1607
      %v1609 = vpop.f32.mrf.mxu0
      %1610 = vdwg.mxu0
      %v1611 = vadd.f32 %v1329, %v1581
      %v1612 = vadd.f32 %v1330, %v1584
      %v1613 = vadd.f32 %v1331, %v1589
      %v1614 = vadd.f32 %v1332, %v1592
      %v1615 = vadd.f32 %v1333, %v1597
      %v1616 = vadd.f32 %v1334, %v1600
      %v1617 = vadd.f32 %v1335, %v1605
      %v1618 = vadd.f32 %v1336, %v1608
      %v1619 = vld [vmem:[%s473] sm:$0xe]
      %v1620 = vld [vmem:[%s473 + $0x8] sm:$0xe]
      %v1621 = vld [vmem:[%s473 + $0x10] sm:$0xe]
      %v1622 = vld [vmem:[%s473 + $0x18] sm:$0xe]
      %v1623 = vld [vmem:[%s473 + $0x20] sm:$0xe]
      %v1624 = vld [vmem:[%s473 + $0x28] sm:$0xe]
      %v1625 = vld [vmem:[%s473 + $0x30] sm:$0xe]
      %v1626 = vld [vmem:[%s473 + $0x38] sm:$0xe]
      %v1643 = vrot.slane %v1619, 5
      %v1644 = vrot.slane %v1643, 4
      %v1645 = vrot.slane %v1338, 5
      %v1646 = vsel %vm980, %v1644, %v1645
      %v1647 = vrot.slane %v1620, 5
      %v1648 = vrot.slane %v1647, 4
      %v1649 = vrot.slane %v1340, 5
      %v1650 = vsel %vm980, %v1648, %v1649
      %v1651 = vrot.slane %v1621, 5
      %v1652 = vrot.slane %v1651, 4
      %v1653 = vrot.slane %v1342, 5
      %v1654 = vsel %vm980, %v1652, %v1653
      %v1655 = vrot.slane %v1622, 5
      %v1656 = vrot.slane %v1655, 4
      %v1657 = vrot.slane %v1344, 5
      %v1658 = vsel %vm980, %v1656, %v1657
      %v1659 = vrot.slane %v1623, 5
      %v1660 = vrot.slane %v1659, 4
      %v1661 = vrot.slane %v1346, 5
      %v1662 = vsel %vm980, %v1660, %v1661
      %v1663 = vrot.slane %v1624, 5
      %v1664 = vrot.slane %v1663, 4
      %v1665 = vrot.slane %v1348, 5
      %v1666 = vsel %vm980, %v1664, %v1665
      %v1667 = vrot.slane %v1625, 5
      %v1668 = vrot.slane %v1667, 4
      %v1669 = vrot.slane %v1350, 5
      %v1670 = vsel %vm980, %v1668, %v1669
      %v1671 = vrot.slane %v1626, 5
      %v1672 = vrot.slane %v1671, 4
      %v1673 = vrot.slane %v1352, 5
      %v1674 = vsel %vm980, %v1672, %v1673
      %s1675 = scalar_lea.vmem %s1, 320
      %v1676 = vld [vmem:[%s1675] sm:$0xf]
      %v1677 = vld [vmem:[%s1675 + $0x4] sm:$0xf]
      %v1678 = vld [vmem:[%s1675 + $0x8] sm:$0xf]
      %v1679 = vld [vmem:[%s1675 + $0xc] sm:$0xf]
      %v1680 = vld [vmem:[%s1675 + $0x10] sm:$0xf]
      %v1681 = vld [vmem:[%s1675 + $0x14] sm:$0xf]
      %v1682 = vld [vmem:[%s1675 + $0x18] sm:$0xf]
      %v1683 = vld [vmem:[%s1675 + $0x1c] sm:$0xf]
      %v1684 = vld [vmem:[%s1675 + $0x20] sm:$0xf]
      %v1685 = vld [vmem:[%s1675 + $0x24] sm:$0xf]
      %v1686 = vld [vmem:[%s1675 + $0x28] sm:$0xf]
      %v1687 = vld [vmem:[%s1675 + $0x2c] sm:$0xf]
      %v1688 = vld [vmem:[%s1675 + $0x30] sm:$0xf]
      %v1689 = vld [vmem:[%s1675 + $0x34] sm:$0xf]
      %v1690 = vld [vmem:[%s1675 + $0x38] sm:$0xf]
      %v1691 = vld [vmem:[%s1675 + $0x3c] sm:$0xf]
      %v1692 = vunpack.c.l.b16 %v1646
      %v1693 = vunpack.c.l.b16 %v1650
      %v1694 = vunpack.c.l.b16 %v1654
      %v1695 = vunpack.c.l.b16 %v1658
      %v1696 = vunpack.c.l.b16 %v1662
      %v1697 = vunpack.c.l.b16 %v1666
      %v1698 = vunpack.c.l.b16 %v1670
      %v1699 = vunpack.c.l.b16 %v1674
      %v1700 = vpack.c.b16 %v1693, %v1692
      %v1701 = vpack.c.b16 %v1695, %v1694
      %v1702 = vpack.c.b16 %v1697, %v1696
      %v1703 = vpack.c.b16 %v1699, %v1698
      %v1724 = vunpack.c.l.b16 %v1676
      %v1725 = vunpack.c.l.b16 %v1677
      %v1726 = vunpack.c.l.b16 %v1678
      %v1727 = vunpack.c.l.b16 %v1679
      %v1728 = vunpack.c.l.b16 %v1680
      %v1729 = vunpack.c.l.b16 %v1681
      %v1730 = vunpack.c.l.b16 %v1682
      %v1731 = vunpack.c.l.b16 %v1683
      %v1732 = vunpack.c.l.b16 %v1684
      %v1733 = vunpack.c.l.b16 %v1685
      %v1734 = vunpack.c.l.b16 %v1686
      %v1735 = vunpack.c.l.b16 %v1687
      %v1736 = vunpack.c.l.b16 %v1688
      %v1737 = vunpack.c.l.b16 %v1689
      %v1738 = vunpack.c.l.b16 %v1690
      %v1739 = vunpack.c.l.b16 %v1691
      %v1740 = vpack.c.b16 %v1725, %v1724
      %v1741 = vpack.c.b16 %v1727, %v1726
      %v1742 = vpack.c.b16 %v1729, %v1728
      %v1743 = vpack.c.b16 %v1731, %v1730
      %v1744 = vpack.c.b16 %v1733, %v1732
      %v1745 = vpack.c.b16 %v1735, %v1734
      %v1746 = vpack.c.b16 %v1737, %v1736
      %v1747 = vpack.c.b16 %v1739, %v1738
      %1756 = vmatprep.subr.bf16.mxu0 0
      %1757 = vmatpush1.bf16.msra.mxu0 %v1747
      %1758 = vmatprep.subr.bf16.mxu0 0
      %1759 = vmatpush1.bf16.msra.mxu0 %v1746
      %1760 = vmatprep.subr.bf16.mxu0 0
      %1761 = vmatpush1.bf16.msra.mxu0 %v1745
      %1762 = vmatprep.subr.bf16.mxu0 0
      %1763 = vmatpush1.bf16.msra.mxu0 %v1744
      %1764 = vmatprep.subr.bf16.mxu0 0
      %1765 = vmatpush1.bf16.msra.mxu0 %v1743
      %1766 = vmatprep.subr.bf16.mxu0 0
      %1767 = vmatpush1.bf16.msra.mxu0 %v1742
      %1768 = vmatprep.subr.bf16.mxu0 0
      %1769 = vmatpush1.bf16.msra.mxu0 %v1741
      %1770 = vmatprep.subr.bf16.mxu0 0
      %1771 = vmatpush1.bf16.msra.mxu0 %v1740
      %1772 = vmatprep.subr.bf16.mxu0 0
      %1773 = vmatpush2.bf16.msra.mxu0 0
      %1774 = vmatprep.subr.bf16.mxu0 0
      %1775 = vmatpush2.bf16.msra.mxu0 0
      %1776 = vmatprep.subr.bf16.mxu0 0
      %1777 = vmatpush2.bf16.msra.mxu0 0
      %1778 = vmatprep.subr.bf16.mxu0 0
      %1779 = vmatpush2.bf16.msra.mxu0 0
      %1780 = vmatprep.subr.bf16.mxu0 0
      %1781 = vmatpush2.bf16.msra.mxu0 0
      %1782 = vmatprep.subr.bf16.mxu0 0
      %1783 = vmatpush2.bf16.msra.mxu0 0
      %1784 = vmatprep.subr.bf16.mxu0 0
      %1785 = vmatpush2.bf16.msra.mxu0 0
      %1786 = vmatprep.subr.bf16.mxu0 0
      %1787 = vmatpush2.bf16.msra.mxu0 0
      %1788 = vmatprep.mubr.bf16.mxu0 0
      %1789 = vmatmul.mubr.bf16.gmra.mxu0 %v1700
      %v1790 = vpop.f32.mrf.mxu0
      %v1791 = vadd.f32 0.0, %v1790
      %v1792 = vpop.f32.mrf.mxu0
      %v1793 = vpop.f32.mrf.mxu0
      %v1794 = vadd.f32 0.0, %v1793
      %v1795 = vpop.f32.mrf.mxu0
      %1796 = vmatprep.mubr.bf16.mxu0 0
      %1797 = vmatmul.mubr.bf16.gmra.mxu0 %v1701
      %v1798 = vpop.f32.mrf.mxu0
      %v1799 = vadd.f32 0.0, %v1798
      %v1800 = vpop.f32.mrf.mxu0
      %v1801 = vpop.f32.mrf.mxu0
      %v1802 = vadd.f32 0.0, %v1801
      %v1803 = vpop.f32.mrf.mxu0
      %1804 = vmatprep.mubr.bf16.mxu0 0
      %1805 = vmatmul.mubr.bf16.gmra.mxu0 %v1702
      %v1806 = vpop.f32.mrf.mxu0
      %v1807 = vadd.f32 0.0, %v1806
      %v1808 = vpop.f32.mrf.mxu0
      %v1809 = vpop.f32.mrf.mxu0
      %v1810 = vadd.f32 0.0, %v1809
      %v1811 = vpop.f32.mrf.mxu0
      %1812 = vmatprep.mubr.bf16.mxu0 0
      %1813 = vmatmul.mubr.bf16.gmra.mxu0 %v1703
      %v1814 = vpop.f32.mrf.mxu0
      %v1815 = vadd.f32 0.0, %v1814
      %v1816 = vpop.f32.mrf.mxu0
      %v1817 = vpop.f32.mrf.mxu0
      %v1818 = vadd.f32 0.0, %v1817
      %v1819 = vpop.f32.mrf.mxu0
      %1820 = vdwg.mxu0
      %v1821 = vadd.f32 %v1611, %v1791
      %v1822 = vadd.f32 %v1612, %v1794
      %v1823 = vadd.f32 %v1613, %v1799
      %v1824 = vadd.f32 %v1614, %v1802
      %v1825 = vadd.f32 %v1615, %v1807
      %v1826 = vadd.f32 %v1616, %v1810
      %v1827 = vadd.f32 %v1617, %v1815
      %v1828 = vadd.f32 %v1618, %v1818
      %s1829 = scalar_lea.vmem [#allocation2], 16
      %v1830 = vld [vmem:[%s1829] sm:$0xf]
      %v1831 = vld [vmem:[%s1829 + $0x8] sm:$0xf]
      %v1832 = vld [vmem:[%s1829 + $0x10] sm:$0xf]
      %v1833 = vld [vmem:[%s1829 + $0x18] sm:$0xf]
      %v1834 = vld [vmem:[%s1829 + $0x20] sm:$0xf]
      %v1835 = vld [vmem:[%s1829 + $0x28] sm:$0xf]
      %v1836 = vld [vmem:[%s1829 + $0x30] sm:$0xf]
      %v1837 = vld [vmem:[%s1829 + $0x38] sm:$0xf]
      %s1838 = scalar_lea.vmem %s1, 384
      %v1839 = vld [vmem:[%s1838] sm:$0xf]
      %v1840 = vld [vmem:[%s1838 + $0x4] sm:$0xf]
      %v1841 = vld [vmem:[%s1838 + $0x8] sm:$0xf]
      %v1842 = vld [vmem:[%s1838 + $0xc] sm:$0xf]
      %v1843 = vld [vmem:[%s1838 + $0x10] sm:$0xf]
      %v1844 = vld [vmem:[%s1838 + $0x14] sm:$0xf]
      %v1845 = vld [vmem:[%s1838 + $0x18] sm:$0xf]
      %v1846 = vld [vmem:[%s1838 + $0x1c] sm:$0xf]
      %v1847 = vld [vmem:[%s1838 + $0x20] sm:$0xf]
      %v1848 = vld [vmem:[%s1838 + $0x24] sm:$0xf]
      %v1849 = vld [vmem:[%s1838 + $0x28] sm:$0xf]
      %v1850 = vld [vmem:[%s1838 + $0x2c] sm:$0xf]
      %v1851 = vld [vmem:[%s1838 + $0x30] sm:$0xf]
      %v1852 = vld [vmem:[%s1838 + $0x34] sm:$0xf]
      %v1853 = vld [vmem:[%s1838 + $0x38] sm:$0xf]
      %v1854 = vld [vmem:[%s1838 + $0x3c] sm:$0xf]
      %v1863 = vunpack.c.l.b16 %v1830
      %v1864 = vunpack.c.l.b16 %v1831
      %v1865 = vunpack.c.l.b16 %v1832
      %v1866 = vunpack.c.l.b16 %v1833
      %v1867 = vunpack.c.l.b16 %v1834
      %v1868 = vunpack.c.l.b16 %v1835
      %v1869 = vunpack.c.l.b16 %v1836
      %v1870 = vunpack.c.l.b16 %v1837
      %v1871 = vpack.c.b16 %v1864, %v1863
      %v1872 = vpack.c.b16 %v1866, %v1865
      %v1873 = vpack.c.b16 %v1868, %v1867
      %v1874 = vpack.c.b16 %v1870, %v1869
      %v1895 = vunpack.c.l.b16 %v1839
      %v1896 = vunpack.c.l.b16 %v1840
      %v1897 = vunpack.c.l.b16 %v1841
      %v1898 = vunpack.c.l.b16 %v1842
      %v1899 = vunpack.c.l.b16 %v1843
      %v1900 = vunpack.c.l.b16 %v1844
      %v1901 = vunpack.c.l.b16 %v1845
      %v1902 = vunpack.c.l.b16 %v1846
      %v1903 = vunpack.c.l.b16 %v1847
      %v1904 = vunpack.c.l.b16 %v1848
      %v1905 = vunpack.c.l.b16 %v1849
      %v1906 = vunpack.c.l.b16 %v1850
      %v1907 = vunpack.c.l.b16 %v1851
      %v1908 = vunpack.c.l.b16 %v1852
      %v1909 = vunpack.c.l.b16 %v1853
      %v1910 = vunpack.c.l.b16 %v1854
      %v1911 = vpack.c.b16 %v1896, %v1895
      %v1912 = vpack.c.b16 %v1898, %v1897
      %v1913 = vpack.c.b16 %v1900, %v1899
      %v1914 = vpack.c.b16 %v1902, %v1901
      %v1915 = vpack.c.b16 %v1904, %v1903
      %v1916 = vpack.c.b16 %v1906, %v1905
      %v1917 = vpack.c.b16 %v1908, %v1907
      %v1918 = vpack.c.b16 %v1910, %v1909
      %1927 = vmatprep.subr.bf16.mxu0 0
      %1928 = vmatpush1.bf16.msra.mxu0 %v1918
      %1929 = vmatprep.subr.bf16.mxu0 0
      %1930 = vmatpush1.bf16.msra.mxu0 %v1917
      %1931 = vmatprep.subr.bf16.mxu0 0
      %1932 = vmatpush1.bf16.msra.mxu0 %v1916
      %1933 = vmatprep.subr.bf16.mxu0 0
      %1934 = vmatpush1.bf16.msra.mxu0 %v1915
      %1935 = vmatprep.subr.bf16.mxu0 0
      %1936 = vmatpush1.bf16.msra.mxu0 %v1914
      %1937 = vmatprep.subr.bf16.mxu0 0
      %1938 = vmatpush1.bf16.msra.mxu0 %v1913
      %1939 = vmatprep.subr.bf16.mxu0 0
      %1940 = vmatpush1.bf16.msra.mxu0 %v1912
      %1941 = vmatprep.subr.bf16.mxu0 0
      %1942 = vmatpush1.bf16.msra.mxu0 %v1911
      %1943 = vmatprep.subr.bf16.mxu0 0
      %1944 = vmatpush2.bf16.msra.mxu0 0
      %1945 = vmatprep.subr.bf16.mxu0 0
      %1946 = vmatpush2.bf16.msra.mxu0 0
      %1947 = vmatprep.subr.bf16.mxu0 0
      %1948 = vmatpush2.bf16.msra.mxu0 0
      %1949 = vmatprep.subr.bf16.mxu0 0
      %1950 = vmatpush2.bf16.msra.mxu0 0
      %1951 = vmatprep.subr.bf16.mxu0 0
      %1952 = vmatpush2.bf16.msra.mxu0 0
      %1953 = vmatprep.subr.bf16.mxu0 0
      %1954 = vmatpush2.bf16.msra.mxu0 0
      %1955 = vmatprep.subr.bf16.mxu0 0
      %1956 = vmatpush2.bf16.msra.mxu0 0
      %1957 = vmatprep.subr.bf16.mxu0 0
      %1958 = vmatpush2.bf16.msra.mxu0 0
      %1959 = vmatprep.mubr.bf16.mxu0 0
      %1960 = vmatmul.mubr.bf16.gmra.mxu0 %v1871
      %v1961 = vpop.f32.mrf.mxu0
      %v1962 = vadd.f32 0.0, %v1961
      %v1963 = vpop.f32.mrf.mxu0
      %v1964 = vpop.f32.mrf.mxu0
      %v1965 = vadd.f32 0.0, %v1964
      %v1966 = vpop.f32.mrf.mxu0
      %1967 = vmatprep.mubr.bf16.mxu0 0
      %1968 = vmatmul.mubr.bf16.gmra.mxu0 %v1872
      %v1969 = vpop.f32.mrf.mxu0
      %v1970 = vadd.f32 0.0, %v1969
      %v1971 = vpop.f32.mrf.mxu0
      %v1972 = vpop.f32.mrf.mxu0
      %v1973 = vadd.f32 0.0, %v1972
      %v1974 = vpop.f32.mrf.mxu0
      %1975 = vmatprep.mubr.bf16.mxu0 0
      %1976 = vmatmul.mubr.bf16.gmra.mxu0 %v1873
      %v1977 = vpop.f32.mrf.mxu0
      %v1978 = vadd.f32 0.0, %v1977
      %v1979 = vpop.f32.mrf.mxu0
      %v1980 = vpop.f32.mrf.mxu0
      %v1981 = vadd.f32 0.0, %v1980
      %v1982 = vpop.f32.mrf.mxu0
      %1983 = vmatprep.mubr.bf16.mxu0 0
      %1984 = vmatmul.mubr.bf16.gmra.mxu0 %v1874
      %v1985 = vpop.f32.mrf.mxu0
      %v1986 = vadd.f32 0.0, %v1985
      %v1987 = vpop.f32.mrf.mxu0
      %v1988 = vpop.f32.mrf.mxu0
      %v1989 = vadd.f32 0.0, %v1988
      %v1990 = vpop.f32.mrf.mxu0
      %1991 = vdwg.mxu0
      %v1992 = vadd.f32 %v1821, %v1962
      %v1993 = vadd.f32 %v1822, %v1965
      %v1994 = vadd.f32 %v1823, %v1970
      %v1995 = vadd.f32 %v1824, %v1973
      %v1996 = vadd.f32 %v1825, %v1978
      %v1997 = vadd.f32 %v1826, %v1981
      %v1998 = vadd.f32 %v1827, %v1986
      %v1999 = vadd.f32 %v1828, %v1989
      %v2000 = vld [vmem:[%s1829] sm:$0xf]
      %v2001 = vld [vmem:[%s1829 + $0x4] sm:$0x1]
      %v2002 = vld [vmem:[%s1829 + $0x8] sm:$0xf]
      %v2003 = vld [vmem:[%s1829 + $0xc] sm:$0x1]
      %v2004 = vld [vmem:[%s1829 + $0x10] sm:$0xf]
      %v2005 = vld [vmem:[%s1829 + $0x14] sm:$0x1]
      %v2006 = vld [vmem:[%s1829 + $0x18] sm:$0xf]
      %v2007 = vld [vmem:[%s1829 + $0x1c] sm:$0x1]
      %v2008 = vld [vmem:[%s1829 + $0x20] sm:$0xf]
      %v2009 = vld [vmem:[%s1829 + $0x24] sm:$0x1]
      %v2010 = vld [vmem:[%s1829 + $0x28] sm:$0xf]
      %v2011 = vld [vmem:[%s1829 + $0x2c] sm:$0x1]
      %v2012 = vld [vmem:[%s1829 + $0x30] sm:$0xf]
      %v2013 = vld [vmem:[%s1829 + $0x34] sm:$0x1]
      %v2014 = vld [vmem:[%s1829 + $0x38] sm:$0xf]
      %v2015 = vld [vmem:[%s1829 + $0x3c] sm:$0x1]
      %v2017 = vshrl.u32 %v2000, 16
      %v2019 = vrot.slane %v2017, 4
      %v2020 = vshll.u32 %v2000, 16
      %v2022 = vrot.slane %v2020, 5
      %v2023 = vor.u32 %v2019, %v2022
      %v2024 = vrot.slane %v2023, 4
      %v2026 = vshll.u32 %v2001, 16
      %v2028 = vrot.slane %v2026, 5
      %v2029 = vsel %vm558, %v2024, %v2028
      %v2031 = vshrl.u32 %v2002, 16
      %v2033 = vrot.slane %v2031, 4
      %v2034 = vshll.u32 %v2002, 16
      %v2036 = vrot.slane %v2034, 5
      %v2037 = vor.u32 %v2033, %v2036
      %v2038 = vrot.slane %v2037, 4
      %v2040 = vshll.u32 %v2003, 16
      %v2042 = vrot.slane %v2040, 5
      %v2043 = vsel %vm558, %v2038, %v2042
      %v2045 = vshrl.u32 %v2004, 16
      %v2047 = vrot.slane %v2045, 4
      %v2048 = vshll.u32 %v2004, 16
      %v2050 = vrot.slane %v2048, 5
      %v2051 = vor.u32 %v2047, %v2050
      %v2052 = vrot.slane %v2051, 4
      %v2054 = vshll.u32 %v2005, 16
      %v2056 = vrot.slane %v2054, 5
      %v2057 = vsel %vm558, %v2052, %v2056
      %v2059 = vshrl.u32 %v2006, 16
      %v2061 = vrot.slane %v2059, 4
      %v2062 = vshll.u32 %v2006, 16
      %v2064 = vrot.slane %v2062, 5
      %v2065 = vor.u32 %v2061, %v2064
      %v2066 = vrot.slane %v2065, 4
      %v2068 = vshll.u32 %v2007, 16
      %v2070 = vrot.slane %v2068, 5
      %v2071 = vsel %vm558, %v2066, %v2070
      %v2073 = vshrl.u32 %v2008, 16
      %v2075 = vrot.slane %v2073, 4
      %v2076 = vshll.u32 %v2008, 16
      %v2078 = vrot.slane %v2076, 5
      %v2079 = vor.u32 %v2075, %v2078
      %v2080 = vrot.slane %v2079, 4
      %v2082 = vshll.u32 %v2009, 16
      %v2084 = vrot.slane %v2082, 5
      %v2085 = vsel %vm558, %v2080, %v2084
      %v2087 = vshrl.u32 %v2010, 16
      %v2089 = vrot.slane %v2087, 4
      %v2090 = vshll.u32 %v2010, 16
      %v2092 = vrot.slane %v2090, 5
      %v2093 = vor.u32 %v2089, %v2092
      %v2094 = vrot.slane %v2093, 4
      %v2096 = vshll.u32 %v2011, 16
      %v2098 = vrot.slane %v2096, 5
      %v2099 = vsel %vm558, %v2094, %v2098
      %v2101 = vshrl.u32 %v2012, 16
      %v2103 = vrot.slane %v2101, 4
      %v2104 = vshll.u32 %v2012, 16
      %v2106 = vrot.slane %v2104, 5
      %v2107 = vor.u32 %v2103, %v2106
      %v2108 = vrot.slane %v2107, 4
      %v2110 = vshll.u32 %v2013, 16
      %v2112 = vrot.slane %v2110, 5
      %v2113 = vsel %vm558, %v2108, %v2112
      %v2115 = vshrl.u32 %v2014, 16
      %v2117 = vrot.slane %v2115, 4
      %v2118 = vshll.u32 %v2014, 16
      %v2120 = vrot.slane %v2118, 5
      %v2121 = vor.u32 %v2117, %v2120
      %v2122 = vrot.slane %v2121, 4
      %v2124 = vshll.u32 %v2015, 16
      %v2126 = vrot.slane %v2124, 5
      %v2127 = vsel %vm558, %v2122, %v2126
      %s2128 = scalar_lea.vmem %s1, 448
      %v2129 = vld [vmem:[%s2128] sm:$0xf]
      %v2130 = vld [vmem:[%s2128 + $0x4] sm:$0xf]
      %v2131 = vld [vmem:[%s2128 + $0x8] sm:$0xf]
      %v2132 = vld [vmem:[%s2128 + $0xc] sm:$0xf]
      %v2133 = vld [vmem:[%s2128 + $0x10] sm:$0xf]
      %v2134 = vld [vmem:[%s2128 + $0x14] sm:$0xf]
      %v2135 = vld [vmem:[%s2128 + $0x18] sm:$0xf]
      %v2136 = vld [vmem:[%s2128 + $0x1c] sm:$0xf]
      %v2137 = vld [vmem:[%s2128 + $0x20] sm:$0xf]
      %v2138 = vld [vmem:[%s2128 + $0x24] sm:$0xf]
      %v2139 = vld [vmem:[%s2128 + $0x28] sm:$0xf]
      %v2140 = vld [vmem:[%s2128 + $0x2c] sm:$0xf]
      %v2141 = vld [vmem:[%s2128 + $0x30] sm:$0xf]
      %v2142 = vld [vmem:[%s2128 + $0x34] sm:$0xf]
      %v2143 = vld [vmem:[%s2128 + $0x38] sm:$0xf]
      %v2144 = vld [vmem:[%s2128 + $0x3c] sm:$0xf]
      %v2145 = vunpack.c.l.b16 %v2029
      %v2146 = vunpack.c.l.b16 %v2043
      %v2147 = vunpack.c.l.b16 %v2057
      %v2148 = vunpack.c.l.b16 %v2071
      %v2149 = vunpack.c.l.b16 %v2085
      %v2150 = vunpack.c.l.b16 %v2099
      %v2151 = vunpack.c.l.b16 %v2113
      %v2152 = vunpack.c.l.b16 %v2127
      %v2153 = vpack.c.b16 %v2146, %v2145
      %v2154 = vpack.c.b16 %v2148, %v2147
      %v2155 = vpack.c.b16 %v2150, %v2149
      %v2156 = vpack.c.b16 %v2152, %v2151
      %v2177 = vunpack.c.l.b16 %v2129
      %v2178 = vunpack.c.l.b16 %v2130
      %v2179 = vunpack.c.l.b16 %v2131
      %v2180 = vunpack.c.l.b16 %v2132
      %v2181 = vunpack.c.l.b16 %v2133
      %v2182 = vunpack.c.l.b16 %v2134
      %v2183 = vunpack.c.l.b16 %v2135
      %v2184 = vunpack.c.l.b16 %v2136
      %v2185 = vunpack.c.l.b16 %v2137
      %v2186 = vunpack.c.l.b16 %v2138
      %v2187 = vunpack.c.l.b16 %v2139
      %v2188 = vunpack.c.l.b16 %v2140
      %v2189 = vunpack.c.l.b16 %v2141
      %v2190 = vunpack.c.l.b16 %v2142
      %v2191 = vunpack.c.l.b16 %v2143
      %v2192 = vunpack.c.l.b16 %v2144
      %v2193 = vpack.c.b16 %v2178, %v2177
      %v2194 = vpack.c.b16 %v2180, %v2179
      %v2195 = vpack.c.b16 %v2182, %v2181
      %v2196 = vpack.c.b16 %v2184, %v2183
      %v2197 = vpack.c.b16 %v2186, %v2185
      %v2198 = vpack.c.b16 %v2188, %v2187
      %v2199 = vpack.c.b16 %v2190, %v2189
      %v2200 = vpack.c.b16 %v2192, %v2191
      %2209 = vmatprep.subr.bf16.mxu0 0
      %2210 = vmatpush1.bf16.msra.mxu0 %v2200
      %2211 = vmatprep.subr.bf16.mxu0 0
      %2212 = vmatpush1.bf16.msra.mxu0 %v2199
      %2213 = vmatprep.subr.bf16.mxu0 0
      %2214 = vmatpush1.bf16.msra.mxu0 %v2198
      %2215 = vmatprep.subr.bf16.mxu0 0
      %2216 = vmatpush1.bf16.msra.mxu0 %v2197
      %2217 = vmatprep.subr.bf16.mxu0 0
      %2218 = vmatpush1.bf16.msra.mxu0 %v2196
      %2219 = vmatprep.subr.bf16.mxu0 0
      %2220 = vmatpush1.bf16.msra.mxu0 %v2195
      %2221 = vmatprep.subr.bf16.mxu0 0
      %2222 = vmatpush1.bf16.msra.mxu0 %v2194
      %2223 = vmatprep.subr.bf16.mxu0 0
      %2224 = vmatpush1.bf16.msra.mxu0 %v2193
      %2225 = vmatprep.subr.bf16.mxu0 0
      %2226 = vmatpush2.bf16.msra.mxu0 0
      %2227 = vmatprep.subr.bf16.mxu0 0
      %2228 = vmatpush2.bf16.msra.mxu0 0
      %2229 = vmatprep.subr.bf16.mxu0 0
      %2230 = vmatpush2.bf16.msra.mxu0 0
      %2231 = vmatprep.subr.bf16.mxu0 0
      %2232 = vmatpush2.bf16.msra.mxu0 0
      %2233 = vmatprep.subr.bf16.mxu0 0
      %2234 = vmatpush2.bf16.msra.mxu0 0
      %2235 = vmatprep.subr.bf16.mxu0 0
      %2236 = vmatpush2.bf16.msra.mxu0 0
      %2237 = vmatprep.subr.bf16.mxu0 0
      %2238 = vmatpush2.bf16.msra.mxu0 0
      %2239 = vmatprep.subr.bf16.mxu0 0
      %2240 = vmatpush2.bf16.msra.mxu0 0
      %2241 = vmatprep.mubr.bf16.mxu0 0
      %2242 = vmatmul.mubr.bf16.gmra.mxu0 %v2153
      %v2243 = vpop.f32.mrf.mxu0
      %v2244 = vadd.f32 0.0, %v2243
      %v2245 = vpop.f32.mrf.mxu0
      %v2246 = vpop.f32.mrf.mxu0
      %v2247 = vadd.f32 0.0, %v2246
      %v2248 = vpop.f32.mrf.mxu0
      %2249 = vmatprep.mubr.bf16.mxu0 0
      %2250 = vmatmul.mubr.bf16.gmra.mxu0 %v2154
      %v2251 = vpop.f32.mrf.mxu0
      %v2252 = vadd.f32 0.0, %v2251
      %v2253 = vpop.f32.mrf.mxu0
      %v2254 = vpop.f32.mrf.mxu0
      %v2255 = vadd.f32 0.0, %v2254
      %v2256 = vpop.f32.mrf.mxu0
      %2257 = vmatprep.mubr.bf16.mxu0 0
      %2258 = vmatmul.mubr.bf16.gmra.mxu0 %v2155
      %v2259 = vpop.f32.mrf.mxu0
      %v2260 = vadd.f32 0.0, %v2259
      %v2261 = vpop.f32.mrf.mxu0
      %v2262 = vpop.f32.mrf.mxu0
      %v2263 = vadd.f32 0.0, %v2262
      %v2264 = vpop.f32.mrf.mxu0
      %2265 = vmatprep.mubr.bf16.mxu0 0
      %2266 = vmatmul.mubr.bf16.gmra.mxu0 %v2156
      %v2267 = vpop.f32.mrf.mxu0
      %v2268 = vadd.f32 0.0, %v2267
      %v2269 = vpop.f32.mrf.mxu0
      %v2270 = vpop.f32.mrf.mxu0
      %v2271 = vadd.f32 0.0, %v2270
      %v2272 = vpop.f32.mrf.mxu0
      %2273 = vdwg.mxu0
      %v2274 = vadd.f32 %v1992, %v2244
      %v2275 = vadd.f32 %v1993, %v2247
      %v2276 = vadd.f32 %v1994, %v2252
      %v2277 = vadd.f32 %v1995, %v2255
      %v2278 = vadd.f32 %v1996, %v2260
      %v2279 = vadd.f32 %v1997, %v2263
      %v2280 = vadd.f32 %v1998, %v2268
      %v2281 = vadd.f32 %v1999, %v2271
      %v2282 = vld [vmem:[%s1829] sm:$0xe]
      %v2283 = vld [vmem:[%s1829 + $0x8] sm:$0xe]
      %v2284 = vld [vmem:[%s1829 + $0x10] sm:$0xe]
      %v2285 = vld [vmem:[%s1829 + $0x18] sm:$0xe]
      %v2286 = vld [vmem:[%s1829 + $0x20] sm:$0xe]
      %v2287 = vld [vmem:[%s1829 + $0x28] sm:$0xe]
      %v2288 = vld [vmem:[%s1829 + $0x30] sm:$0xe]
      %v2289 = vld [vmem:[%s1829 + $0x38] sm:$0xe]
      %v2306 = vrot.slane %v2282, 5
      %v2307 = vrot.slane %v2306, 4
      %v2308 = vrot.slane %v2001, 5
      %v2309 = vsel %vm980, %v2307, %v2308
      %v2310 = vrot.slane %v2283, 5
      %v2311 = vrot.slane %v2310, 4
      %v2312 = vrot.slane %v2003, 5
      %v2313 = vsel %vm980, %v2311, %v2312
      %v2314 = vrot.slane %v2284, 5
      %v2315 = vrot.slane %v2314, 4
      %v2316 = vrot.slane %v2005, 5
      %v2317 = vsel %vm980, %v2315, %v2316
      %v2318 = vrot.slane %v2285, 5
      %v2319 = vrot.slane %v2318, 4
      %v2320 = vrot.slane %v2007, 5
      %v2321 = vsel %vm980, %v2319, %v2320
      %v2322 = vrot.slane %v2286, 5
      %v2323 = vrot.slane %v2322, 4
      %v2324 = vrot.slane %v2009, 5
      %v2325 = vsel %vm980, %v2323, %v2324
      %v2326 = vrot.slane %v2287, 5
      %v2327 = vrot.slane %v2326, 4
      %v2328 = vrot.slane %v2011, 5
      %v2329 = vsel %vm980, %v2327, %v2328
      %v2330 = vrot.slane %v2288, 5
      %v2331 = vrot.slane %v2330, 4
      %v2332 = vrot.slane %v2013, 5
      %v2333 = vsel %vm980, %v2331, %v2332
      %v2334 = vrot.slane %v2289, 5
      %v2335 = vrot.slane %v2334, 4
      %v2336 = vrot.slane %v2015, 5
      %v2337 = vsel %vm980, %v2335, %v2336
      %s2338 = scalar_lea.vmem %s1, 512
      %v2339 = vld [vmem:[%s2338] sm:$0xf]
      %v2340 = vld [vmem:[%s2338 + $0x4] sm:$0xf]
      %v2341 = vld [vmem:[%s2338 + $0x8] sm:$0xf]
      %v2342 = vld [vmem:[%s2338 + $0xc] sm:$0xf]
      %v2343 = vld [vmem:[%s2338 + $0x10] sm:$0xf]
      %v2344 = vld [vmem:[%s2338 + $0x14] sm:$0xf]
      %v2345 = vld [vmem:[%s2338 + $0x18] sm:$0xf]
      %v2346 = vld [vmem:[%s2338 + $0x1c] sm:$0xf]
      %v2347 = vld [vmem:[%s2338 + $0x20] sm:$0xf]
      %v2348 = vld [vmem:[%s2338 + $0x24] sm:$0xf]
      %v2349 = vld [vmem:[%s2338 + $0x28] sm:$0xf]
      %v2350 = vld [vmem:[%s2338 + $0x2c] sm:$0xf]
      %v2351 = vld [vmem:[%s2338 + $0x30] sm:$0xf]
      %v2352 = vld [vmem:[%s2338 + $0x34] sm:$0xf]
      %v2353 = vld [vmem:[%s2338 + $0x38] sm:$0xf]
      %v2354 = vld [vmem:[%s2338 + $0x3c] sm:$0xf]
      %v2355 = vunpack.c.l.b16 %v2309
      %v2356 = vunpack.c.l.b16 %v2313
      %v2357 = vunpack.c.l.b16 %v2317
      %v2358 = vunpack.c.l.b16 %v2321
      %v2359 = vunpack.c.l.b16 %v2325
      %v2360 = vunpack.c.l.b16 %v2329
      %v2361 = vunpack.c.l.b16 %v2333
      %v2362 = vunpack.c.l.b16 %v2337
      %v2363 = vpack.c.b16 %v2356, %v2355
      %v2364 = vpack.c.b16 %v2358, %v2357
      %v2365 = vpack.c.b16 %v2360, %v2359
      %v2366 = vpack.c.b16 %v2362, %v2361
      %v2387 = vunpack.c.l.b16 %v2339
      %v2388 = vunpack.c.l.b16 %v2340
      %v2389 = vunpack.c.l.b16 %v2341
      %v2390 = vunpack.c.l.b16 %v2342
      %v2391 = vunpack.c.l.b16 %v2343
      %v2392 = vunpack.c.l.b16 %v2344
      %v2393 = vunpack.c.l.b16 %v2345
      %v2394 = vunpack.c.l.b16 %v2346
      %v2395 = vunpack.c.l.b16 %v2347
      %v2396 = vunpack.c.l.b16 %v2348
      %v2397 = vunpack.c.l.b16 %v2349
      %v2398 = vunpack.c.l.b16 %v2350
      %v2399 = vunpack.c.l.b16 %v2351
      %v2400 = vunpack.c.l.b16 %v2352
      %v2401 = vunpack.c.l.b16 %v2353
      %v2402 = vunpack.c.l.b16 %v2354
      %v2403 = vpack.c.b16 %v2388, %v2387
      %v2404 = vpack.c.b16 %v2390, %v2389
      %v2405 = vpack.c.b16 %v2392, %v2391
      %v2406 = vpack.c.b16 %v2394, %v2393
      %v2407 = vpack.c.b16 %v2396, %v2395
      %v2408 = vpack.c.b16 %v2398, %v2397
      %v2409 = vpack.c.b16 %v2400, %v2399
      %v2410 = vpack.c.b16 %v2402, %v2401
      %2419 = vmatprep.subr.bf16.mxu0 0
      %2420 = vmatpush1.bf16.msra.mxu0 %v2410
      %2421 = vmatprep.subr.bf16.mxu0 0
      %2422 = vmatpush1.bf16.msra.mxu0 %v2409
      %2423 = vmatprep.subr.bf16.mxu0 0
      %2424 = vmatpush1.bf16.msra.mxu0 %v2408
      %2425 = vmatprep.subr.bf16.mxu0 0
      %2426 = vmatpush1.bf16.msra.mxu0 %v2407
      %2427 = vmatprep.subr.bf16.mxu0 0
      %2428 = vmatpush1.bf16.msra.mxu0 %v2406
      %2429 = vmatprep.subr.bf16.mxu0 0
      %2430 = vmatpush1.bf16.msra.mxu0 %v2405
      %2431 = vmatprep.subr.bf16.mxu0 0
      %2432 = vmatpush1.bf16.msra.mxu0 %v2404
      %2433 = vmatprep.subr.bf16.mxu0 0
      %2434 = vmatpush1.bf16.msra.mxu0 %v2403
      %2435 = vmatprep.subr.bf16.mxu0 0
      %2436 = vmatpush2.bf16.msra.mxu0 0
      %2437 = vmatprep.subr.bf16.mxu0 0
      %2438 = vmatpush2.bf16.msra.mxu0 0
      %2439 = vmatprep.subr.bf16.mxu0 0
      %2440 = vmatpush2.bf16.msra.mxu0 0
      %2441 = vmatprep.subr.bf16.mxu0 0
      %2442 = vmatpush2.bf16.msra.mxu0 0
      %2443 = vmatprep.subr.bf16.mxu0 0
      %2444 = vmatpush2.bf16.msra.mxu0 0
      %2445 = vmatprep.subr.bf16.mxu0 0
      %2446 = vmatpush2.bf16.msra.mxu0 0
      %2447 = vmatprep.subr.bf16.mxu0 0
      %2448 = vmatpush2.bf16.msra.mxu0 0
      %2449 = vmatprep.subr.bf16.mxu0 0
      %2450 = vmatpush2.bf16.msra.mxu0 0
      %2451 = vmatprep.mubr.bf16.mxu0 0
      %2452 = vmatmul.mubr.bf16.gmra.mxu0 %v2363
      %v2453 = vpop.f32.mrf.mxu0
      %v2454 = vadd.f32 0.0, %v2453
      %v2455 = vpop.f32.mrf.mxu0
      %v2456 = vpop.f32.mrf.mxu0
      %v2457 = vadd.f32 0.0, %v2456
      %v2458 = vpop.f32.mrf.mxu0
      %2459 = vmatprep.mubr.bf16.mxu0 0
      %2460 = vmatmul.mubr.bf16.gmra.mxu0 %v2364
      %v2461 = vpop.f32.mrf.mxu0
      %v2462 = vadd.f32 0.0, %v2461
      %v2463 = vpop.f32.mrf.mxu0
      %v2464 = vpop.f32.mrf.mxu0
      %v2465 = vadd.f32 0.0, %v2464
      %v2466 = vpop.f32.mrf.mxu0
      %2467 = vmatprep.mubr.bf16.mxu0 0
      %2468 = vmatmul.mubr.bf16.gmra.mxu0 %v2365
      %v2469 = vpop.f32.mrf.mxu0
      %v2470 = vadd.f32 0.0, %v2469
      %v2471 = vpop.f32.mrf.mxu0
      %v2472 = vpop.f32.mrf.mxu0
      %v2473 = vadd.f32 0.0, %v2472
      %v2474 = vpop.f32.mrf.mxu0
      %2475 = vmatprep.mubr.bf16.mxu0 0
      %2476 = vmatmul.mubr.bf16.gmra.mxu0 %v2366
      %v2477 = vpop.f32.mrf.mxu0
      %v2478 = vadd.f32 0.0, %v2477
      %v2479 = vpop.f32.mrf.mxu0
      %v2480 = vpop.f32.mrf.mxu0
      %v2481 = vadd.f32 0.0, %v2480
      %v2482 = vpop.f32.mrf.mxu0
      %2483 = vdwg.mxu0
      %v2484 = vadd.f32 %v2274, %v2454
      %v2485 = vadd.f32 %v2275, %v2457
      %v2486 = vadd.f32 %v2276, %v2462
      %v2487 = vadd.f32 %v2277, %v2465
      %v2488 = vadd.f32 %v2278, %v2470
      %v2489 = vadd.f32 %v2279, %v2473
      %v2490 = vadd.f32 %v2280, %v2478
      %v2491 = vadd.f32 %v2281, %v2481
      %v2492 = vpack.c.bf16 %v2485, %v2484
      %v2493 = vpack.c.bf16 %v2487, %v2486
      %v2494 = vpack.c.bf16 %v2489, %v2488
      %v2495 = vpack.c.bf16 %v2491, %v2490
      %v2500 = vunpack.c.l.b16 %v2492
      %v2501 = vunpack.c.h.b16 %v2492
      %v2502 = vunpack.c.l.b16 %v2493
      %v2503 = vunpack.c.h.b16 %v2493
      %v2504 = vunpack.c.l.b16 %v2494
      %v2505 = vunpack.c.h.b16 %v2494
      %v2506 = vunpack.c.l.b16 %v2495
      %v2507 = vunpack.c.h.b16 %v2495
      %v2508 = vpack.c.b16 %v2500, %v2500
      %v2509 = vpack.c.b16 %v2501, %v2501
      %v2510 = vpack.c.b16 %v2502, %v2502
      %v2511 = vpack.c.b16 %v2503, %v2503
      %v2512 = vpack.c.b16 %v2504, %v2504
      %v2513 = vpack.c.b16 %v2505, %v2505
      %v2514 = vpack.c.b16 %v2506, %v2506
      %v2515 = vpack.c.b16 %v2507, %v2507
      %2524 = vst [vmem:[%s231] sm:$0xf] %v2508
      %2525 = vst [vmem:[%s231 + $0x4] sm:$0xf] %v2509
      %2526 = vst [vmem:[%s231 + $0x8] sm:$0xf] %v2510
      %2527 = vst [vmem:[%s231 + $0xc] sm:$0xf] %v2511
      %2528 = vst [vmem:[%s231 + $0x10] sm:$0xf] %v2512
      %2529 = vst [vmem:[%s231 + $0x14] sm:$0xf] %v2513
      %2530 = vst [vmem:[%s231 + $0x18] sm:$0xf] %v2514
      %2531 = vst [vmem:[%s231 + $0x1c] sm:$0xf] %v2515
      %vm2532 = vcmask 523264
      %v2534 = vsel %vm2532, 1.0, 0
      %2536 = vmatprep.subr.mxu0 0.0
      %2537 = vmatpush1.msra.mxu0 0.0
      %2538 = vmatprep.subr.mxu0 0.0
      %2539 = vmatpush1.msra.mxu0 0.0
      %2540 = vmatprep.subr.mxu0 0.0
      %2541 = vmatpush1.msra.mxu0 0.0
      %2542 = vmatprep.subr.mxu0 0.0
      %2543 = vmatpush1.msra.mxu0 0.0
      %2544 = vmatprep.subr.mxu0 0.0
      %2545 = vmatpush1.msra.mxu0 0.0
      %2546 = vmatprep.subr.mxu0 0.0
      %2547 = vmatpush1.msra.mxu0 0.0
      %2548 = vmatprep.subr.mxu0 0.0
      %2549 = vmatpush1.msra.mxu0 0.0
      %2550 = vmatprep.subr.mxu0 0.0
      %2551 = vmatpush1.msra.mxu0 0.0
      %2552 = vmatprep.subr.mxu0 0.0
      %2553 = vmatpush1.msra.mxu0 %v2491
      %2554 = vmatprep.subr.mxu0 0.0
      %2555 = vmatpush1.msra.mxu0 %v2490
      %2556 = vmatprep.subr.mxu0 0.0
      %2557 = vmatpush1.msra.mxu0 %v2489
      %2558 = vmatprep.subr.mxu0 0.0
      %2559 = vmatpush1.msra.mxu0 %v2488
      %2560 = vmatprep.subr.mxu0 0.0
      %2561 = vmatpush1.msra.mxu0 %v2487
      %2562 = vmatprep.subr.mxu0 0.0
      %2563 = vmatpush1.msra.mxu0 %v2486
      %2564 = vmatprep.subr.mxu0 0.0
      %2565 = vmatpush1.msra.mxu0 %v2485
      %2566 = vmatprep.subr.mxu0 0.0
      %2567 = vmatpush1.msra.mxu0 %v2484
      %2568 = vmatprep.subr.mxu0 0.0
      %2569 = vmatpush2.msra.mxu0 0.0
      %2570 = vmatprep.subr.mxu0 0.0
      %2571 = vmatpush2.msra.mxu0 0.0
      %2572 = vmatprep.subr.mxu0 0.0
      %2573 = vmatpush2.msra.mxu0 0.0
      %2574 = vmatprep.subr.mxu0 0.0
      %2575 = vmatpush2.msra.mxu0 0.0
      %2576 = vmatprep.subr.mxu0 0.0
      %2577 = vmatpush2.msra.mxu0 0.0
      %2578 = vmatprep.subr.mxu0 0.0
      %2579 = vmatpush2.msra.mxu0 0.0
      %2580 = vmatprep.subr.mxu0 0.0
      %2581 = vmatpush2.msra.mxu0 0.0
      %2582 = vmatprep.subr.mxu0 0.0
      %2583 = vmatpush2.msra.mxu0 0.0
      %2584 = vmatprep.subr.mxu0 0.0
      %2585 = vmatpush2.msra.mxu0 0.0
      %2586 = vmatprep.subr.mxu0 0.0
      %2587 = vmatpush2.msra.mxu0 0.0
      %2588 = vmatprep.subr.mxu0 0.0
      %2589 = vmatpush2.msra.mxu0 0.0
      %2590 = vmatprep.subr.mxu0 0.0
      %2591 = vmatpush2.msra.mxu0 0.0
      %2592 = vmatprep.subr.mxu0 0.0
      %2593 = vmatpush2.msra.mxu0 0.0
      %2594 = vmatprep.subr.mxu0 0.0
      %2595 = vmatpush2.msra.mxu0 0.0
      %2596 = vmatprep.subr.mxu0 0.0
      %2597 = vmatpush2.msra.mxu0 0.0
      %2598 = vmatprep.subr.mxu0 0.0
      %2599 = vmatpush2.msra.mxu0 0.0
      %2600 = vmatprep.mubr.f32.mxu0 0.0
      %2601 = vmatmul.mubr.f32.gmra.mxu0 %v2534
      %v2602 = vpop.f32.mrf.mxu0
      %v2603 = vadd.f32 0.0, %v2602
      %v2604 = vpop.f32.mrf.mxu0
      %2605 = vdwg.mxu0
      %2606 = vst [vmem:[%s235] sm:$0x1] %v2603
      %v2607 = vmul.f32 %v2484, %v2484
      %v2608 = vmul.f32 %v2485, %v2485
      %v2609 = vmul.f32 %v2486, %v2486
      %v2610 = vmul.f32 %v2487, %v2487
      %v2611 = vmul.f32 %v2488, %v2488
      %v2612 = vmul.f32 %v2489, %v2489
      %v2613 = vmul.f32 %v2490, %v2490
      %v2614 = vmul.f32 %v2491, %v2491
      %2615 = vmatprep.subr.mxu0 0.0
      %2616 = vmatpush1.msra.mxu0 0.0
      %2617 = vmatprep.subr.mxu0 0.0
      %2618 = vmatpush1.msra.mxu0 0.0
      %2619 = vmatprep.subr.mxu0 0.0
      %2620 = vmatpush1.msra.mxu0 0.0
      %2621 = vmatprep.subr.mxu0 0.0
      %2622 = vmatpush1.msra.mxu0 0.0
      %2623 = vmatprep.subr.mxu0 0.0
      %2624 = vmatpush1.msra.mxu0 0.0
      %2625 = vmatprep.subr.mxu0 0.0
      %2626 = vmatpush1.msra.mxu0 0.0
      %2627 = vmatprep.subr.mxu0 0.0
      %2628 = vmatpush1.msra.mxu0 0.0
      %2629 = vmatprep.subr.mxu0 0.0
      %2630 = vmatpush1.msra.mxu0 0.0
      %2631 = vmatprep.subr.mxu0 0.0
      %2632 = vmatpush1.msra.mxu0 %v2614
      %2633 = vmatprep.subr.mxu0 0.0
      %2634 = vmatpush1.msra.mxu0 %v2613
      %2635 = vmatprep.subr.mxu0 0.0
      %2636 = vmatpush1.msra.mxu0 %v2612
      %2637 = vmatprep.subr.mxu0 0.0
      %2638 = vmatpush1.msra.mxu0 %v2611
      %2639 = vmatprep.subr.mxu0 0.0
      %2640 = vmatpush1.msra.mxu0 %v2610
      %2641 = vmatprep.subr.mxu0 0.0
      %2642 = vmatpush1.msra.mxu0 %v2609
      %2643 = vmatprep.subr.mxu0 0.0
      %2644 = vmatpush1.msra.mxu0 %v2608
      %2645 = vmatprep.subr.mxu0 0.0
      %2646 = vmatpush1.msra.mxu0 %v2607
      %2647 = vmatprep.subr.mxu0 0.0
      %2648 = vmatpush2.msra.mxu0 0.0
      %2649 = vmatprep.subr.mxu0 0.0
      %2650 = vmatpush2.msra.mxu0 0.0
      %2651 = vmatprep.subr.mxu0 0.0
      %2652 = vmatpush2.msra.mxu0 0.0
      %2653 = vmatprep.subr.mxu0 0.0
      %2654 = vmatpush2.msra.mxu0 0.0
      %2655 = vmatprep.subr.mxu0 0.0
      %2656 = vmatpush2.msra.mxu0 0.0
      %2657 = vmatprep.subr.mxu0 0.0
      %2658 = vmatpush2.msra.mxu0 0.0
      %2659 = vmatprep.subr.mxu0 0.0
      %2660 = vmatpush2.msra.mxu0 0.0
      %2661 = vmatprep.subr.mxu0 0.0
      %2662 = vmatpush2.msra.mxu0 0.0
      %2663 = vmatprep.subr.mxu0 0.0
      %2664 = vmatpush2.msra.mxu0 0.0
      %2665 = vmatprep.subr.mxu0 0.0
      %2666 = vmatpush2.msra.mxu0 0.0
      %2667 = vmatprep.subr.mxu0 0.0
      %2668 = vmatpush2.msra.mxu0 0.0
      %2669 = vmatprep.subr.mxu0 0.0
      %2670 = vmatpush2.msra.mxu0 0.0
      %2671 = vmatprep.subr.mxu0 0.0
      %2672 = vmatpush2.msra.mxu0 0.0
      %2673 = vmatprep.subr.mxu0 0.0
      %2674 = vmatpush2.msra.mxu0 0.0
      %2675 = vmatprep.subr.mxu0 0.0
      %2676 = vmatpush2.msra.mxu0 0.0
      %2677 = vmatprep.subr.mxu0 0.0
      %2678 = vmatpush2.msra.mxu0 0.0
      %2679 = vmatprep.mubr.f32.mxu0 0.0
      %2680 = vmatmul.mubr.f32.gmra.mxu0 %v2534
      %v2681 = vpop.f32.mrf.mxu0
      %v2682 = vadd.f32 0.0, %v2681
      %v2683 = vpop.f32.mrf.mxu0
      %2684 = vdwg.mxu0
      %2685 = vst [vmem:[%s235 + $0x1] sm:$0x1] %v2682
      %p2686 = scmp.lt.s32.totalorder %s17, 1
      %s2687 = scalar_select %p2686, %s17, 1
      %s2688 = smul.addr %s2687, 8
      %s2689 = smul.addr %s2688, 4
      %s2690 = scalar_lea.vmem %s4, %s2689
      %p2691 = scmp.lt.s32.totalorder %s17, 1
      %s2692 = scalar_select %p2691, %s17, 1
      %s2693 = smul.addr %s2692, 2
      %s2694 = scalar_lea.vmem %s5, %s2693
      // Predicated region
      $region37: #{residual8_forward.4} parent=35 // pred_check
        %p2695 = pneg %p124
      $region38: #{residual8_forward.4} parent=35 // pred_check_branch
        %2697 = sbr.rel (%p2695) target = $region40
      $region39: #{residual8_forward.4} parent=35 // pred_region
        _
      $region40: #{residual8_forward.4} parent=35 // pred_fallthru
        _
      // Predicated region
      $region41: #{residual8_forward.4} parent=35 // pred_check
        %p2698 = pneg %p150
      $region42: #{residual8_forward.4} parent=35 // pred_check_branch
        %2700 = sbr.rel (%p2698) target = $region44
      $region43: #{residual8_forward.4} parent=35 // pred_region
        _
      $region44: #{residual8_forward.4} parent=35 // pred_fallthru
        _
    $region36: #{residual8_forward.4} parent=5 // pred_fallthru
      _
    %p2701 = scmp.le.s32.totalorder 2, %s12
    // Predicated region
    $region45: #{residual8_forward.4} parent=5 // pred_check
      %p2702 = pneg %p2701
    $region46: #{residual8_forward.4} parent=5 // pred_check_branch
      %2704 = sbr.rel (%p2702) target = $region48
    $region47: #{residual8_forward.4} parent=5 // pred_region
      %s2705 = ssub.s32 %s12, 2
      // Predicated region
      $region49: #{residual8_forward.4} parent=47 // pred_check
        %p2706 = pneg %p130
      $region50: #{residual8_forward.4} parent=47 // pred_check_branch
        %2708 = sbr.rel (%p2706) target = $region52
      $region51: #{residual8_forward.4} parent=47 // pred_region
        %p2709 = scmp.lt.s32.totalorder %s18, 1
        %s2710 = scalar_select %p2709, %s18, 1
        %s2711 = smul.addr %s2710, 8
        %s2712 = smul.addr %s2711, 4
        %s2713 = scalar_lea.vmem %s4, %s2712
      $region52: #{residual8_forward.4} parent=47 // pred_fallthru
        _
      // Predicated region
      $region53: #{residual8_forward.4} parent=47 // pred_check
        %p2714 = pneg %p156
      $region54: #{residual8_forward.4} parent=47 // pred_check_branch
        %2716 = sbr.rel (%p2714) target = $region56
      $region55: #{residual8_forward.4} parent=47 // pred_region
        %p2717 = scmp.lt.s32.totalorder %s18, 1
        %s2718 = scalar_select %p2717, %s18, 1
        %s2719 = smul.addr %s2718, 2
        %s2720 = scalar_lea.vmem %s5, %s2719
      $region56: #{residual8_forward.4} parent=47 // pred_fallthru
        _
    $region48: #{residual8_forward.4} parent=5 // pred_fallthru
      _
  $region6: #{residual8_forward.4} parent=0 // loop_footer
    %s16 = sadd.s32 1, %s12
  $region7: #{residual8_forward.4} parent=0 // loop_footer_branch
    %11 = sbr.rel target = $region3
  $region8: #{residual8_forward.4} parent=0 // loop_exit
    _

</llo_original>
